<compile_context>
chip_gen: v7x
topology: tpu7x:2x2x1
jax: 0.10.0
libtpu: 0.0.40
codegen_flags: <defaults>
</compile_context>

<pallas_src>
import functools

import jax
import jax.numpy as jnp
from jax import lax
from jax.experimental import pallas as pl
from jax.experimental.pallas import tpu as pltpu


def _round_up(x, m):
    return -(-x // m) * m


# torch gate order (i, f, g, o) -> fused lane-block order (i, f, o, g)
_LAYOUT_BLOCK = (0, 1, 3, 2)


# ----------------------------- VMEM sizing helpers -------------------------- #

def _padded_bytes(shape, itemsize):
    """Tile-padded VMEM bytes: last dim -> 128 lanes, 2nd-last -> 8/16 sublanes."""
    shape = tuple(shape)
    last = shape[-1]
    sub = shape[-2] if len(shape) >= 2 else 1
    lead = 1
    for d in shape[:-2]:
        lead *= d
    sub_tile = 8 * (4 // itemsize)          # 8 for f32, 16 for bf16
    return lead * _round_up(sub, sub_tile) * _round_up(last, 128) * itemsize


def _lstm_vmem_bytes(S, Cin, Tc, Bp, Hp):
    """Estimate of per-call VMEM for the fused bidirectional LSTM layer."""
    G = 8 * Hp
    total = 0
    total += 2 * 2 * S * _padded_bytes((Tc, Bp, Cin), 2)   # xf/xb slab views, dbl-buf
    total += 2 * 2 * _padded_bytes((Tc, Bp, Hp), 2)        # yf/yb outputs, dbl-buf
    total += 2 * _padded_bytes((Tc, Bp, G), 4)             # gxf/gxb scratch (f32)
    total += 2 * (2 * S * _padded_bytes((Cin, G), 2)       # wih_f/wih_b
                  + _padded_bytes((2 * Hp, G), 2)          # whh
                  + _padded_bytes((1, G), 4))              # bias
    total += _padded_bytes((Bp, 2 * Hp), 2) + _padded_bytes((Bp, 2 * Hp), 4)
    return total


def _choose_time_chunk(T, Bp, Hp, slab_dims, budget_bytes=24 * 1024 * 1024):
    """Largest power-of-two-ish Tc (multiple of 16) whose VMEM need fits budget."""
    T8 = _round_up(max(T, 8), 8)
    tc = 16
    while tc < 1024:
        nxt = tc * 2
        need = max(_lstm_vmem_bytes(S, Cin, nxt, Bp, Hp) for S, Cin in slab_dims)
        if need > budget_bytes:
            break
        tc = nxt
    if T8 <= tc:
        return T8            # whole (padded) sequence in a single chunk
    return tc


# ----------------------------- Pallas kernels ------------------------------ #

def _lstm_fused_kernel(*refs, S, T_real, Tc, nchunks, unroll):
    """Both directions of one LSTM layer over one time chunk (grid=(nchunks,)).

    refs (in order):
      xf[0..S-1] : (Tc, Bp, Cin) bf16   forward-chunk view of each input slab
      xb[0..S-1] : (Tc, Bp, Cin) bf16   backward-chunk view of each input slab
      wih_f      : (S, Cin, 8Hp) bf16   fwd input->gates (bwd lanes zero)
      wih_b      : (S, Cin, 8Hp) bf16   bwd input->gates (fwd lanes zero)
      whh        : (2Hp, 8Hp)    bf16   block-diag hidden->gates, both dirs
      b          : (1, 8Hp)      f32    fused bias (both dirs)
      yf         : (Tc, Bp, Hp)  bf16   forward-direction output chunk
      yb         : (Tc, Bp, Hp)  bf16   backward-direction output chunk
      gxf, gxb   : (Tc, Bp, 8Hp) f32    scratch: hoisted input projections
      h          : (Bp, 2Hp)     bf16   scratch: hidden carry [fwd | bwd]
      c          : (Bp, 2Hp)     f32    scratch: cell carry   [fwd | bwd]
    """
    xf = refs[:S]
    xb = refs[S:2 * S]
    wihf_ref, wihb_ref, whh_ref, b_ref = refs[2 * S:2 * S + 4]
    yf_ref, yb_ref = refs[2 * S + 4:2 * S + 6]
    gxf_ref, gxb_ref, h_ref, c_ref = refs[2 * S + 6:]

    k = pl.program_id(0)
    Bp, Hp = yf_ref.shape[1], yf_ref.shape[2]
    Hp2 = 2 * Hp
    G = 8 * Hp
    Cin = xf[0].shape[-1]

    @pl.when(k == 0)
    def _init():
        h_ref[...] = jnp.zeros_like(h_ref)
        c_ref[...] = jnp.zeros_like(c_ref)

    # ---- Hoisted input projection: one big MXU matmul per slab per direction.
    def hoist(slab_refs, w_ref):
        acc = jnp.dot(slab_refs[0][...].reshape(Tc * Bp, Cin), w_ref[0],
                      preferred_element_type=jnp.float32)
        for s in range(1, S):
            acc = acc + jnp.dot(slab_refs[s][...].reshape(Tc * Bp, Cin), w_ref[s],
                                preferred_element_type=jnp.float32)
        return acc

    # Bias added once here: wih_f's bwd lanes are zero, so those lanes of gxf
    # become exactly the bwd bias (and gxb's fwd lanes are zero).
    gxf_ref[...] = (hoist(xf, wihf_ref) + b_ref[...]).reshape(Tc, Bp, G)
    gxb_ref[...] = hoist(xb, wihb_ref).reshape(Tc, Bp, G)

    whh = whh_ref[...]                                     # (2Hp, 8Hp) bf16
    needs_mask = (nchunks * Tc != T_real)                  # static
    if needs_mask:
        lane = lax.broadcasted_iota(jnp.int32, (Bp, Hp2), 1)
        tb_base = (nchunks - 1 - k) * Tc                   # bwd chunk's global start

    def step(t, carry):
        h, c = carry                                       # (Bp,2Hp) bf16 / f32
        rt = Tc - 1 - t                                    # bwd local time index
        gates = gxf_ref[t] + gxb_ref[rt] + jnp.dot(
            h, whh, preferred_element_type=jnp.float32)    # (Bp, 8Hp) f32
        sig = jax.nn.sigmoid(gates[:, :6 * Hp])            # i, f, o (both dirs)
        g_t = jnp.tanh(gates[:, 6 * Hp:])                  # g        (both dirs)
        i_g = sig[:, 0:Hp2]
        f_g = sig[:, Hp2:2 * Hp2]
        o_g = sig[:, 2 * Hp2:3 * Hp2]
        c_new = f_g * c + i_g * g_t
        h_new = (o_g * jnp.tanh(c_new)).astype(jnp.bfloat16)
        if needs_mask:
            # Only the backward direction sees padded timesteps before real
            # data; freeze its lanes there so its state stays at the init.
            keep = jnp.logical_or(lane < Hp, (tb_base + rt) < T_real)
            c_new = jnp.where(keep, c_new, c)
            h_new = jnp.where(keep, h_new, h)
        yf_ref[t] = h_new[:, :Hp]
        yb_ref[rt] = h_new[:, Hp:]
        return (h_new, c_new)

    carry = (h_ref[...], c_ref[...])
    if Tc <= 64:
        # Fully unroll short recurrences at trace time (LLO scheduler visibility).
        for t in range(Tc):
            carry = step(t, carry)
    else:
        carry = lax.fori_loop(0, Tc, step, carry, unroll=unroll)
    h_ref[...] = carry[0]
    c_ref[...] = carry[1]


def _head_kernel(yf_ref, yb_ref, w_ref, b_ref, o_ref):
    """1x1 Conv1d head == pointwise linear, lane-dense (padded-nclass) output.

    yf_ref/yb_ref: (Tc, Bp, Hp) bf16; w_ref: (2, Hp, Np) bf16; b_ref: (1, Np) f32;
    o_ref: (Tc, Bp, Np) f32.
    """
    Tc, Bp, Hp = yf_ref.shape
    Np = w_ref.shape[-1]
    acc = jnp.dot(yf_ref[...].reshape(Tc * Bp, Hp), w_ref[0],
                  preferred_element_type=jnp.float32)
    acc = acc + jnp.dot(yb_ref[...].reshape(Tc * Bp, Hp), w_ref[1],
                        preferred_element_type=jnp.float32)
    o_ref[...] = (acc + b_ref[...]).reshape(Tc, Bp, Np)


# ------------------------------ pallas_call wrappers ------------------------ #

def run_fused_lstm_layer(slabs, wih_f, wih_b, whh, b, *, T_real, Tc):
    """slabs: list of (Tp, Bp, Cin) bf16 -> (yf, yb) each (Tp, Bp, Hp) bf16."""
    S = len(slabs)
    Tp, Bp, Cin = slabs[0].shape
    Hp = whh.shape[0] // 2
    G = 8 * Hp
    nchunks = Tp // Tc
    unroll = next(u for u in (16, 8, 4, 2, 1) if Tc % u == 0)

    est = _lstm_vmem_bytes(S, Cin, Tc, Bp, Hp)
    vmem_limit = int(min(max(2 * est, 16 << 20), 48 << 20))

    kernel = functools.partial(_lstm_fused_kernel, S=S, T_real=T_real,
                               Tc=Tc, nchunks=nchunks, unroll=unroll)

    in_specs = (
        [pl.BlockSpec((Tc, Bp, Cin), lambda k: (k, 0, 0)) for _ in range(S)] +
        [pl.BlockSpec((Tc, Bp, Cin), lambda k: (nchunks - 1 - k, 0, 0))
         for _ in range(S)] +
        [pl.BlockSpec((S, Cin, G), lambda k: (0, 0, 0)),
         pl.BlockSpec((S, Cin, G), lambda k: (0, 0, 0)),
         pl.BlockSpec((2 * Hp, G), lambda k: (0, 0)),
         pl.BlockSpec((1, G), lambda k: (0, 0))])

    yf, yb = pl.pallas_call(
        kernel,
        out_shape=(jax.ShapeDtypeStruct((Tp, Bp, Hp), jnp.bfloat16),
                   jax.ShapeDtypeStruct((Tp, Bp, Hp), jnp.bfloat16)),
        grid_spec=pltpu.PrefetchScalarGridSpec(
            num_scalar_prefetch=0,
            grid=(nchunks,),
            in_specs=in_specs,
            out_specs=[pl.BlockSpec((Tc, Bp, Hp), lambda k: (k, 0, 0)),
                       pl.BlockSpec((Tc, Bp, Hp),
                                    lambda k: (nchunks - 1 - k, 0, 0))],
            scratch_shapes=[
                pltpu.VMEM((Tc, Bp, G), jnp.float32),    # gxf (hoisted, + bias)
                pltpu.VMEM((Tc, Bp, G), jnp.float32),    # gxb (hoisted)
                pltpu.VMEM((Bp, 2 * Hp), jnp.bfloat16),  # h carry [fwd | bwd]
                pltpu.VMEM((Bp, 2 * Hp), jnp.float32),   # c carry [fwd | bwd]
            ]),
        compiler_params=pltpu.CompilerParams(
            dimension_semantics=("arbitrary",),          # carry across chunks
            vmem_limit_bytes=vmem_limit),
    )(*slabs, *slabs, wih_f, wih_b, whh, b)
    return yf, yb


def run_head(yf, yb, w, b, *, Tc):
    """yf/yb: (Tp, Bp, Hp) bf16 -> logits (Tp, Bp, Np) f32 (lane-dense Np)."""
    Tp, Bp, Hp = yf.shape
    Np = w.shape[-1]
    nchunks = Tp // Tc
    est = (2 * 2 * _padded_bytes((Tc, Bp, Hp), 2)
           + 2 * _padded_bytes((Tc, Bp, Np), 4)
           + 2 * (_padded_bytes((2, Hp, Np), 2) + _padded_bytes((1, Np), 4)))
    vmem_limit = int(min(max(2 * est, 16 << 20), 48 << 20))
    return pl.pallas_call(
        _head_kernel,
        out_shape=jax.ShapeDtypeStruct((Tp, Bp, Np), jnp.float32),
        grid_spec=pltpu.PrefetchScalarGridSpec(
            num_scalar_prefetch=0,
            grid=(nchunks,),
            in_specs=[pl.BlockSpec((Tc, Bp, Hp), lambda k: (k, 0, 0)),
                      pl.BlockSpec((Tc, Bp, Hp), lambda k: (k, 0, 0)),
                      pl.BlockSpec((2, Hp, Np), lambda k: (0, 0, 0)),
                      pl.BlockSpec((1, Np), lambda k: (0, 0))],
            out_specs=pl.BlockSpec((Tc, Bp, Np), lambda k: (k, 0, 0))),
        compiler_params=pltpu.CompilerParams(
            dimension_semantics=("parallel",),
            vmem_limit_bytes=vmem_limit),
    )(yf, yb, w, b)


# ------------------------------ parameter packing --------------------------- #

def _pack_ih(w_ih, H, Hp, S, cin_real, cin_pad, d):
    """(4H, S*cin_real) PyTorch W_ih of direction d -> (S, cin_pad, 8Hp) fused lanes."""
    G = 8 * Hp
    out = jnp.zeros((S, cin_pad, G), jnp.float32)
    for s in range(S):
        for gt in range(4):                                  # torch order i,f,g,o
            col0 = _LAYOUT_BLOCK[gt] * 2 * Hp + d * Hp
            blk = w_ih[gt * H:(gt + 1) * H, s * cin_real:(s + 1) * cin_real]
            out = out.at[s, :cin_real, col0:col0 + H].set(blk.T)
    return out


def _pack_hh(w_hh_fwd, w_hh_bwd, H, Hp):
    """Two (4H, H) W_hh -> block-diagonal (2Hp, 8Hp) fused hidden->gates."""
    G = 8 * Hp
    out = jnp.zeros((2 * Hp, G), jnp.float32)
    for d, w in enumerate((w_hh_fwd, w_hh_bwd)):
        for gt in range(4):
            col0 = _LAYOUT_BLOCK[gt] * 2 * Hp + d * Hp
            out = out.at[d * Hp:d * Hp + H, col0:col0 + H].set(
                w[gt * H:(gt + 1) * H, :].T)
    return out


def _pack_bias(b_fwd, b_bwd, H, Hp):
    """Two (4H,) combined b_ih+b_hh -> (1, 8Hp) fused bias."""
    G = 8 * Hp
    out = jnp.zeros((G,), jnp.float32)
    for d, bb in enumerate((b_fwd, b_bwd)):
        for gt in range(4):
            col0 = _LAYOUT_BLOCK[gt] * 2 * Hp + d * Hp
            out = out.at[col0:col0 + H].set(bb[gt * H:(gt + 1) * H])
    return out[None, :]


def init_params(key, *, nclass, in_chans, lstm_max_features, lstm_layers,
                bidirectional=True):
    """Deterministic params in the padded/packed layout the kernels consume."""
    assert bidirectional, "only the bidirectional path is implemented"
    H = lstm_max_features // 2
    Hp = _round_up(H, 16)                          # 8*Hp is a multiple of 128 lanes
    Np = _round_up(max(nclass, 128), 128)          # lane-dense logits
    Cp0 = _round_up(max(in_chans, 8), 8)

    layers = []
    S, cin_real, cin_pad = 1, in_chans, Cp0
    for _ in range(lstm_layers):
        packed_ih, raw_hh, raw_b = [], [], []
        for _d in range(2):
            key, k1, k2, k3, k4 = jax.random.split(key, 5)
            w_ih = jax.random.normal(k1, (4 * H, S * cin_real), jnp.float32) * 0.1
            w_hh = jax.random.normal(k2, (4 * H, H), jnp.float32) * 0.1
            b_ih = jax.random.normal(k3, (4 * H,), jnp.float32) * 0.1
            b_hh = jax.random.normal(k4, (4 * H,), jnp.float32) * 0.1
            packed_ih.append(_pack_ih(w_ih, H, Hp, S, cin_real, cin_pad, _d))
            raw_hh.append(w_hh)
            raw_b.append(b_ih + b_hh)
        layers.append({
            "wih_f": packed_ih[0].astype(jnp.bfloat16),     # (S, cin_pad, 8Hp)
            "wih_b": packed_ih[1].astype(jnp.bfloat16),     # (S, cin_pad, 8Hp)
            "whh": _pack_hh(raw_hh[0], raw_hh[1], H, Hp).astype(jnp.bfloat16),
            "b": _pack_bias(raw_b[0], raw_b[1], H, Hp),     # (1, 8Hp) f32
        })
        S, cin_real, cin_pad = 2, H, Hp                     # next layer consumes 2 slabs

    # Conv1d(out_chans=2*H -> nclass, kernel_size=1): channels [0:H]=fwd, [H:2H]=bwd
    key, k1 = jax.random.split(key)
    conv_w = jax.random.normal(k1, (nclass, 2 * H, 1), jnp.float32) * 0.1
    conv_b = jnp.zeros((nclass,), jnp.float32)
    head_w = jnp.zeros((2, Hp, Np), jnp.float32)
    for d in range(2):
        head_w = head_w.at[d, :H, :nclass].set(conv_w[:, d * H:(d + 1) * H, 0].T)
    head_b = jnp.zeros((1, Np), jnp.float32).at[0, :nclass].set(conv_b)
    return {"layers": layers,
            "head_w": head_w.astype(jnp.bfloat16),
            "head_b": head_b}


# --------------------------------- forward ---------------------------------- #

@functools.partial(jax.jit, static_argnames=("nclass",))
def rnn_forward(x_ncl, params, *, nclass):
    """Equivalent of RNN.forward (eval mode). x_ncl: (B, in_chans, T) -> (B, nclass, T)."""
    B, Cin, T = x_ncl.shape
    Cp0 = params["layers"][0]["wih_f"].shape[1]
    Hp = params["layers"][-1]["whh"].shape[0] // 2
    Bp = _round_up(max(B, 8), 8)

    slab_dims = [(lp["wih_f"].shape[0], lp["wih_f"].shape[1])
                 for lp in params["layers"]]
    Tc = _choose_time_chunk(T, Bp, Hp, slab_dims)
    nchunks = -(-T // Tc)
    Tp = nchunks * Tc

    # NCL -> time-major, zero-pad to aligned (Tp, Bp, Cp0), bf16 for the matmuls.
    x = jnp.transpose(x_ncl, (2, 0, 1))
    x = jnp.pad(x, ((0, Tp - T), (0, Bp - B), (0, Cp0 - Cin))).astype(jnp.bfloat16)

    slabs = [x]                                  # layer 0: one input slab
    for lp in params["layers"]:
        yf, yb = run_fused_lstm_layer(slabs, lp["wih_f"], lp["wih_b"],
                                      lp["whh"], lp["b"], T_real=T, Tc=Tc)
        slabs = [yf, yb]                         # layers >=1: two slabs (fwd, bwd)

    logits = run_head(slabs[0], slabs[1], params["head_w"], params["head_b"],
                      Tc=Tc)                     # (Tp, Bp, Np) f32
    logits = logits[:T, :B, :nclass]
    return jnp.transpose(logits, (1, 2, 0))      # (B, nclass, T)


# ----------------------------------- main ------------------------------------ #

if __name__ == "__main__":
    # Small shapes consistent with the module: batch=2, in_chans=4, seq=8,
    # lstm_max_features=32 (hidden=16 per direction), lstm_layers=2, nclass=5.
    B, C_IN, T = 2, 4, 8
    NCLASS, MAX_FEAT, LAYERS = 5, 32, 2

    key = jax.random.PRNGKey(0)
    key, xk = jax.random.split(key)
    x = jax.random.normal(xk, (B, C_IN, T), jnp.float32)    # PyTorch NCL input

    params = init_params(key, nclass=NCLASS, in_chans=C_IN,
                         lstm_max_features=MAX_FEAT, lstm_layers=LAYERS,
                         bidirectional=True)

    out = rnn_forward(x, params, nclass=NCLASS)
    out = jax.block_until_ready(out)
    assert out.shape == (B, NCLASS, T), out.shape
    print("KERNEL_OK")
</pallas_src>

<mosaic_0001>
module attributes {stable_mosaic.version = 11 : i64} {
  func.func @_lstm_fused_kernel(%arg0: i32, %arg1: memref<8x8x8xbf16, #tpu.memory_space<vmem>>, %arg2: memref<8x8x8xbf16, #tpu.memory_space<vmem>>, %arg3: memref<1x8x128xbf16, #tpu.memory_space<vmem>>, %arg4: memref<1x8x128xbf16, #tpu.memory_space<vmem>>, %arg5: memref<32x128xbf16, #tpu.memory_space<vmem>>, %arg6: memref<1x128xf32, #tpu.memory_space<vmem>>, %arg7: memref<8x8x16xbf16, #tpu.memory_space<vmem>>, %arg8: memref<8x8x16xbf16, #tpu.memory_space<vmem>>, %arg9: memref<8x8x128xf32, #tpu.memory_space<vmem>>, %arg10: memref<8x8x128xf32, #tpu.memory_space<vmem>>, %arg11: memref<8x32xbf16, #tpu.memory_space<vmem>>, %arg12: memref<8x32xf32, #tpu.memory_space<vmem>>) attributes {dimension_semantics = [#tpu.dimension_semantics<arbitrary>], iteration_bounds = array<i64: 1>, scalar_prefetch = 0 : i64, scratch_operands = 4 : i64, tpu.core_type = #tpu.core_type<tc>, window_params = [{transform_indices = @transform_0, window_bounds = array<i64: 8, 8, 8>}, {transform_indices = @transform_1, window_bounds = array<i64: 8, 8, 8>}, {pipeline_mode = #tpu.pipeline_mode<synchronous>, transform_indices = @transform_2, window_bounds = array<i64: 1, 8, 128>}, {pipeline_mode = #tpu.pipeline_mode<synchronous>, transform_indices = @transform_3, window_bounds = array<i64: 1, 8, 128>}, {pipeline_mode = #tpu.pipeline_mode<synchronous>, transform_indices = @transform_4, window_bounds = array<i64: 32, 128>}, {pipeline_mode = #tpu.pipeline_mode<synchronous>, transform_indices = @transform_5, window_bounds = array<i64: 1, 128>}, {transform_indices = @transform_6, window_bounds = array<i64: 8, 8, 16>}, {transform_indices = @transform_7, window_bounds = array<i64: 8, 8, 16>}]} {
    %c0_i32 = arith.constant 0 : i32
    %0 = arith.cmpi eq, %arg0, %c0_i32 : i32
    %1 = arith.extui %0 : i1 to i32
    %c0_i32_0 = arith.constant 0 : i32
    %2 = arith.cmpi ne, %1, %c0_i32_0 : i32
    scf.if %2 {
      %cst_136 = arith.constant 0.000000e+00 : bf16
      %281 = vector.broadcast %cst_136 : bf16 to vector<8x32xbf16>
      %c0_137 = arith.constant 0 : index
      %c0_138 = arith.constant 0 : index
      %282 = vector.load %arg11[%c0_137, %c0_138] : memref<8x32xbf16, #tpu.memory_space<vmem>>, vector<8x32xbf16>
      tpu.vector_store %arg11[%c0_137, %c0_138], %281 {strides = array<i32>} : memref<8x32xbf16, #tpu.memory_space<vmem>>, vector<8x32xbf16>,
      %cst_139 = arith.constant 0.000000e+00 : f32
      %283 = vector.broadcast %cst_139 : f32 to vector<8x32xf32>
      %c0_140 = arith.constant 0 : index
      %c0_141 = arith.constant 0 : index
      %284 = vector.load %arg12[%c0_140, %c0_141] : memref<8x32xf32, #tpu.memory_space<vmem>>, vector<8x32xf32>
      tpu.vector_store %arg12[%c0_140, %c0_141], %283 {strides = array<i32>} : memref<8x32xf32, #tpu.memory_space<vmem>>, vector<8x32xf32>,
    } else {
    }
    %c0 = arith.constant 0 : index
    %c0_1 = arith.constant 0 : index
    %c0_2 = arith.constant 0 : index
    %3 = vector.load %arg1[%c0, %c0_1, %c0_2] : memref<8x8x8xbf16, #tpu.memory_space<vmem>>, vector<8x8x8xbf16>
    %4 = vector.shape_cast %3 : vector<8x8x8xbf16> to vector<64x8xbf16>
    %c0_3 = arith.constant 0 : index
    %c0_4 = arith.constant 0 : index
    %c0_5 = arith.constant 0 : index
    %5 = vector.load %arg3[%c0_3, %c0_4, %c0_5] : memref<1x8x128xbf16, #tpu.memory_space<vmem>>, vector<1x8x128xbf16>
    %6 = vector.shape_cast %5 : vector<1x8x128xbf16> to vector<8x128xbf16>
    %cst = arith.constant dense<0.000000e+00> : vector<64x128xf32>
    %7 = tpu.matmul %4, %6, %cst {dimension_numbers = #tpu.dot_dimension_numbers<[1], [0], [0], [1], [0, 0, 1, 1], [], []>} : vector<64x8xbf16>, vector<8x128xbf16>, vector<64x128xf32> -> vector<64x128xf32>
    %c0_6 = arith.constant 0 : index
    %c0_7 = arith.constant 0 : index
    %8 = vector.load %arg6[%c0_6, %c0_7] : memref<1x128xf32, #tpu.memory_space<vmem>>, vector<1x128xf32>
    %9 = vector.broadcast %8 : vector<1x128xf32> to vector<64x128xf32>
    %10 = arith.addf %7, %9 : vector<64x128xf32>
    %11 = vector.shape_cast %10 : vector<64x128xf32> to vector<8x8x128xf32>
    %c0_8 = arith.constant 0 : index
    %c0_9 = arith.constant 0 : index
    %c0_10 = arith.constant 0 : index
    %12 = vector.load %arg9[%c0_8, %c0_9, %c0_10] : memref<8x8x128xf32, #tpu.memory_space<vmem>>, vector<8x8x128xf32>
    tpu.vector_store %arg9[%c0_8, %c0_9, %c0_10], %11 {strides = array<i32>} : memref<8x8x128xf32, #tpu.memory_space<vmem>>, vector<8x8x128xf32>,
    %c0_11 = arith.constant 0 : index
    %c0_12 = arith.constant 0 : index
    %c0_13 = arith.constant 0 : index
    %13 = vector.load %arg2[%c0_11, %c0_12, %c0_13] : memref<8x8x8xbf16, #tpu.memory_space<vmem>>, vector<8x8x8xbf16>
    %14 = vector.shape_cast %13 : vector<8x8x8xbf16> to vector<64x8xbf16>
    %c0_14 = arith.constant 0 : index
    %c0_15 = arith.constant 0 : index
    %c0_16 = arith.constant 0 : index
    %15 = vector.load %arg4[%c0_14, %c0_15, %c0_16] : memref<1x8x128xbf16, #tpu.memory_space<vmem>>, vector<1x8x128xbf16>
    %16 = vector.shape_cast %15 : vector<1x8x128xbf16> to vector<8x128xbf16>
    %cst_17 = arith.constant dense<0.000000e+00> : vector<64x128xf32>
    %17 = tpu.matmul %14, %16, %cst_17 {dimension_numbers = #tpu.dot_dimension_numbers<[1], [0], [0], [1], [0, 0, 1, 1], [], []>} : vector<64x8xbf16>, vector<8x128xbf16>, vector<64x128xf32> -> vector<64x128xf32>
    %18 = vector.shape_cast %17 : vector<64x128xf32> to vector<8x8x128xf32>
    %c0_18 = arith.constant 0 : index
    %c0_19 = arith.constant 0 : index
    %c0_20 = arith.constant 0 : index
    %19 = vector.load %arg10[%c0_18, %c0_19, %c0_20] : memref<8x8x128xf32, #tpu.memory_space<vmem>>, vector<8x8x128xf32>
    tpu.vector_store %arg10[%c0_18, %c0_19, %c0_20], %18 {strides = array<i32>} : memref<8x8x128xf32, #tpu.memory_space<vmem>>, vector<8x8x128xf32>,
    %c0_21 = arith.constant 0 : index
    %c0_22 = arith.constant 0 : index
    %20 = vector.load %arg5[%c0_21, %c0_22] : memref<32x128xbf16, #tpu.memory_space<vmem>>, vector<32x128xbf16>
    %c0_23 = arith.constant 0 : index
    %c0_24 = arith.constant 0 : index
    %21 = vector.load %arg11[%c0_23, %c0_24] : memref<8x32xbf16, #tpu.memory_space<vmem>>, vector<8x32xbf16>
    %c0_25 = arith.constant 0 : index
    %c0_26 = arith.constant 0 : index
    %22 = vector.load %arg12[%c0_25, %c0_26] : memref<8x32xf32, #tpu.memory_space<vmem>>, vector<8x32xf32>
    %c0_27 = arith.constant 0 : index
    %c0_28 = arith.constant 0 : index
    %c0_29 = arith.constant 0 : index
    %23 = vector.load %arg9[%c0_27, %c0_28, %c0_29] : memref<8x8x128xf32, #tpu.memory_space<vmem>>, vector<1x8x128xf32>
    %24 = vector.shape_cast %23 : vector<1x8x128xf32> to vector<8x128xf32>
    %c7 = arith.constant 7 : index
    %c0_30 = arith.constant 0 : index
    %c0_31 = arith.constant 0 : index
    %25 = vector.load %arg10[%c7, %c0_30, %c0_31] : memref<8x8x128xf32, #tpu.memory_space<vmem>>, vector<1x8x128xf32>
    %26 = vector.shape_cast %25 : vector<1x8x128xf32> to vector<8x128xf32>
    %27 = arith.addf %24, %26 : vector<8x128xf32>
    %cst_32 = arith.constant dense<0.000000e+00> : vector<8x128xf32>
    %28 = tpu.matmul %21, %20, %cst_32 {dimension_numbers = #tpu.dot_dimension_numbers<[1], [0], [0], [1], [0, 0, 1, 1], [], []>} : vector<8x32xbf16>, vector<32x128xbf16>, vector<8x128xf32> -> vector<8x128xf32>
    %29 = arith.addf %27, %28 : vector<8x128xf32>
    %30 = vector.extract_strided_slice %29 {offsets = [0, 0], sizes = [8, 96], strides = [1, 1]} : vector<8x128xf32> to vector<8x96xf32>
    %31 = arith.negf %30 : vector<8x96xf32>
    %32 = math.exp %31 : vector<8x96xf32>
    %cst_33 = arith.constant 1.000000e+00 : f32
    %33 = vector.broadcast %cst_33 : f32 to vector<8x96xf32>
    %34 = arith.addf %33, %32 : vector<8x96xf32>
    %35 = arith.divf %33, %34 : vector<8x96xf32>
    %36 = vector.extract_strided_slice %29 {offsets = [0, 96], sizes = [8, 32], strides = [1, 1]} : vector<8x128xf32> to vector<8x32xf32>
    %37 = math.tanh %36 : vector<8x32xf32>
    %38 = vector.extract_strided_slice %35 {offsets = [0, 0], sizes = [8, 32], strides = [1, 1]} : vector<8x96xf32> to vector<8x32xf32>
    %39 = vector.extract_strided_slice %35 {offsets = [0, 32], sizes = [8, 32], strides = [1, 1]} : vector<8x96xf32> to vector<8x32xf32>
    %40 = vector.extract_strided_slice %35 {offsets = [0, 64], sizes = [8, 32], strides = [1, 1]} : vector<8x96xf32> to vector<8x32xf32>
    %41 = arith.mulf %39, %22 : vector<8x32xf32>
    %42 = arith.mulf %38, %37 : vector<8x32xf32>
    %43 = arith.addf %41, %42 : vector<8x32xf32>
    %44 = math.tanh %43 : vector<8x32xf32>
    %45 = arith.mulf %40, %44 : vector<8x32xf32>
    %46 = arith.truncf %45 : vector<8x32xf32> to vector<8x32xbf16>
    %47 = vector.extract_strided_slice %46 {offsets = [0, 0], sizes = [8, 16], strides = [1, 1]} : vector<8x32xbf16> to vector<8x16xbf16>
    %c0_34 = arith.constant 0 : index
    %c0_35 = arith.constant 0 : index
    %c0_36 = arith.constant 0 : index
    %48 = vector.load %arg7[%c0_34, %c0_35, %c0_36] : memref<8x8x16xbf16, #tpu.memory_space<vmem>>, vector<1x8x16xbf16>
    %49 = vector.shape_cast %48 : vector<1x8x16xbf16> to vector<8x16xbf16>
    %50 = vector.shape_cast %47 : vector<8x16xbf16> to vector<1x8x16xbf16>
    tpu.vector_store %arg7[%c0_34, %c0_35, %c0_36], %50 {strides = array<i32>} : memref<8x8x16xbf16, #tpu.memory_space<vmem>>, vector<1x8x16xbf16>,
    %51 = vector.extract_strided_slice %46 {offsets = [0, 16], sizes = [8, 16], strides = [1, 1]} : vector<8x32xbf16> to vector<8x16xbf16>
    %c7_37 = arith.constant 7 : index
    %c0_38 = arith.constant 0 : index
    %c0_39 = arith.constant 0 : index
    %52 = vector.load %arg8[%c7_37, %c0_38, %c0_39] : memref<8x8x16xbf16, #tpu.memory_space<vmem>>, vector<1x8x16xbf16>
    %53 = vector.shape_cast %52 : vector<1x8x16xbf16> to vector<8x16xbf16>
    %54 = vector.shape_cast %51 : vector<8x16xbf16> to vector<1x8x16xbf16>
    tpu.vector_store %arg8[%c7_37, %c0_38, %c0_39], %54 {strides = array<i32>} : memref<8x8x16xbf16, #tpu.memory_space<vmem>>, vector<1x8x16xbf16>,
    %c1 = arith.constant 1 : index
    %c0_40 = arith.constant 0 : index
    %c0_41 = arith.constant 0 : index
    %55 = vector.load %arg9[%c1, %c0_40, %c0_41] : memref<8x8x128xf32, #tpu.memory_space<vmem>>, vector<1x8x128xf32>
    %56 = vector.shape_cast %55 : vector<1x8x128xf32> to vector<8x128xf32>
    %c6 = arith.constant 6 : index
    %c0_42 = arith.constant 0 : index
    %c0_43 = arith.constant 0 : index
    %57 = vector.load %arg10[%c6, %c0_42, %c0_43] : memref<8x8x128xf32, #tpu.memory_space<vmem>>, vector<1x8x128xf32>
    %58 = vector.shape_cast %57 : vector<1x8x128xf32> to vector<8x128xf32>
    %59 = arith.addf %56, %58 : vector<8x128xf32>
    %cst_44 = arith.constant dense<0.000000e+00> : vector<8x128xf32>
    %60 = tpu.matmul %46, %20, %cst_44 {dimension_numbers = #tpu.dot_dimension_numbers<[1], [0], [0], [1], [0, 0, 1, 1], [], []>} : vector<8x32xbf16>, vector<32x128xbf16>, vector<8x128xf32> -> vector<8x128xf32>
    %61 = arith.addf %59, %60 : vector<8x128xf32>
    %62 = vector.extract_strided_slice %61 {offsets = [0, 0], sizes = [8, 96], strides = [1, 1]} : vector<8x128xf32> to vector<8x96xf32>
    %63 = arith.negf %62 : vector<8x96xf32>
    %64 = math.exp %63 : vector<8x96xf32>
    %cst_45 = arith.constant 1.000000e+00 : f32
    %65 = vector.broadcast %cst_45 : f32 to vector<8x96xf32>
    %66 = arith.addf %65, %64 : vector<8x96xf32>
    %67 = arith.divf %65, %66 : vector<8x96xf32>
    %68 = vector.extract_strided_slice %61 {offsets = [0, 96], sizes = [8, 32], strides = [1, 1]} : vector<8x128xf32> to vector<8x32xf32>
    %69 = math.tanh %68 : vector<8x32xf32>
    %70 = vector.extract_strided_slice %67 {offsets = [0, 0], sizes = [8, 32], strides = [1, 1]} : vector<8x96xf32> to vector<8x32xf32>
    %71 = vector.extract_strided_slice %67 {offsets = [0, 32], sizes = [8, 32], strides = [1, 1]} : vector<8x96xf32> to vector<8x32xf32>
    %72 = vector.extract_strided_slice %67 {offsets = [0, 64], sizes = [8, 32], strides = [1, 1]} : vector<8x96xf32> to vector<8x32xf32>
    %73 = arith.mulf %71, %43 : vector<8x32xf32>
    %74 = arith.mulf %70, %69 : vector<8x32xf32>
    %75 = arith.addf %73, %74 : vector<8x32xf32>
    %76 = math.tanh %75 : vector<8x32xf32>
    %77 = arith.mulf %72, %76 : vector<8x32xf32>
    %78 = arith.truncf %77 : vector<8x32xf32> to vector<8x32xbf16>
    %79 = vector.extract_strided_slice %78 {offsets = [0, 0], sizes = [8, 16], strides = [1, 1]} : vector<8x32xbf16> to vector<8x16xbf16>
    %c1_46 = arith.constant 1 : index
    %c0_47 = arith.constant 0 : index
    %c0_48 = arith.constant 0 : index
    %80 = vector.load %arg7[%c1_46, %c0_47, %c0_48] : memref<8x8x16xbf16, #tpu.memory_space<vmem>>, vector<1x8x16xbf16>
    %81 = vector.shape_cast %80 : vector<1x8x16xbf16> to vector<8x16xbf16>
    %82 = vector.shape_cast %79 : vector<8x16xbf16> to vector<1x8x16xbf16>
    tpu.vector_store %arg7[%c1_46, %c0_47, %c0_48], %82 {strides = array<i32>} : memref<8x8x16xbf16, #tpu.memory_space<vmem>>, vector<1x8x16xbf16>,
    %83 = vector.extract_strided_slice %78 {offsets = [0, 16], sizes = [8, 16], strides = [1, 1]} : vector<8x32xbf16> to vector<8x16xbf16>
    %c6_49 = arith.constant 6 : index
    %c0_50 = arith.constant 0 : index
    %c0_51 = arith.constant 0 : index
    %84 = vector.load %arg8[%c6_49, %c0_50, %c0_51] : memref<8x8x16xbf16, #tpu.memory_space<vmem>>, vector<1x8x16xbf16>
    %85 = vector.shape_cast %84 : vector<1x8x16xbf16> to vector<8x16xbf16>
    %86 = vector.shape_cast %83 : vector<8x16xbf16> to vector<1x8x16xbf16>
    tpu.vector_store %arg8[%c6_49, %c0_50, %c0_51], %86 {strides = array<i32>} : memref<8x8x16xbf16, #tpu.memory_space<vmem>>, vector<1x8x16xbf16>,
    %c2 = arith.constant 2 : index
    %c0_52 = arith.constant 0 : index
    %c0_53 = arith.constant 0 : index
    %87 = vector.load %arg9[%c2, %c0_52, %c0_53] : memref<8x8x128xf32, #tpu.memory_space<vmem>>, vector<1x8x128xf32>
    %88 = vector.shape_cast %87 : vector<1x8x128xf32> to vector<8x128xf32>
    %c5 = arith.constant 5 : index
    %c0_54 = arith.constant 0 : index
    %c0_55 = arith.constant 0 : index
    %89 = vector.load %arg10[%c5, %c0_54, %c0_55] : memref<8x8x128xf32, #tpu.memory_space<vmem>>, vector<1x8x128xf32>
    %90 = vector.shape_cast %89 : vector<1x8x128xf32> to vector<8x128xf32>
    %91 = arith.addf %88, %90 : vector<8x128xf32>
    %cst_56 = arith.constant dense<0.000000e+00> : vector<8x128xf32>
    %92 = tpu.matmul %78, %20, %cst_56 {dimension_numbers = #tpu.dot_dimension_numbers<[1], [0], [0], [1], [0, 0, 1, 1], [], []>} : vector<8x32xbf16>, vector<32x128xbf16>, vector<8x128xf32> -> vector<8x128xf32>
    %93 = arith.addf %91, %92 : vector<8x128xf32>
    %94 = vector.extract_strided_slice %93 {offsets = [0, 0], sizes = [8, 96], strides = [1, 1]} : vector<8x128xf32> to vector<8x96xf32>
    %95 = arith.negf %94 : vector<8x96xf32>
    %96 = math.exp %95 : vector<8x96xf32>
    %cst_57 = arith.constant 1.000000e+00 : f32
    %97 = vector.broadcast %cst_57 : f32 to vector<8x96xf32>
    %98 = arith.addf %97, %96 : vector<8x96xf32>
    %99 = arith.divf %97, %98 : vector<8x96xf32>
    %100 = vector.extract_strided_slice %93 {offsets = [0, 96], sizes = [8, 32], strides = [1, 1]} : vector<8x128xf32> to vector<8x32xf32>
    %101 = math.tanh %100 : vector<8x32xf32>
    %102 = vector.extract_strided_slice %99 {offsets = [0, 0], sizes = [8, 32], strides = [1, 1]} : vector<8x96xf32> to vector<8x32xf32>
    %103 = vector.extract_strided_slice %99 {offsets = [0, 32], sizes = [8, 32], strides = [1, 1]} : vector<8x96xf32> to vector<8x32xf32>
    %104 = vector.extract_strided_slice %99 {offsets = [0, 64], sizes = [8, 32], strides = [1, 1]} : vector<8x96xf32> to vector<8x32xf32>
    %105 = arith.mulf %103, %75 : vector<8x32xf32>
    %106 = arith.mulf %102, %101 : vector<8x32xf32>
    %107 = arith.addf %105, %106 : vector<8x32xf32>
    %108 = math.tanh %107 : vector<8x32xf32>
    %109 = arith.mulf %104, %108 : vector<8x32xf32>
    %110 = arith.truncf %109 : vector<8x32xf32> to vector<8x32xbf16>
    %111 = vector.extract_strided_slice %110 {offsets = [0, 0], sizes = [8, 16], strides = [1, 1]} : vector<8x32xbf16> to vector<8x16xbf16>
    %c2_58 = arith.constant 2 : index
    %c0_59 = arith.constant 0 : index
    %c0_60 = arith.constant 0 : index
    %112 = vector.load %arg7[%c2_58, %c0_59, %c0_60] : memref<8x8x16xbf16, #tpu.memory_space<vmem>>, vector<1x8x16xbf16>
    %113 = vector.shape_cast %112 : vector<1x8x16xbf16> to vector<8x16xbf16>
    %114 = vector.shape_cast %111 : vector<8x16xbf16> to vector<1x8x16xbf16>
    tpu.vector_store %arg7[%c2_58, %c0_59, %c0_60], %114 {strides = array<i32>} : memref<8x8x16xbf16, #tpu.memory_space<vmem>>, vector<1x8x16xbf16>,
    %115 = vector.extract_strided_slice %110 {offsets = [0, 16], sizes = [8, 16], strides = [1, 1]} : vector<8x32xbf16> to vector<8x16xbf16>
    %c5_61 = arith.constant 5 : index
    %c0_62 = arith.constant 0 : index
    %c0_63 = arith.constant 0 : index
    %116 = vector.load %arg8[%c5_61, %c0_62, %c0_63] : memref<8x8x16xbf16, #tpu.memory_space<vmem>>, vector<1x8x16xbf16>
    %117 = vector.shape_cast %116 : vector<1x8x16xbf16> to vector<8x16xbf16>
    %118 = vector.shape_cast %115 : vector<8x16xbf16> to vector<1x8x16xbf16>
    tpu.vector_store %arg8[%c5_61, %c0_62, %c0_63], %118 {strides = array<i32>} : memref<8x8x16xbf16, #tpu.memory_space<vmem>>, vector<1x8x16xbf16>,
    %c3 = arith.constant 3 : index
    %c0_64 = arith.constant 0 : index
    %c0_65 = arith.constant 0 : index
    %119 = vector.load %arg9[%c3, %c0_64, %c0_65] : memref<8x8x128xf32, #tpu.memory_space<vmem>>, vector<1x8x128xf32>
    %120 = vector.shape_cast %119 : vector<1x8x128xf32> to vector<8x128xf32>
    %c4 = arith.constant 4 : index
    %c0_66 = arith.constant 0 : index
    %c0_67 = arith.constant 0 : index
    %121 = vector.load %arg10[%c4, %c0_66, %c0_67] : memref<8x8x128xf32, #tpu.memory_space<vmem>>, vector<1x8x128xf32>
    %122 = vector.shape_cast %121 : vector<1x8x128xf32> to vector<8x128xf32>
    %123 = arith.addf %120, %122 : vector<8x128xf32>
    %cst_68 = arith.constant dense<0.000000e+00> : vector<8x128xf32>
    %124 = tpu.matmul %110, %20, %cst_68 {dimension_numbers = #tpu.dot_dimension_numbers<[1], [0], [0], [1], [0, 0, 1, 1], [], []>} : vector<8x32xbf16>, vector<32x128xbf16>, vector<8x128xf32> -> vector<8x128xf32>
    %125 = arith.addf %123, %124 : vector<8x128xf32>
    %126 = vector.extract_strided_slice %125 {offsets = [0, 0], sizes = [8, 96], strides = [1, 1]} : vector<8x128xf32> to vector<8x96xf32>
    %127 = arith.negf %126 : vector<8x96xf32>
    %128 = math.exp %127 : vector<8x96xf32>
    %cst_69 = arith.constant 1.000000e+00 : f32
    %129 = vector.broadcast %cst_69 : f32 to vector<8x96xf32>
    %130 = arith.addf %129, %128 : vector<8x96xf32>
    %131 = arith.divf %129, %130 : vector<8x96xf32>
    %132 = vector.extract_strided_slice %125 {offsets = [0, 96], sizes = [8, 32], strides = [1, 1]} : vector<8x128xf32> to vector<8x32xf32>
    %133 = math.tanh %132 : vector<8x32xf32>
    %134 = vector.extract_strided_slice %131 {offsets = [0, 0], sizes = [8, 32], strides = [1, 1]} : vector<8x96xf32> to vector<8x32xf32>
    %135 = vector.extract_strided_slice %131 {offsets = [0, 32], sizes = [8, 32], strides = [1, 1]} : vector<8x96xf32> to vector<8x32xf32>
    %136 = vector.extract_strided_slice %131 {offsets = [0, 64], sizes = [8, 32], strides = [1, 1]} : vector<8x96xf32> to vector<8x32xf32>
    %137 = arith.mulf %135, %107 : vector<8x32xf32>
    %138 = arith.mulf %134, %133 : vector<8x32xf32>
    %139 = arith.addf %137, %138 : vector<8x32xf32>
    %140 = math.tanh %139 : vector<8x32xf32>
    %141 = arith.mulf %136, %140 : vector<8x32xf32>
    %142 = arith.truncf %141 : vector<8x32xf32> to vector<8x32xbf16>
    %143 = vector.extract_strided_slice %142 {offsets = [0, 0], sizes = [8, 16], strides = [1, 1]} : vector<8x32xbf16> to vector<8x16xbf16>
    %c3_70 = arith.constant 3 : index
    %c0_71 = arith.constant 0 : index
    %c0_72 = arith.constant 0 : index
    %144 = vector.load %arg7[%c3_70, %c0_71, %c0_72] : memref<8x8x16xbf16, #tpu.memory_space<vmem>>, vector<1x8x16xbf16>
    %145 = vector.shape_cast %144 : vector<1x8x16xbf16> to vector<8x16xbf16>
    %146 = vector.shape_cast %143 : vector<8x16xbf16> to vector<1x8x16xbf16>
    tpu.vector_store %arg7[%c3_70, %c0_71, %c0_72], %146 {strides = array<i32>} : memref<8x8x16xbf16, #tpu.memory_space<vmem>>, vector<1x8x16xbf16>,
    %147 = vector.extract_strided_slice %142 {offsets = [0, 16], sizes = [8, 16], strides = [1, 1]} : vector<8x32xbf16> to vector<8x16xbf16>
    %c4_73 = arith.constant 4 : index
    %c0_74 = arith.constant 0 : index
    %c0_75 = arith.constant 0 : index
    %148 = vector.load %arg8[%c4_73, %c0_74, %c0_75] : memref<8x8x16xbf16, #tpu.memory_space<vmem>>, vector<1x8x16xbf16>
    %149 = vector.shape_cast %148 : vector<1x8x16xbf16> to vector<8x16xbf16>
    %150 = vector.shape_cast %147 : vector<8x16xbf16> to vector<1x8x16xbf16>
    tpu.vector_store %arg8[%c4_73, %c0_74, %c0_75], %150 {strides = array<i32>} : memref<8x8x16xbf16, #tpu.memory_space<vmem>>, vector<1x8x16xbf16>,
    %c4_76 = arith.constant 4 : index
    %c0_77 = arith.constant 0 : index
    %c0_78 = arith.constant 0 : index
    %151 = vector.load %arg9[%c4_76, %c0_77, %c0_78] : memref<8x8x128xf32, #tpu.memory_space<vmem>>, vector<1x8x128xf32>
    %152 = vector.shape_cast %151 : vector<1x8x128xf32> to vector<8x128xf32>
    %c3_79 = arith.constant 3 : index
    %c0_80 = arith.constant 0 : index
    %c0_81 = arith.constant 0 : index
    %153 = vector.load %arg10[%c3_79, %c0_80, %c0_81] : memref<8x8x128xf32, #tpu.memory_space<vmem>>, vector<1x8x128xf32>
    %154 = vector.shape_cast %153 : vector<1x8x128xf32> to vector<8x128xf32>
    %155 = arith.addf %152, %154 : vector<8x128xf32>
    %cst_82 = arith.constant dense<0.000000e+00> : vector<8x128xf32>
    %156 = tpu.matmul %142, %20, %cst_82 {dimension_numbers = #tpu.dot_dimension_numbers<[1], [0], [0], [1], [0, 0, 1, 1], [], []>} : vector<8x32xbf16>, vector<32x128xbf16>, vector<8x128xf32> -> vector<8x128xf32>
    %157 = arith.addf %155, %156 : vector<8x128xf32>
    %158 = vector.extract_strided_slice %157 {offsets = [0, 0], sizes = [8, 96], strides = [1, 1]} : vector<8x128xf32> to vector<8x96xf32>
    %159 = arith.negf %158 : vector<8x96xf32>
    %160 = math.exp %159 : vector<8x96xf32>
    %cst_83 = arith.constant 1.000000e+00 : f32
    %161 = vector.broadcast %cst_83 : f32 to vector<8x96xf32>
    %162 = arith.addf %161, %160 : vector<8x96xf32>
    %163 = arith.divf %161, %162 : vector<8x96xf32>
    %164 = vector.extract_strided_slice %157 {offsets = [0, 96], sizes = [8, 32], strides = [1, 1]} : vector<8x128xf32> to vector<8x32xf32>
    %165 = math.tanh %164 : vector<8x32xf32>
    %166 = vector.extract_strided_slice %163 {offsets = [0, 0], sizes = [8, 32], strides = [1, 1]} : vector<8x96xf32> to vector<8x32xf32>
    %167 = vector.extract_strided_slice %163 {offsets = [0, 32], sizes = [8, 32], strides = [1, 1]} : vector<8x96xf32> to vector<8x32xf32>
    %168 = vector.extract_strided_slice %163 {offsets = [0, 64], sizes = [8, 32], strides = [1, 1]} : vector<8x96xf32> to vector<8x32xf32>
    %169 = arith.mulf %167, %139 : vector<8x32xf32>
    %170 = arith.mulf %166, %165 : vector<8x32xf32>
    %171 = arith.addf %169, %170 : vector<8x32xf32>
    %172 = math.tanh %171 : vector<8x32xf32>
    %173 = arith.mulf %168, %172 : vector<8x32xf32>
    %174 = arith.truncf %173 : vector<8x32xf32> to vector<8x32xbf16>
    %175 = vector.extract_strided_slice %174 {offsets = [0, 0], sizes = [8, 16], strides = [1, 1]} : vector<8x32xbf16> to vector<8x16xbf16>
    %c4_84 = arith.constant 4 : index
    %c0_85 = arith.constant 0 : index
    %c0_86 = arith.constant 0 : index
    %176 = vector.load %arg7[%c4_84, %c0_85, %c0_86] : memref<8x8x16xbf16, #tpu.memory_space<vmem>>, vector<1x8x16xbf16>
    %177 = vector.shape_cast %176 : vector<1x8x16xbf16> to vector<8x16xbf16>
    %178 = vector.shape_cast %175 : vector<8x16xbf16> to vector<1x8x16xbf16>
    tpu.vector_store %arg7[%c4_84, %c0_85, %c0_86], %178 {strides = array<i32>} : memref<8x8x16xbf16, #tpu.memory_space<vmem>>, vector<1x8x16xbf16>,
    %179 = vector.extract_strided_slice %174 {offsets = [0, 16], sizes = [8, 16], strides = [1, 1]} : vector<8x32xbf16> to vector<8x16xbf16>
    %c3_87 = arith.constant 3 : index
    %c0_88 = arith.constant 0 : index
    %c0_89 = arith.constant 0 : index
    %180 = vector.load %arg8[%c3_87, %c0_88, %c0_89] : memref<8x8x16xbf16, #tpu.memory_space<vmem>>, vector<1x8x16xbf16>
    %181 = vector.shape_cast %180 : vector<1x8x16xbf16> to vector<8x16xbf16>
    %182 = vector.shape_cast %179 : vector<8x16xbf16> to vector<1x8x16xbf16>
    tpu.vector_store %arg8[%c3_87, %c0_88, %c0_89], %182 {strides = array<i32>} : memref<8x8x16xbf16, #tpu.memory_space<vmem>>, vector<1x8x16xbf16>,
    %c5_90 = arith.constant 5 : index
    %c0_91 = arith.constant 0 : index
    %c0_92 = arith.constant 0 : index
    %183 = vector.load %arg9[%c5_90, %c0_91, %c0_92] : memref<8x8x128xf32, #tpu.memory_space<vmem>>, vector<1x8x128xf32>
    %184 = vector.shape_cast %183 : vector<1x8x128xf32> to vector<8x128xf32>
    %c2_93 = arith.constant 2 : index
    %c0_94 = arith.constant 0 : index
    %c0_95 = arith.constant 0 : index
    %185 = vector.load %arg10[%c2_93, %c0_94, %c0_95] : memref<8x8x128xf32, #tpu.memory_space<vmem>>, vector<1x8x128xf32>
    %186 = vector.shape_cast %185 : vector<1x8x128xf32> to vector<8x128xf32>
    %187 = arith.addf %184, %186 : vector<8x128xf32>
    %cst_96 = arith.constant dense<0.000000e+00> : vector<8x128xf32>
    %188 = tpu.matmul %174, %20, %cst_96 {dimension_numbers = #tpu.dot_dimension_numbers<[1], [0], [0], [1], [0, 0, 1, 1], [], []>} : vector<8x32xbf16>, vector<32x128xbf16>, vector<8x128xf32> -> vector<8x128xf32>
    %189 = arith.addf %187, %188 : vector<8x128xf32>
    %190 = vector.extract_strided_slice %189 {offsets = [0, 0], sizes = [8, 96], strides = [1, 1]} : vector<8x128xf32> to vector<8x96xf32>
    %191 = arith.negf %190 : vector<8x96xf32>
    %192 = math.exp %191 : vector<8x96xf32>
    %cst_97 = arith.constant 1.000000e+00 : f32
    %193 = vector.broadcast %cst_97 : f32 to vector<8x96xf32>
    %194 = arith.addf %193, %192 : vector<8x96xf32>
    %195 = arith.divf %193, %194 : vector<8x96xf32>
    %196 = vector.extract_strided_slice %189 {offsets = [0, 96], sizes = [8, 32], strides = [1, 1]} : vector<8x128xf32> to vector<8x32xf32>
    %197 = math.tanh %196 : vector<8x32xf32>
    %198 = vector.extract_strided_slice %195 {offsets = [0, 0], sizes = [8, 32], strides = [1, 1]} : vector<8x96xf32> to vector<8x32xf32>
    %199 = vector.extract_strided_slice %195 {offsets = [0, 32], sizes = [8, 32], strides = [1, 1]} : vector<8x96xf32> to vector<8x32xf32>
    %200 = vector.extract_strided_slice %195 {offsets = [0, 64], sizes = [8, 32], strides = [1, 1]} : vector<8x96xf32> to vector<8x32xf32>
    %201 = arith.mulf %199, %171 : vector<8x32xf32>
    %202 = arith.mulf %198, %197 : vector<8x32xf32>
    %203 = arith.addf %201, %202 : vector<8x32xf32>
    %204 = math.tanh %203 : vector<8x32xf32>
    %205 = arith.mulf %200, %204 : vector<8x32xf32>
    %206 = arith.truncf %205 : vector<8x32xf32> to vector<8x32xbf16>
    %207 = vector.extract_strided_slice %206 {offsets = [0, 0], sizes = [8, 16], strides = [1, 1]} : vector<8x32xbf16> to vector<8x16xbf16>
    %c5_98 = arith.constant 5 : index
    %c0_99 = arith.constant 0 : index
    %c0_100 = arith.constant 0 : index
    %208 = vector.load %arg7[%c5_98, %c0_99, %c0_100] : memref<8x8x16xbf16, #tpu.memory_space<vmem>>, vector<1x8x16xbf16>
    %209 = vector.shape_cast %208 : vector<1x8x16xbf16> to vector<8x16xbf16>
    %210 = vector.shape_cast %207 : vector<8x16xbf16> to vector<1x8x16xbf16>
    tpu.vector_store %arg7[%c5_98, %c0_99, %c0_100], %210 {strides = array<i32>} : memref<8x8x16xbf16, #tpu.memory_space<vmem>>, vector<1x8x16xbf16>,
    %211 = vector.extract_strided_slice %206 {offsets = [0, 16], sizes = [8, 16], strides = [1, 1]} : vector<8x32xbf16> to vector<8x16xbf16>
    %c2_101 = arith.constant 2 : index
    %c0_102 = arith.constant 0 : index
    %c0_103 = arith.constant 0 : index
    %212 = vector.load %arg8[%c2_101, %c0_102, %c0_103] : memref<8x8x16xbf16, #tpu.memory_space<vmem>>, vector<1x8x16xbf16>
    %213 = vector.shape_cast %212 : vector<1x8x16xbf16> to vector<8x16xbf16>
    %214 = vector.shape_cast %211 : vector<8x16xbf16> to vector<1x8x16xbf16>
    tpu.vector_store %arg8[%c2_101, %c0_102, %c0_103], %214 {strides = array<i32>} : memref<8x8x16xbf16, #tpu.memory_space<vmem>>, vector<1x8x16xbf16>,
    %c6_104 = arith.constant 6 : index
    %c0_105 = arith.constant 0 : index
    %c0_106 = arith.constant 0 : index
    %215 = vector.load %arg9[%c6_104, %c0_105, %c0_106] : memref<8x8x128xf32, #tpu.memory_space<vmem>>, vector<1x8x128xf32>
    %216 = vector.shape_cast %215 : vector<1x8x128xf32> to vector<8x128xf32>
    %c1_107 = arith.constant 1 : index
    %c0_108 = arith.constant 0 : index
    %c0_109 = arith.constant 0 : index
    %217 = vector.load %arg10[%c1_107, %c0_108, %c0_109] : memref<8x8x128xf32, #tpu.memory_space<vmem>>, vector<1x8x128xf32>
    %218 = vector.shape_cast %217 : vector<1x8x128xf32> to vector<8x128xf32>
    %219 = arith.addf %216, %218 : vector<8x128xf32>
    %cst_110 = arith.constant dense<0.000000e+00> : vector<8x128xf32>
    %220 = tpu.matmul %206, %20, %cst_110 {dimension_numbers = #tpu.dot_dimension_numbers<[1], [0], [0], [1], [0, 0, 1, 1], [], []>} : vector<8x32xbf16>, vector<32x128xbf16>, vector<8x128xf32> -> vector<8x128xf32>
    %221 = arith.addf %219, %220 : vector<8x128xf32>
    %222 = vector.extract_strided_slice %221 {offsets = [0, 0], sizes = [8, 96], strides = [1, 1]} : vector<8x128xf32> to vector<8x96xf32>
    %223 = arith.negf %222 : vector<8x96xf32>
    %224 = math.exp %223 : vector<8x96xf32>
    %cst_111 = arith.constant 1.000000e+00 : f32
    %225 = vector.broadcast %cst_111 : f32 to vector<8x96xf32>
    %226 = arith.addf %225, %224 : vector<8x96xf32>
    %227 = arith.divf %225, %226 : vector<8x96xf32>
    %228 = vector.extract_strided_slice %221 {offsets = [0, 96], sizes = [8, 32], strides = [1, 1]} : vector<8x128xf32> to vector<8x32xf32>
    %229 = math.tanh %228 : vector<8x32xf32>
    %230 = vector.extract_strided_slice %227 {offsets = [0, 0], sizes = [8, 32], strides = [1, 1]} : vector<8x96xf32> to vector<8x32xf32>
    %231 = vector.extract_strided_slice %227 {offsets = [0, 32], sizes = [8, 32], strides = [1, 1]} : vector<8x96xf32> to vector<8x32xf32>
    %232 = vector.extract_strided_slice %227 {offsets = [0, 64], sizes = [8, 32], strides = [1, 1]} : vector<8x96xf32> to vector<8x32xf32>
    %233 = arith.mulf %231, %203 : vector<8x32xf32>
    %234 = arith.mulf %230, %229 : vector<8x32xf32>
    %235 = arith.addf %233, %234 : vector<8x32xf32>
    %236 = math.tanh %235 : vector<8x32xf32>
    %237 = arith.mulf %232, %236 : vector<8x32xf32>
    %238 = arith.truncf %237 : vector<8x32xf32> to vector<8x32xbf16>
    %239 = vector.extract_strided_slice %238 {offsets = [0, 0], sizes = [8, 16], strides = [1, 1]} : vector<8x32xbf16> to vector<8x16xbf16>
    %c6_112 = arith.constant 6 : index
    %c0_113 = arith.constant 0 : index
    %c0_114 = arith.constant 0 : index
    %240 = vector.load %arg7[%c6_112, %c0_113, %c0_114] : memref<8x8x16xbf16, #tpu.memory_space<vmem>>, vector<1x8x16xbf16>
    %241 = vector.shape_cast %240 : vector<1x8x16xbf16> to vector<8x16xbf16>
    %242 = vector.shape_cast %239 : vector<8x16xbf16> to vector<1x8x16xbf16>
    tpu.vector_store %arg7[%c6_112, %c0_113, %c0_114], %242 {strides = array<i32>} : memref<8x8x16xbf16, #tpu.memory_space<vmem>>, vector<1x8x16xbf16>,
    %243 = vector.extract_strided_slice %238 {offsets = [0, 16], sizes = [8, 16], strides = [1, 1]} : vector<8x32xbf16> to vector<8x16xbf16>
    %c1_115 = arith.constant 1 : index
    %c0_116 = arith.constant 0 : index
    %c0_117 = arith.constant 0 : index
    %244 = vector.load %arg8[%c1_115, %c0_116, %c0_117] : memref<8x8x16xbf16, #tpu.memory_space<vmem>>, vector<1x8x16xbf16>
    %245 = vector.shape_cast %244 : vector<1x8x16xbf16> to vector<8x16xbf16>
    %246 = vector.shape_cast %243 : vector<8x16xbf16> to vector<1x8x16xbf16>
    tpu.vector_store %arg8[%c1_115, %c0_116, %c0_117], %246 {strides = array<i32>} : memref<8x8x16xbf16, #tpu.memory_space<vmem>>, vector<1x8x16xbf16>,
    %c7_118 = arith.constant 7 : index
    %c0_119 = arith.constant 0 : index
    %c0_120 = arith.constant 0 : index
    %247 = vector.load %arg9[%c7_118, %c0_119, %c0_120] : memref<8x8x128xf32, #tpu.memory_space<vmem>>, vector<1x8x128xf32>
    %248 = vector.shape_cast %247 : vector<1x8x128xf32> to vector<8x128xf32>
    %c0_121 = arith.constant 0 : index
    %c0_122 = arith.constant 0 : index
    %c0_123 = arith.constant 0 : index
    %249 = vector.load %arg10[%c0_121, %c0_122, %c0_123] : memref<8x8x128xf32, #tpu.memory_space<vmem>>, vector<1x8x128xf32>
    %250 = vector.shape_cast %249 : vector<1x8x128xf32> to vector<8x128xf32>
    %251 = arith.addf %248, %250 : vector<8x128xf32>
    %cst_124 = arith.constant dense<0.000000e+00> : vector<8x128xf32>
    %252 = tpu.matmul %238, %20, %cst_124 {dimension_numbers = #tpu.dot_dimension_numbers<[1], [0], [0], [1], [0, 0, 1, 1], [], []>} : vector<8x32xbf16>, vector<32x128xbf16>, vector<8x128xf32> -> vector<8x128xf32>
    %253 = arith.addf %251, %252 : vector<8x128xf32>
    %254 = vector.extract_strided_slice %253 {offsets = [0, 0], sizes = [8, 96], strides = [1, 1]} : vector<8x128xf32> to vector<8x96xf32>
    %255 = arith.negf %254 : vector<8x96xf32>
    %256 = math.exp %255 : vector<8x96xf32>
    %cst_125 = arith.constant 1.000000e+00 : f32
    %257 = vector.broadcast %cst_125 : f32 to vector<8x96xf32>
    %258 = arith.addf %257, %256 : vector<8x96xf32>
    %259 = arith.divf %257, %258 : vector<8x96xf32>
    %260 = vector.extract_strided_slice %253 {offsets = [0, 96], sizes = [8, 32], strides = [1, 1]} : vector<8x128xf32> to vector<8x32xf32>
    %261 = math.tanh %260 : vector<8x32xf32>
    %262 = vector.extract_strided_slice %259 {offsets = [0, 0], sizes = [8, 32], strides = [1, 1]} : vector<8x96xf32> to vector<8x32xf32>
    %263 = vector.extract_strided_slice %259 {offsets = [0, 32], sizes = [8, 32], strides = [1, 1]} : vector<8x96xf32> to vector<8x32xf32>
    %264 = vector.extract_strided_slice %259 {offsets = [0, 64], sizes = [8, 32], strides = [1, 1]} : vector<8x96xf32> to vector<8x32xf32>
    %265 = arith.mulf %263, %235 : vector<8x32xf32>
    %266 = arith.mulf %262, %261 : vector<8x32xf32>
    %267 = arith.addf %265, %266 : vector<8x32xf32>
    %268 = math.tanh %267 : vector<8x32xf32>
    %269 = arith.mulf %264, %268 : vector<8x32xf32>
    %270 = arith.truncf %269 : vector<8x32xf32> to vector<8x32xbf16>
    %271 = vector.extract_strided_slice %270 {offsets = [0, 0], sizes = [8, 16], strides = [1, 1]} : vector<8x32xbf16> to vector<8x16xbf16>
    %c7_126 = arith.constant 7 : index
    %c0_127 = arith.constant 0 : index
    %c0_128 = arith.constant 0 : index
    %272 = vector.load %arg7[%c7_126, %c0_127, %c0_128] : memref<8x8x16xbf16, #tpu.memory_space<vmem>>, vector<1x8x16xbf16>
    %273 = vector.shape_cast %272 : vector<1x8x16xbf16> to vector<8x16xbf16>
    %274 = vector.shape_cast %271 : vector<8x16xbf16> to vector<1x8x16xbf16>
    tpu.vector_store %arg7[%c7_126, %c0_127, %c0_128], %274 {strides = array<i32>} : memref<8x8x16xbf16, #tpu.memory_space<vmem>>, vector<1x8x16xbf16>,
    %275 = vector.extract_strided_slice %270 {offsets = [0, 16], sizes = [8, 16], strides = [1, 1]} : vector<8x32xbf16> to vector<8x16xbf16>
    %c0_129 = arith.constant 0 : index
    %c0_130 = arith.constant 0 : index
    %c0_131 = arith.constant 0 : index
    %276 = vector.load %arg8[%c0_129, %c0_130, %c0_131] : memref<8x8x16xbf16, #tpu.memory_space<vmem>>, vector<1x8x16xbf16>
    %277 = vector.shape_cast %276 : vector<1x8x16xbf16> to vector<8x16xbf16>
    %278 = vector.shape_cast %275 : vector<8x16xbf16> to vector<1x8x16xbf16>
    tpu.vector_store %arg8[%c0_129, %c0_130, %c0_131], %278 {strides = array<i32>} : memref<8x8x16xbf16, #tpu.memory_space<vmem>>, vector<1x8x16xbf16>,
    %c0_132 = arith.constant 0 : index
    %c0_133 = arith.constant 0 : index
    %279 = vector.load %arg11[%c0_132, %c0_133] : memref<8x32xbf16, #tpu.memory_space<vmem>>, vector<8x32xbf16>
    tpu.vector_store %arg11[%c0_132, %c0_133], %270 {strides = array<i32>} : memref<8x32xbf16, #tpu.memory_space<vmem>>, vector<8x32xbf16>,
    %c0_134 = arith.constant 0 : index
    %c0_135 = arith.constant 0 : index
    %280 = vector.load %arg12[%c0_134, %c0_135] : memref<8x32xf32, #tpu.memory_space<vmem>>, vector<8x32xf32>
    tpu.vector_store %arg12[%c0_134, %c0_135], %267 {strides = array<i32>} : memref<8x32xf32, #tpu.memory_space<vmem>>, vector<8x32xf32>,
    return
  }
  func.func @transform_0(%arg0: i32) -> (i32, i32, i32) {
    %c0_i32 = arith.constant 0 : i32
    %c0_i32_0 = arith.constant 0 : i32
    %c0_i32_1 = arith.constant 0 : i32
    return %arg0, %c0_i32, %c0_i32_0 : i32, i32, i32
  }
  func.func @transform_1(%arg0: i32) -> (i32, i32, i32) {
    %c0_i32 = arith.constant 0 : i32
    %0 = arith.subi %c0_i32, %arg0 : i32
    %c0_i32_0 = arith.constant 0 : i32
    %c0_i32_1 = arith.constant 0 : i32
    %c0_i32_2 = arith.constant 0 : i32
    return %0, %c0_i32_0, %c0_i32_1 : i32, i32, i32
  }
  func.func @transform_2(%arg0: i32) -> (i32, i32, i32) {
    %c0_i32 = arith.constant 0 : i32
    %c0_i32_0 = arith.constant 0 : i32
    %c0_i32_1 = arith.constant 0 : i32
    %c0_i32_2 = arith.constant 0 : i32
    return %c0_i32, %c0_i32_0, %c0_i32_1 : i32, i32, i32
  }
  func.func @transform_3(%arg0: i32) -> (i32, i32, i32) {
    %c0_i32 = arith.constant 0 : i32
    %c0_i32_0 = arith.constant 0 : i32
    %c0_i32_1 = arith.constant 0 : i32
    %c0_i32_2 = arith.constant 0 : i32
    return %c0_i32, %c0_i32_0, %c0_i32_1 : i32, i32, i32
  }
  func.func @transform_4(%arg0: i32) -> (i32, i32) {
    %c0_i32 = arith.constant 0 : i32
    %c0_i32_0 = arith.constant 0 : i32
    %c0_i32_1 = arith.constant 0 : i32
    return %c0_i32, %c0_i32_0 : i32, i32
  }
  func.func @transform_5(%arg0: i32) -> (i32, i32) {
    %c0_i32 = arith.constant 0 : i32
    %c0_i32_0 = arith.constant 0 : i32
    %c0_i32_1 = arith.constant 0 : i32
    return %c0_i32, %c0_i32_0 : i32, i32
  }
  func.func @transform_6(%arg0: i32) -> (i32, i32, i32) {
    %c0_i32 = arith.constant 0 : i32
    %c0_i32_0 = arith.constant 0 : i32
    %c0_i32_1 = arith.constant 0 : i32
    return %arg0, %c0_i32, %c0_i32_0 : i32, i32, i32
  }
  func.func @transform_7(%arg0: i32) -> (i32, i32, i32) {
    %c0_i32 = arith.constant 0 : i32
    %0 = arith.subi %c0_i32, %arg0 : i32
    %c0_i32_0 = arith.constant 0 : i32
    %c0_i32_1 = arith.constant 0 : i32
    %c0_i32_2 = arith.constant 0 : i32
    return %0, %c0_i32_0, %c0_i32_1 : i32, i32, i32
  }
}

module attributes {stable_mosaic.version = 11 : i64} {
  func.func @_head_kernel(%arg0: i32, %arg1: memref<8x8x16xbf16, #tpu.memory_space<vmem>>, %arg2: memref<8x8x16xbf16, #tpu.memory_space<vmem>>, %arg3: memref<2x16x128xbf16, #tpu.memory_space<vmem>>, %arg4: memref<1x128xf32, #tpu.memory_space<vmem>>, %arg5: memref<8x8x128xf32, #tpu.memory_space<vmem>>) attributes {dimension_semantics = [#tpu.dimension_semantics<parallel>], iteration_bounds = array<i64: 1>, scalar_prefetch = 0 : i64, scratch_operands = 0 : i64, tpu.core_type = #tpu.core_type<tc>, window_params = [{transform_indices = @transform_0, window_bounds = array<i64: 8, 8, 16>}, {transform_indices = @transform_1, window_bounds = array<i64: 8, 8, 16>}, {pipeline_mode = #tpu.pipeline_mode<synchronous>, transform_indices = @transform_2, window_bounds = array<i64: 2, 16, 128>}, {pipeline_mode = #tpu.pipeline_mode<synchronous>, transform_indices = @transform_3, window_bounds = array<i64: 1, 128>}, {transform_indices = @transform_4, window_bounds = array<i64: 8, 8, 128>}]} {
    %c0 = arith.constant 0 : index
    %c0_0 = arith.constant 0 : index
    %c0_1 = arith.constant 0 : index
    %0 = vector.load %arg1[%c0, %c0_0, %c0_1] : memref<8x8x16xbf16, #tpu.memory_space<vmem>>, vector<8x8x16xbf16>
    %1 = vector.shape_cast %0 : vector<8x8x16xbf16> to vector<64x16xbf16>
    %c0_2 = arith.constant 0 : index
    %c0_3 = arith.constant 0 : index
    %c0_4 = arith.constant 0 : index
    %2 = vector.load %arg3[%c0_2, %c0_3, %c0_4] : memref<2x16x128xbf16, #tpu.memory_space<vmem>>, vector<1x16x128xbf16>
    %3 = vector.shape_cast %2 : vector<1x16x128xbf16> to vector<16x128xbf16>
    %cst = arith.constant dense<0.000000e+00> : vector<64x128xf32>
    %4 = tpu.matmul %1, %3, %cst {dimension_numbers = #tpu.dot_dimension_numbers<[1], [0], [0], [1], [0, 0, 1, 1], [], []>} : vector<64x16xbf16>, vector<16x128xbf16>, vector<64x128xf32> -> vector<64x128xf32>
    %c0_5 = arith.constant 0 : index
    %c0_6 = arith.constant 0 : index
    %c0_7 = arith.constant 0 : index
    %5 = vector.load %arg2[%c0_5, %c0_6, %c0_7] : memref<8x8x16xbf16, #tpu.memory_space<vmem>>, vector<8x8x16xbf16>
    %6 = vector.shape_cast %5 : vector<8x8x16xbf16> to vector<64x16xbf16>
    %c1 = arith.constant 1 : index
    %c0_8 = arith.constant 0 : index
    %c0_9 = arith.constant 0 : index
    %7 = vector.load %arg3[%c1, %c0_8, %c0_9] : memref<2x16x128xbf16, #tpu.memory_space<vmem>>, vector<1x16x128xbf16>
    %8 = vector.shape_cast %7 : vector<1x16x128xbf16> to vector<16x128xbf16>
    %cst_10 = arith.constant dense<0.000000e+00> : vector<64x128xf32>
    %9 = tpu.matmul %6, %8, %cst_10 {dimension_numbers = #tpu.dot_dimension_numbers<[1], [0], [0], [1], [0, 0, 1, 1], [], []>} : vector<64x16xbf16>, vector<16x128xbf16>, vector<64x128xf32> -> vector<64x128xf32>
    %10 = arith.addf %4, %9 : vector<64x128xf32>
    %c0_11 = arith.constant 0 : index
    %c0_12 = arith.constant 0 : index
    %11 = vector.load %arg4[%c0_11, %c0_12] : memref<1x128xf32, #tpu.memory_space<vmem>>, vector<1x128xf32>
    %12 = vector.broadcast %11 : vector<1x128xf32> to vector<64x128xf32>
    %13 = arith.addf %10, %12 : vector<64x128xf32>
    %14 = vector.shape_cast %13 : vector<64x128xf32> to vector<8x8x128xf32>
    %c0_13 = arith.constant 0 : index
    %c0_14 = arith.constant 0 : index
    %c0_15 = arith.constant 0 : index
    %15 = vector.load %arg5[%c0_13, %c0_14, %c0_15] : memref<8x8x128xf32, #tpu.memory_space<vmem>>, vector<8x8x128xf32>
    tpu.vector_store %arg5[%c0_13, %c0_14, %c0_15], %14 {strides = array<i32>} : memref<8x8x128xf32, #tpu.memory_space<vmem>>, vector<8x8x128xf32>,
    return
  }
  func.func @transform_0(%arg0: i32) -> (i32, i32, i32) {
    %c0_i32 = arith.constant 0 : i32
    %c0_i32_0 = arith.constant 0 : i32
    %c0_i32_1 = arith.constant 0 : i32
    return %arg0, %c0_i32, %c0_i32_0 : i32, i32, i32
  }
  func.func @transform_1(%arg0: i32) -> (i32, i32, i32) {
    %c0_i32 = arith.constant 0 : i32
    %c0_i32_0 = arith.constant 0 : i32
    %c0_i32_1 = arith.constant 0 : i32
    return %arg0, %c0_i32, %c0_i32_0 : i32, i32, i32
  }
  func.func @transform_2(%arg0: i32) -> (i32, i32, i32) {
    %c0_i32 = arith.constant 0 : i32
    %c0_i32_0 = arith.constant 0 : i32
    %c0_i32_1 = arith.constant 0 : i32
    %c0_i32_2 = arith.constant 0 : i32
    return %c0_i32, %c0_i32_0, %c0_i32_1 : i32, i32, i32
  }
  func.func @transform_3(%arg0: i32) -> (i32, i32) {
    %c0_i32 = arith.constant 0 : i32
    %c0_i32_0 = arith.constant 0 : i32
    %c0_i32_1 = arith.constant 0 : i32
    return %c0_i32, %c0_i32_0 : i32, i32
  }
  func.func @transform_4(%arg0: i32) -> (i32, i32, i32) {
    %c0_i32 = arith.constant 0 : i32
    %c0_i32_0 = arith.constant 0 : i32
    %c0_i32_1 = arith.constant 0 : i32
    return %arg0, %c0_i32, %c0_i32_0 : i32, i32, i32
  }
}

module attributes {stable_mosaic.version = 11 : i64} {
  func.func @_lstm_fused_kernel(%arg0: i32, %arg1: memref<8x8x16xbf16, #tpu.memory_space<vmem>>, %arg2: memref<8x8x16xbf16, #tpu.memory_space<vmem>>, %arg3: memref<8x8x16xbf16, #tpu.memory_space<vmem>>, %arg4: memref<8x8x16xbf16, #tpu.memory_space<vmem>>, %arg5: memref<2x16x128xbf16, #tpu.memory_space<vmem>>, %arg6: memref<2x16x128xbf16, #tpu.memory_space<vmem>>, %arg7: memref<32x128xbf16, #tpu.memory_space<vmem>>, %arg8: memref<1x128xf32, #tpu.memory_space<vmem>>, %arg9: memref<8x8x16xbf16, #tpu.memory_space<vmem>>, %arg10: memref<8x8x16xbf16, #tpu.memory_space<vmem>>, %arg11: memref<8x8x128xf32, #tpu.memory_space<vmem>>, %arg12: memref<8x8x128xf32, #tpu.memory_space<vmem>>, %arg13: memref<8x32xbf16, #tpu.memory_space<vmem>>, %arg14: memref<8x32xf32, #tpu.memory_space<vmem>>) attributes {dimension_semantics = [#tpu.dimension_semantics<arbitrary>], iteration_bounds = array<i64: 1>, scalar_prefetch = 0 : i64, scratch_operands = 4 : i64, tpu.core_type = #tpu.core_type<tc>, window_params = [{transform_indices = @transform_0, window_bounds = array<i64: 8, 8, 16>}, {transform_indices = @transform_1, window_bounds = array<i64: 8, 8, 16>}, {transform_indices = @transform_2, window_bounds = array<i64: 8, 8, 16>}, {transform_indices = @transform_3, window_bounds = array<i64: 8, 8, 16>}, {pipeline_mode = #tpu.pipeline_mode<synchronous>, transform_indices = @transform_4, window_bounds = array<i64: 2, 16, 128>}, {pipeline_mode = #tpu.pipeline_mode<synchronous>, transform_indices = @transform_5, window_bounds = array<i64: 2, 16, 128>}, {pipeline_mode = #tpu.pipeline_mode<synchronous>, transform_indices = @transform_6, window_bounds = array<i64: 32, 128>}, {pipeline_mode = #tpu.pipeline_mode<synchronous>, transform_indices = @transform_7, window_bounds = array<i64: 1, 128>}, {transform_indices = @transform_8, window_bounds = array<i64: 8, 8, 16>}, {transform_indices = @transform_9, window_bounds = array<i64: 8, 8, 16>}]} {
    %c0_i32 = arith.constant 0 : i32
    %0 = arith.cmpi eq, %arg0, %c0_i32 : i32
    %1 = arith.extui %0 : i1 to i32
    %c0_i32_0 = arith.constant 0 : i32
    %2 = arith.cmpi ne, %1, %c0_i32_0 : i32
    scf.if %2 {
      %cst_150 = arith.constant 0.000000e+00 : bf16
      %293 = vector.broadcast %cst_150 : bf16 to vector<8x32xbf16>
      %c0_151 = arith.constant 0 : index
      %c0_152 = arith.constant 0 : index
      %294 = vector.load %arg13[%c0_151, %c0_152] : memref<8x32xbf16, #tpu.memory_space<vmem>>, vector<8x32xbf16>
      tpu.vector_store %arg13[%c0_151, %c0_152], %293 {strides = array<i32>} : memref<8x32xbf16, #tpu.memory_space<vmem>>, vector<8x32xbf16>,
      %cst_153 = arith.constant 0.000000e+00 : f32
      %295 = vector.broadcast %cst_153 : f32 to vector<8x32xf32>
      %c0_154 = arith.constant 0 : index
      %c0_155 = arith.constant 0 : index
      %296 = vector.load %arg14[%c0_154, %c0_155] : memref<8x32xf32, #tpu.memory_space<vmem>>, vector<8x32xf32>
      tpu.vector_store %arg14[%c0_154, %c0_155], %295 {strides = array<i32>} : memref<8x32xf32, #tpu.memory_space<vmem>>, vector<8x32xf32>,
    } else {
    }
    %c0 = arith.constant 0 : index
    %c0_1 = arith.constant 0 : index
    %c0_2 = arith.constant 0 : index
    %3 = vector.load %arg1[%c0, %c0_1, %c0_2] : memref<8x8x16xbf16, #tpu.memory_space<vmem>>, vector<8x8x16xbf16>
    %4 = vector.shape_cast %3 : vector<8x8x16xbf16> to vector<64x16xbf16>
    %c0_3 = arith.constant 0 : index
    %c0_4 = arith.constant 0 : index
    %c0_5 = arith.constant 0 : index
    %5 = vector.load %arg5[%c0_3, %c0_4, %c0_5] : memref<2x16x128xbf16, #tpu.memory_space<vmem>>, vector<1x16x128xbf16>
    %6 = vector.shape_cast %5 : vector<1x16x128xbf16> to vector<16x128xbf16>
    %cst = arith.constant dense<0.000000e+00> : vector<64x128xf32>
    %7 = tpu.matmul %4, %6, %cst {dimension_numbers = #tpu.dot_dimension_numbers<[1], [0], [0], [1], [0, 0, 1, 1], [], []>} : vector<64x16xbf16>, vector<16x128xbf16>, vector<64x128xf32> -> vector<64x128xf32>
    %c0_6 = arith.constant 0 : index
    %c0_7 = arith.constant 0 : index
    %c0_8 = arith.constant 0 : index
    %8 = vector.load %arg2[%c0_6, %c0_7, %c0_8] : memref<8x8x16xbf16, #tpu.memory_space<vmem>>, vector<8x8x16xbf16>
    %9 = vector.shape_cast %8 : vector<8x8x16xbf16> to vector<64x16xbf16>
    %c1 = arith.constant 1 : index
    %c0_9 = arith.constant 0 : index
    %c0_10 = arith.constant 0 : index
    %10 = vector.load %arg5[%c1, %c0_9, %c0_10] : memref<2x16x128xbf16, #tpu.memory_space<vmem>>, vector<1x16x128xbf16>
    %11 = vector.shape_cast %10 : vector<1x16x128xbf16> to vector<16x128xbf16>
    %cst_11 = arith.constant dense<0.000000e+00> : vector<64x128xf32>
    %12 = tpu.matmul %9, %11, %cst_11 {dimension_numbers = #tpu.dot_dimension_numbers<[1], [0], [0], [1], [0, 0, 1, 1], [], []>} : vector<64x16xbf16>, vector<16x128xbf16>, vector<64x128xf32> -> vector<64x128xf32>
    %13 = arith.addf %7, %12 : vector<64x128xf32>
    %c0_12 = arith.constant 0 : index
    %c0_13 = arith.constant 0 : index
    %14 = vector.load %arg8[%c0_12, %c0_13] : memref<1x128xf32, #tpu.memory_space<vmem>>, vector<1x128xf32>
    %15 = vector.broadcast %14 : vector<1x128xf32> to vector<64x128xf32>
    %16 = arith.addf %13, %15 : vector<64x128xf32>
    %17 = vector.shape_cast %16 : vector<64x128xf32> to vector<8x8x128xf32>
    %c0_14 = arith.constant 0 : index
    %c0_15 = arith.constant 0 : index
    %c0_16 = arith.constant 0 : index
    %18 = vector.load %arg11[%c0_14, %c0_15, %c0_16] : memref<8x8x128xf32, #tpu.memory_space<vmem>>, vector<8x8x128xf32>
    tpu.vector_store %arg11[%c0_14, %c0_15, %c0_16], %17 {strides = array<i32>} : memref<8x8x128xf32, #tpu.memory_space<vmem>>, vector<8x8x128xf32>,
    %c0_17 = arith.constant 0 : index
    %c0_18 = arith.constant 0 : index
    %c0_19 = arith.constant 0 : index
    %19 = vector.load %arg3[%c0_17, %c0_18, %c0_19] : memref<8x8x16xbf16, #tpu.memory_space<vmem>>, vector<8x8x16xbf16>
    %20 = vector.shape_cast %19 : vector<8x8x16xbf16> to vector<64x16xbf16>
    %c0_20 = arith.constant 0 : index
    %c0_21 = arith.constant 0 : index
    %c0_22 = arith.constant 0 : index
    %21 = vector.load %arg6[%c0_20, %c0_21, %c0_22] : memref<2x16x128xbf16, #tpu.memory_space<vmem>>, vector<1x16x128xbf16>
    %22 = vector.shape_cast %21 : vector<1x16x128xbf16> to vector<16x128xbf16>
    %cst_23 = arith.constant dense<0.000000e+00> : vector<64x128xf32>
    %23 = tpu.matmul %20, %22, %cst_23 {dimension_numbers = #tpu.dot_dimension_numbers<[1], [0], [0], [1], [0, 0, 1, 1], [], []>} : vector<64x16xbf16>, vector<16x128xbf16>, vector<64x128xf32> -> vector<64x128xf32>
    %c0_24 = arith.constant 0 : index
    %c0_25 = arith.constant 0 : index
    %c0_26 = arith.constant 0 : index
    %24 = vector.load %arg4[%c0_24, %c0_25, %c0_26] : memref<8x8x16xbf16, #tpu.memory_space<vmem>>, vector<8x8x16xbf16>
    %25 = vector.shape_cast %24 : vector<8x8x16xbf16> to vector<64x16xbf16>
    %c1_27 = arith.constant 1 : index
    %c0_28 = arith.constant 0 : index
    %c0_29 = arith.constant 0 : index
    %26 = vector.load %arg6[%c1_27, %c0_28, %c0_29] : memref<2x16x128xbf16, #tpu.memory_space<vmem>>, vector<1x16x128xbf16>
    %27 = vector.shape_cast %26 : vector<1x16x128xbf16> to vector<16x128xbf16>
    %cst_30 = arith.constant dense<0.000000e+00> : vector<64x128xf32>
    %28 = tpu.matmul %25, %27, %cst_30 {dimension_numbers = #tpu.dot_dimension_numbers<[1], [0], [0], [1], [0, 0, 1, 1], [], []>} : vector<64x16xbf16>, vector<16x128xbf16>, vector<64x128xf32> -> vector<64x128xf32>
    %29 = arith.addf %23, %28 : vector<64x128xf32>
    %30 = vector.shape_cast %29 : vector<64x128xf32> to vector<8x8x128xf32>
    %c0_31 = arith.constant 0 : index
    %c0_32 = arith.constant 0 : index
    %c0_33 = arith.constant 0 : index
    %31 = vector.load %arg12[%c0_31, %c0_32, %c0_33] : memref<8x8x128xf32, #tpu.memory_space<vmem>>, vector<8x8x128xf32>
    tpu.vector_store %arg12[%c0_31, %c0_32, %c0_33], %30 {strides = array<i32>} : memref<8x8x128xf32, #tpu.memory_space<vmem>>, vector<8x8x128xf32>,
    %c0_34 = arith.constant 0 : index
    %c0_35 = arith.constant 0 : index
    %32 = vector.load %arg7[%c0_34, %c0_35] : memref<32x128xbf16, #tpu.memory_space<vmem>>, vector<32x128xbf16>
    %c0_36 = arith.constant 0 : index
    %c0_37 = arith.constant 0 : index
    %33 = vector.load %arg13[%c0_36, %c0_37] : memref<8x32xbf16, #tpu.memory_space<vmem>>, vector<8x32xbf16>
    %c0_38 = arith.constant 0 : index
    %c0_39 = arith.constant 0 : index
    %34 = vector.load %arg14[%c0_38, %c0_39] : memref<8x32xf32, #tpu.memory_space<vmem>>, vector<8x32xf32>
    %c0_40 = arith.constant 0 : index
    %c0_41 = arith.constant 0 : index
    %c0_42 = arith.constant 0 : index
    %35 = vector.load %arg11[%c0_40, %c0_41, %c0_42] : memref<8x8x128xf32, #tpu.memory_space<vmem>>, vector<1x8x128xf32>
    %36 = vector.shape_cast %35 : vector<1x8x128xf32> to vector<8x128xf32>
    %c7 = arith.constant 7 : index
    %c0_43 = arith.constant 0 : index
    %c0_44 = arith.constant 0 : index
    %37 = vector.load %arg12[%c7, %c0_43, %c0_44] : memref<8x8x128xf32, #tpu.memory_space<vmem>>, vector<1x8x128xf32>
    %38 = vector.shape_cast %37 : vector<1x8x128xf32> to vector<8x128xf32>
    %39 = arith.addf %36, %38 : vector<8x128xf32>
    %cst_45 = arith.constant dense<0.000000e+00> : vector<8x128xf32>
    %40 = tpu.matmul %33, %32, %cst_45 {dimension_numbers = #tpu.dot_dimension_numbers<[1], [0], [0], [1], [0, 0, 1, 1], [], []>} : vector<8x32xbf16>, vector<32x128xbf16>, vector<8x128xf32> -> vector<8x128xf32>
    %41 = arith.addf %39, %40 : vector<8x128xf32>
    %42 = vector.extract_strided_slice %41 {offsets = [0, 0], sizes = [8, 96], strides = [1, 1]} : vector<8x128xf32> to vector<8x96xf32>
    %43 = arith.negf %42 : vector<8x96xf32>
    %44 = math.exp %43 : vector<8x96xf32>
    %cst_46 = arith.constant 1.000000e+00 : f32
    %45 = vector.broadcast %cst_46 : f32 to vector<8x96xf32>
    %46 = arith.addf %45, %44 : vector<8x96xf32>
    %47 = arith.divf %45, %46 : vector<8x96xf32>
    %48 = vector.extract_strided_slice %41 {offsets = [0, 96], sizes = [8, 32], strides = [1, 1]} : vector<8x128xf32> to vector<8x32xf32>
    %49 = math.tanh %48 : vector<8x32xf32>
    %50 = vector.extract_strided_slice %47 {offsets = [0, 0], sizes = [8, 32], strides = [1, 1]} : vector<8x96xf32> to vector<8x32xf32>
    %51 = vector.extract_strided_slice %47 {offsets = [0, 32], sizes = [8, 32], strides = [1, 1]} : vector<8x96xf32> to vector<8x32xf32>
    %52 = vector.extract_strided_slice %47 {offsets = [0, 64], sizes = [8, 32], strides = [1, 1]} : vector<8x96xf32> to vector<8x32xf32>
    %53 = arith.mulf %51, %34 : vector<8x32xf32>
    %54 = arith.mulf %50, %49 : vector<8x32xf32>
    %55 = arith.addf %53, %54 : vector<8x32xf32>
    %56 = math.tanh %55 : vector<8x32xf32>
    %57 = arith.mulf %52, %56 : vector<8x32xf32>
    %58 = arith.truncf %57 : vector<8x32xf32> to vector<8x32xbf16>
    %59 = vector.extract_strided_slice %58 {offsets = [0, 0], sizes = [8, 16], strides = [1, 1]} : vector<8x32xbf16> to vector<8x16xbf16>
    %c0_47 = arith.constant 0 : index
    %c0_48 = arith.constant 0 : index
    %c0_49 = arith.constant 0 : index
    %60 = vector.load %arg9[%c0_47, %c0_48, %c0_49] : memref<8x8x16xbf16, #tpu.memory_space<vmem>>, vector<1x8x16xbf16>
    %61 = vector.shape_cast %60 : vector<1x8x16xbf16> to vector<8x16xbf16>
    %62 = vector.shape_cast %59 : vector<8x16xbf16> to vector<1x8x16xbf16>
    tpu.vector_store %arg9[%c0_47, %c0_48, %c0_49], %62 {strides = array<i32>} : memref<8x8x16xbf16, #tpu.memory_space<vmem>>, vector<1x8x16xbf16>,
    %63 = vector.extract_strided_slice %58 {offsets = [0, 16], sizes = [8, 16], strides = [1, 1]} : vector<8x32xbf16> to vector<8x16xbf16>
    %c7_50 = arith.constant 7 : index
    %c0_51 = arith.constant 0 : index
    %c0_52 = arith.constant 0 : index
    %64 = vector.load %arg10[%c7_50, %c0_51, %c0_52] : memref<8x8x16xbf16, #tpu.memory_space<vmem>>, vector<1x8x16xbf16>
    %65 = vector.shape_cast %64 : vector<1x8x16xbf16> to vector<8x16xbf16>
    %66 = vector.shape_cast %63 : vector<8x16xbf16> to vector<1x8x16xbf16>
    tpu.vector_store %arg10[%c7_50, %c0_51, %c0_52], %66 {strides = array<i32>} : memref<8x8x16xbf16, #tpu.memory_space<vmem>>, vector<1x8x16xbf16>,
    %c1_53 = arith.constant 1 : index
    %c0_54 = arith.constant 0 : index
    %c0_55 = arith.constant 0 : index
    %67 = vector.load %arg11[%c1_53, %c0_54, %c0_55] : memref<8x8x128xf32, #tpu.memory_space<vmem>>, vector<1x8x128xf32>
    %68 = vector.shape_cast %67 : vector<1x8x128xf32> to vector<8x128xf32>
    %c6 = arith.constant 6 : index
    %c0_56 = arith.constant 0 : index
    %c0_57 = arith.constant 0 : index
    %69 = vector.load %arg12[%c6, %c0_56, %c0_57] : memref<8x8x128xf32, #tpu.memory_space<vmem>>, vector<1x8x128xf32>
    %70 = vector.shape_cast %69 : vector<1x8x128xf32> to vector<8x128xf32>
    %71 = arith.addf %68, %70 : vector<8x128xf32>
    %cst_58 = arith.constant dense<0.000000e+00> : vector<8x128xf32>
    %72 = tpu.matmul %58, %32, %cst_58 {dimension_numbers = #tpu.dot_dimension_numbers<[1], [0], [0], [1], [0, 0, 1, 1], [], []>} : vector<8x32xbf16>, vector<32x128xbf16>, vector<8x128xf32> -> vector<8x128xf32>
    %73 = arith.addf %71, %72 : vector<8x128xf32>
    %74 = vector.extract_strided_slice %73 {offsets = [0, 0], sizes = [8, 96], strides = [1, 1]} : vector<8x128xf32> to vector<8x96xf32>
    %75 = arith.negf %74 : vector<8x96xf32>
    %76 = math.exp %75 : vector<8x96xf32>
    %cst_59 = arith.constant 1.000000e+00 : f32
    %77 = vector.broadcast %cst_59 : f32 to vector<8x96xf32>
    %78 = arith.addf %77, %76 : vector<8x96xf32>
    %79 = arith.divf %77, %78 : vector<8x96xf32>
    %80 = vector.extract_strided_slice %73 {offsets = [0, 96], sizes = [8, 32], strides = [1, 1]} : vector<8x128xf32> to vector<8x32xf32>
    %81 = math.tanh %80 : vector<8x32xf32>
    %82 = vector.extract_strided_slice %79 {offsets = [0, 0], sizes = [8, 32], strides = [1, 1]} : vector<8x96xf32> to vector<8x32xf32>
    %83 = vector.extract_strided_slice %79 {offsets = [0, 32], sizes = [8, 32], strides = [1, 1]} : vector<8x96xf32> to vector<8x32xf32>
    %84 = vector.extract_strided_slice %79 {offsets = [0, 64], sizes = [8, 32], strides = [1, 1]} : vector<8x96xf32> to vector<8x32xf32>
    %85 = arith.mulf %83, %55 : vector<8x32xf32>
    %86 = arith.mulf %82, %81 : vector<8x32xf32>
    %87 = arith.addf %85, %86 : vector<8x32xf32>
    %88 = math.tanh %87 : vector<8x32xf32>
    %89 = arith.mulf %84, %88 : vector<8x32xf32>
    %90 = arith.truncf %89 : vector<8x32xf32> to vector<8x32xbf16>
    %91 = vector.extract_strided_slice %90 {offsets = [0, 0], sizes = [8, 16], strides = [1, 1]} : vector<8x32xbf16> to vector<8x16xbf16>
    %c1_60 = arith.constant 1 : index
    %c0_61 = arith.constant 0 : index
    %c0_62 = arith.constant 0 : index
    %92 = vector.load %arg9[%c1_60, %c0_61, %c0_62] : memref<8x8x16xbf16, #tpu.memory_space<vmem>>, vector<1x8x16xbf16>
    %93 = vector.shape_cast %92 : vector<1x8x16xbf16> to vector<8x16xbf16>
    %94 = vector.shape_cast %91 : vector<8x16xbf16> to vector<1x8x16xbf16>
    tpu.vector_store %arg9[%c1_60, %c0_61, %c0_62], %94 {strides = array<i32>} : memref<8x8x16xbf16, #tpu.memory_space<vmem>>, vector<1x8x16xbf16>,
    %95 = vector.extract_strided_slice %90 {offsets = [0, 16], sizes = [8, 16], strides = [1, 1]} : vector<8x32xbf16> to vector<8x16xbf16>
    %c6_63 = arith.constant 6 : index
    %c0_64 = arith.constant 0 : index
    %c0_65 = arith.constant 0 : index
    %96 = vector.load %arg10[%c6_63, %c0_64, %c0_65] : memref<8x8x16xbf16, #tpu.memory_space<vmem>>, vector<1x8x16xbf16>
    %97 = vector.shape_cast %96 : vector<1x8x16xbf16> to vector<8x16xbf16>
    %98 = vector.shape_cast %95 : vector<8x16xbf16> to vector<1x8x16xbf16>
    tpu.vector_store %arg10[%c6_63, %c0_64, %c0_65], %98 {strides = array<i32>} : memref<8x8x16xbf16, #tpu.memory_space<vmem>>, vector<1x8x16xbf16>,
    %c2 = arith.constant 2 : index
    %c0_66 = arith.constant 0 : index
    %c0_67 = arith.constant 0 : index
    %99 = vector.load %arg11[%c2, %c0_66, %c0_67] : memref<8x8x128xf32, #tpu.memory_space<vmem>>, vector<1x8x128xf32>
    %100 = vector.shape_cast %99 : vector<1x8x128xf32> to vector<8x128xf32>
    %c5 = arith.constant 5 : index
    %c0_68 = arith.constant 0 : index
    %c0_69 = arith.constant 0 : index
    %101 = vector.load %arg12[%c5, %c0_68, %c0_69] : memref<8x8x128xf32, #tpu.memory_space<vmem>>, vector<1x8x128xf32>
    %102 = vector.shape_cast %101 : vector<1x8x128xf32> to vector<8x128xf32>
    %103 = arith.addf %100, %102 : vector<8x128xf32>
    %cst_70 = arith.constant dense<0.000000e+00> : vector<8x128xf32>
    %104 = tpu.matmul %90, %32, %cst_70 {dimension_numbers = #tpu.dot_dimension_numbers<[1], [0], [0], [1], [0, 0, 1, 1], [], []>} : vector<8x32xbf16>, vector<32x128xbf16>, vector<8x128xf32> -> vector<8x128xf32>
    %105 = arith.addf %103, %104 : vector<8x128xf32>
    %106 = vector.extract_strided_slice %105 {offsets = [0, 0], sizes = [8, 96], strides = [1, 1]} : vector<8x128xf32> to vector<8x96xf32>
    %107 = arith.negf %106 : vector<8x96xf32>
    %108 = math.exp %107 : vector<8x96xf32>
    %cst_71 = arith.constant 1.000000e+00 : f32
    %109 = vector.broadcast %cst_71 : f32 to vector<8x96xf32>
    %110 = arith.addf %109, %108 : vector<8x96xf32>
    %111 = arith.divf %109, %110 : vector<8x96xf32>
    %112 = vector.extract_strided_slice %105 {offsets = [0, 96], sizes = [8, 32], strides = [1, 1]} : vector<8x128xf32> to vector<8x32xf32>
    %113 = math.tanh %112 : vector<8x32xf32>
    %114 = vector.extract_strided_slice %111 {offsets = [0, 0], sizes = [8, 32], strides = [1, 1]} : vector<8x96xf32> to vector<8x32xf32>
    %115 = vector.extract_strided_slice %111 {offsets = [0, 32], sizes = [8, 32], strides = [1, 1]} : vector<8x96xf32> to vector<8x32xf32>
    %116 = vector.extract_strided_slice %111 {offsets = [0, 64], sizes = [8, 32], strides = [1, 1]} : vector<8x96xf32> to vector<8x32xf32>
    %117 = arith.mulf %115, %87 : vector<8x32xf32>
    %118 = arith.mulf %114, %113 : vector<8x32xf32>
    %119 = arith.addf %117, %118 : vector<8x32xf32>
    %120 = math.tanh %119 : vector<8x32xf32>
    %121 = arith.mulf %116, %120 : vector<8x32xf32>
    %122 = arith.truncf %121 : vector<8x32xf32> to vector<8x32xbf16>
    %123 = vector.extract_strided_slice %122 {offsets = [0, 0], sizes = [8, 16], strides = [1, 1]} : vector<8x32xbf16> to vector<8x16xbf16>
    %c2_72 = arith.constant 2 : index
    %c0_73 = arith.constant 0 : index
    %c0_74 = arith.constant 0 : index
    %124 = vector.load %arg9[%c2_72, %c0_73, %c0_74] : memref<8x8x16xbf16, #tpu.memory_space<vmem>>, vector<1x8x16xbf16>
    %125 = vector.shape_cast %124 : vector<1x8x16xbf16> to vector<8x16xbf16>
    %126 = vector.shape_cast %123 : vector<8x16xbf16> to vector<1x8x16xbf16>
    tpu.vector_store %arg9[%c2_72, %c0_73, %c0_74], %126 {strides = array<i32>} : memref<8x8x16xbf16, #tpu.memory_space<vmem>>, vector<1x8x16xbf16>,
    %127 = vector.extract_strided_slice %122 {offsets = [0, 16], sizes = [8, 16], strides = [1, 1]} : vector<8x32xbf16> to vector<8x16xbf16>
    %c5_75 = arith.constant 5 : index
    %c0_76 = arith.constant 0 : index
    %c0_77 = arith.constant 0 : index
    %128 = vector.load %arg10[%c5_75, %c0_76, %c0_77] : memref<8x8x16xbf16, #tpu.memory_space<vmem>>, vector<1x8x16xbf16>
    %129 = vector.shape_cast %128 : vector<1x8x16xbf16> to vector<8x16xbf16>
    %130 = vector.shape_cast %127 : vector<8x16xbf16> to vector<1x8x16xbf16>
    tpu.vector_store %arg10[%c5_75, %c0_76, %c0_77], %130 {strides = array<i32>} : memref<8x8x16xbf16, #tpu.memory_space<vmem>>, vector<1x8x16xbf16>,
    %c3 = arith.constant 3 : index
    %c0_78 = arith.constant 0 : index
    %c0_79 = arith.constant 0 : index
    %131 = vector.load %arg11[%c3, %c0_78, %c0_79] : memref<8x8x128xf32, #tpu.memory_space<vmem>>, vector<1x8x128xf32>
    %132 = vector.shape_cast %131 : vector<1x8x128xf32> to vector<8x128xf32>
    %c4 = arith.constant 4 : index
    %c0_80 = arith.constant 0 : index
    %c0_81 = arith.constant 0 : index
    %133 = vector.load %arg12[%c4, %c0_80, %c0_81] : memref<8x8x128xf32, #tpu.memory_space<vmem>>, vector<1x8x128xf32>
    %134 = vector.shape_cast %133 : vector<1x8x128xf32> to vector<8x128xf32>
    %135 = arith.addf %132, %134 : vector<8x128xf32>
    %cst_82 = arith.constant dense<0.000000e+00> : vector<8x128xf32>
    %136 = tpu.matmul %122, %32, %cst_82 {dimension_numbers = #tpu.dot_dimension_numbers<[1], [0], [0], [1], [0, 0, 1, 1], [], []>} : vector<8x32xbf16>, vector<32x128xbf16>, vector<8x128xf32> -> vector<8x128xf32>
    %137 = arith.addf %135, %136 : vector<8x128xf32>
    %138 = vector.extract_strided_slice %137 {offsets = [0, 0], sizes = [8, 96], strides = [1, 1]} : vector<8x128xf32> to vector<8x96xf32>
    %139 = arith.negf %138 : vector<8x96xf32>
    %140 = math.exp %139 : vector<8x96xf32>
    %cst_83 = arith.constant 1.000000e+00 : f32
    %141 = vector.broadcast %cst_83 : f32 to vector<8x96xf32>
    %142 = arith.addf %141, %140 : vector<8x96xf32>
    %143 = arith.divf %141, %142 : vector<8x96xf32>
    %144 = vector.extract_strided_slice %137 {offsets = [0, 96], sizes = [8, 32], strides = [1, 1]} : vector<8x128xf32> to vector<8x32xf32>
    %145 = math.tanh %144 : vector<8x32xf32>
    %146 = vector.extract_strided_slice %143 {offsets = [0, 0], sizes = [8, 32], strides = [1, 1]} : vector<8x96xf32> to vector<8x32xf32>
    %147 = vector.extract_strided_slice %143 {offsets = [0, 32], sizes = [8, 32], strides = [1, 1]} : vector<8x96xf32> to vector<8x32xf32>
    %148 = vector.extract_strided_slice %143 {offsets = [0, 64], sizes = [8, 32], strides = [1, 1]} : vector<8x96xf32> to vector<8x32xf32>
    %149 = arith.mulf %147, %119 : vector<8x32xf32>
    %150 = arith.mulf %146, %145 : vector<8x32xf32>
    %151 = arith.addf %149, %150 : vector<8x32xf32>
    %152 = math.tanh %151 : vector<8x32xf32>
    %153 = arith.mulf %148, %152 : vector<8x32xf32>
    %154 = arith.truncf %153 : vector<8x32xf32> to vector<8x32xbf16>
    %155 = vector.extract_strided_slice %154 {offsets = [0, 0], sizes = [8, 16], strides = [1, 1]} : vector<8x32xbf16> to vector<8x16xbf16>
    %c3_84 = arith.constant 3 : index
    %c0_85 = arith.constant 0 : index
    %c0_86 = arith.constant 0 : index
    %156 = vector.load %arg9[%c3_84, %c0_85, %c0_86] : memref<8x8x16xbf16, #tpu.memory_space<vmem>>, vector<1x8x16xbf16>
    %157 = vector.shape_cast %156 : vector<1x8x16xbf16> to vector<8x16xbf16>
    %158 = vector.shape_cast %155 : vector<8x16xbf16> to vector<1x8x16xbf16>
    tpu.vector_store %arg9[%c3_84, %c0_85, %c0_86], %158 {strides = array<i32>} : memref<8x8x16xbf16, #tpu.memory_space<vmem>>, vector<1x8x16xbf16>,
    %159 = vector.extract_strided_slice %154 {offsets = [0, 16], sizes = [8, 16], strides = [1, 1]} : vector<8x32xbf16> to vector<8x16xbf16>
    %c4_87 = arith.constant 4 : index
    %c0_88 = arith.constant 0 : index
    %c0_89 = arith.constant 0 : index
    %160 = vector.load %arg10[%c4_87, %c0_88, %c0_89] : memref<8x8x16xbf16, #tpu.memory_space<vmem>>, vector<1x8x16xbf16>
    %161 = vector.shape_cast %160 : vector<1x8x16xbf16> to vector<8x16xbf16>
    %162 = vector.shape_cast %159 : vector<8x16xbf16> to vector<1x8x16xbf16>
    tpu.vector_store %arg10[%c4_87, %c0_88, %c0_89], %162 {strides = array<i32>} : memref<8x8x16xbf16, #tpu.memory_space<vmem>>, vector<1x8x16xbf16>,
    %c4_90 = arith.constant 4 : index
    %c0_91 = arith.constant 0 : index
    %c0_92 = arith.constant 0 : index
    %163 = vector.load %arg11[%c4_90, %c0_91, %c0_92] : memref<8x8x128xf32, #tpu.memory_space<vmem>>, vector<1x8x128xf32>
    %164 = vector.shape_cast %163 : vector<1x8x128xf32> to vector<8x128xf32>
    %c3_93 = arith.constant 3 : index
    %c0_94 = arith.constant 0 : index
    %c0_95 = arith.constant 0 : index
    %165 = vector.load %arg12[%c3_93, %c0_94, %c0_95] : memref<8x8x128xf32, #tpu.memory_space<vmem>>, vector<1x8x128xf32>
    %166 = vector.shape_cast %165 : vector<1x8x128xf32> to vector<8x128xf32>
    %167 = arith.addf %164, %166 : vector<8x128xf32>
    %cst_96 = arith.constant dense<0.000000e+00> : vector<8x128xf32>
    %168 = tpu.matmul %154, %32, %cst_96 {dimension_numbers = #tpu.dot_dimension_numbers<[1], [0], [0], [1], [0, 0, 1, 1], [], []>} : vector<8x32xbf16>, vector<32x128xbf16>, vector<8x128xf32> -> vector<8x128xf32>
    %169 = arith.addf %167, %168 : vector<8x128xf32>
    %170 = vector.extract_strided_slice %169 {offsets = [0, 0], sizes = [8, 96], strides = [1, 1]} : vector<8x128xf32> to vector<8x96xf32>
    %171 = arith.negf %170 : vector<8x96xf32>
    %172 = math.exp %171 : vector<8x96xf32>
    %cst_97 = arith.constant 1.000000e+00 : f32
    %173 = vector.broadcast %cst_97 : f32 to vector<8x96xf32>
    %174 = arith.addf %173, %172 : vector<8x96xf32>
    %175 = arith.divf %173, %174 : vector<8x96xf32>
    %176 = vector.extract_strided_slice %169 {offsets = [0, 96], sizes = [8, 32], strides = [1, 1]} : vector<8x128xf32> to vector<8x32xf32>
    %177 = math.tanh %176 : vector<8x32xf32>
    %178 = vector.extract_strided_slice %175 {offsets = [0, 0], sizes = [8, 32], strides = [1, 1]} : vector<8x96xf32> to vector<8x32xf32>
    %179 = vector.extract_strided_slice %175 {offsets = [0, 32], sizes = [8, 32], strides = [1, 1]} : vector<8x96xf32> to vector<8x32xf32>
    %180 = vector.extract_strided_slice %175 {offsets = [0, 64], sizes = [8, 32], strides = [1, 1]} : vector<8x96xf32> to vector<8x32xf32>
    %181 = arith.mulf %179, %151 : vector<8x32xf32>
    %182 = arith.mulf %178, %177 : vector<8x32xf32>
    %183 = arith.addf %181, %182 : vector<8x32xf32>
    %184 = math.tanh %183 : vector<8x32xf32>
    %185 = arith.mulf %180, %184 : vector<8x32xf32>
    %186 = arith.truncf %185 : vector<8x32xf32> to vector<8x32xbf16>
    %187 = vector.extract_strided_slice %186 {offsets = [0, 0], sizes = [8, 16], strides = [1, 1]} : vector<8x32xbf16> to vector<8x16xbf16>
    %c4_98 = arith.constant 4 : index
    %c0_99 = arith.constant 0 : index
    %c0_100 = arith.constant 0 : index
    %188 = vector.load %arg9[%c4_98, %c0_99, %c0_100] : memref<8x8x16xbf16, #tpu.memory_space<vmem>>, vector<1x8x16xbf16>
    %189 = vector.shape_cast %188 : vector<1x8x16xbf16> to vector<8x16xbf16>
    %190 = vector.shape_cast %187 : vector<8x16xbf16> to vector<1x8x16xbf16>
    tpu.vector_store %arg9[%c4_98, %c0_99, %c0_100], %190 {strides = array<i32>} : memref<8x8x16xbf16, #tpu.memory_space<vmem>>, vector<1x8x16xbf16>,
    %191 = vector.extract_strided_slice %186 {offsets = [0, 16], sizes = [8, 16], strides = [1, 1]} : vector<8x32xbf16> to vector<8x16xbf16>
    %c3_101 = arith.constant 3 : index
    %c0_102 = arith.constant 0 : index
    %c0_103 = arith.constant 0 : index
    %192 = vector.load %arg10[%c3_101, %c0_102, %c0_103] : memref<8x8x16xbf16, #tpu.memory_space<vmem>>, vector<1x8x16xbf16>
    %193 = vector.shape_cast %192 : vector<1x8x16xbf16> to vector<8x16xbf16>
    %194 = vector.shape_cast %191 : vector<8x16xbf16> to vector<1x8x16xbf16>
    tpu.vector_store %arg10[%c3_101, %c0_102, %c0_103], %194 {strides = array<i32>} : memref<8x8x16xbf16, #tpu.memory_space<vmem>>, vector<1x8x16xbf16>,
    %c5_104 = arith.constant 5 : index
    %c0_105 = arith.constant 0 : index
    %c0_106 = arith.constant 0 : index
    %195 = vector.load %arg11[%c5_104, %c0_105, %c0_106] : memref<8x8x128xf32, #tpu.memory_space<vmem>>, vector<1x8x128xf32>
    %196 = vector.shape_cast %195 : vector<1x8x128xf32> to vector<8x128xf32>
    %c2_107 = arith.constant 2 : index
    %c0_108 = arith.constant 0 : index
    %c0_109 = arith.constant 0 : index
    %197 = vector.load %arg12[%c2_107, %c0_108, %c0_109] : memref<8x8x128xf32, #tpu.memory_space<vmem>>, vector<1x8x128xf32>
    %198 = vector.shape_cast %197 : vector<1x8x128xf32> to vector<8x128xf32>
    %199 = arith.addf %196, %198 : vector<8x128xf32>
    %cst_110 = arith.constant dense<0.000000e+00> : vector<8x128xf32>
    %200 = tpu.matmul %186, %32, %cst_110 {dimension_numbers = #tpu.dot_dimension_numbers<[1], [0], [0], [1], [0, 0, 1, 1], [], []>} : vector<8x32xbf16>, vector<32x128xbf16>, vector<8x128xf32> -> vector<8x128xf32>
    %201 = arith.addf %199, %200 : vector<8x128xf32>
    %202 = vector.extract_strided_slice %201 {offsets = [0, 0], sizes = [8, 96], strides = [1, 1]} : vector<8x128xf32> to vector<8x96xf32>
    %203 = arith.negf %202 : vector<8x96xf32>
    %204 = math.exp %203 : vector<8x96xf32>
    %cst_111 = arith.constant 1.000000e+00 : f32
    %205 = vector.broadcast %cst_111 : f32 to vector<8x96xf32>
    %206 = arith.addf %205, %204 : vector<8x96xf32>
    %207 = arith.divf %205, %206 : vector<8x96xf32>
    %208 = vector.extract_strided_slice %201 {offsets = [0, 96], sizes = [8, 32], strides = [1, 1]} : vector<8x128xf32> to vector<8x32xf32>
    %209 = math.tanh %208 : vector<8x32xf32>
    %210 = vector.extract_strided_slice %207 {offsets = [0, 0], sizes = [8, 32], strides = [1, 1]} : vector<8x96xf32> to vector<8x32xf32>
    %211 = vector.extract_strided_slice %207 {offsets = [0, 32], sizes = [8, 32], strides = [1, 1]} : vector<8x96xf32> to vector<8x32xf32>
    %212 = vector.extract_strided_slice %207 {offsets = [0, 64], sizes = [8, 32], strides = [1, 1]} : vector<8x96xf32> to vector<8x32xf32>
    %213 = arith.mulf %211, %183 : vector<8x32xf32>
    %214 = arith.mulf %210, %209 : vector<8x32xf32>
    %215 = arith.addf %213, %214 : vector<8x32xf32>
    %216 = math.tanh %215 : vector<8x32xf32>
    %217 = arith.mulf %212, %216 : vector<8x32xf32>
    %218 = arith.truncf %217 : vector<8x32xf32> to vector<8x32xbf16>
    %219 = vector.extract_strided_slice %218 {offsets = [0, 0], sizes = [8, 16], strides = [1, 1]} : vector<8x32xbf16> to vector<8x16xbf16>
    %c5_112 = arith.constant 5 : index
    %c0_113 = arith.constant 0 : index
    %c0_114 = arith.constant 0 : index
    %220 = vector.load %arg9[%c5_112, %c0_113, %c0_114] : memref<8x8x16xbf16, #tpu.memory_space<vmem>>, vector<1x8x16xbf16>
    %221 = vector.shape_cast %220 : vector<1x8x16xbf16> to vector<8x16xbf16>
    %222 = vector.shape_cast %219 : vector<8x16xbf16> to vector<1x8x16xbf16>
    tpu.vector_store %arg9[%c5_112, %c0_113, %c0_114], %222 {strides = array<i32>} : memref<8x8x16xbf16, #tpu.memory_space<vmem>>, vector<1x8x16xbf16>,
    %223 = vector.extract_strided_slice %218 {offsets = [0, 16], sizes = [8, 16], strides = [1, 1]} : vector<8x32xbf16> to vector<8x16xbf16>
    %c2_115 = arith.constant 2 : index
    %c0_116 = arith.constant 0 : index
    %c0_117 = arith.constant 0 : index
    %224 = vector.load %arg10[%c2_115, %c0_116, %c0_117] : memref<8x8x16xbf16, #tpu.memory_space<vmem>>, vector<1x8x16xbf16>
    %225 = vector.shape_cast %224 : vector<1x8x16xbf16> to vector<8x16xbf16>
    %226 = vector.shape_cast %223 : vector<8x16xbf16> to vector<1x8x16xbf16>
    tpu.vector_store %arg10[%c2_115, %c0_116, %c0_117], %226 {strides = array<i32>} : memref<8x8x16xbf16, #tpu.memory_space<vmem>>, vector<1x8x16xbf16>,
    %c6_118 = arith.constant 6 : index
    %c0_119 = arith.constant 0 : index
    %c0_120 = arith.constant 0 : index
    %227 = vector.load %arg11[%c6_118, %c0_119, %c0_120] : memref<8x8x128xf32, #tpu.memory_space<vmem>>, vector<1x8x128xf32>
    %228 = vector.shape_cast %227 : vector<1x8x128xf32> to vector<8x128xf32>
    %c1_121 = arith.constant 1 : index
    %c0_122 = arith.constant 0 : index
    %c0_123 = arith.constant 0 : index
    %229 = vector.load %arg12[%c1_121, %c0_122, %c0_123] : memref<8x8x128xf32, #tpu.memory_space<vmem>>, vector<1x8x128xf32>
    %230 = vector.shape_cast %229 : vector<1x8x128xf32> to vector<8x128xf32>
    %231 = arith.addf %228, %230 : vector<8x128xf32>
    %cst_124 = arith.constant dense<0.000000e+00> : vector<8x128xf32>
    %232 = tpu.matmul %218, %32, %cst_124 {dimension_numbers = #tpu.dot_dimension_numbers<[1], [0], [0], [1], [0, 0, 1, 1], [], []>} : vector<8x32xbf16>, vector<32x128xbf16>, vector<8x128xf32> -> vector<8x128xf32>
    %233 = arith.addf %231, %232 : vector<8x128xf32>
    %234 = vector.extract_strided_slice %233 {offsets = [0, 0], sizes = [8, 96], strides = [1, 1]} : vector<8x128xf32> to vector<8x96xf32>
    %235 = arith.negf %234 : vector<8x96xf32>
    %236 = math.exp %235 : vector<8x96xf32>
    %cst_125 = arith.constant 1.000000e+00 : f32
    %237 = vector.broadcast %cst_125 : f32 to vector<8x96xf32>
    %238 = arith.addf %237, %236 : vector<8x96xf32>
    %239 = arith.divf %237, %238 : vector<8x96xf32>
    %240 = vector.extract_strided_slice %233 {offsets = [0, 96], sizes = [8, 32], strides = [1, 1]} : vector<8x128xf32> to vector<8x32xf32>
    %241 = math.tanh %240 : vector<8x32xf32>
    %242 = vector.extract_strided_slice %239 {offsets = [0, 0], sizes = [8, 32], strides = [1, 1]} : vector<8x96xf32> to vector<8x32xf32>
    %243 = vector.extract_strided_slice %239 {offsets = [0, 32], sizes = [8, 32], strides = [1, 1]} : vector<8x96xf32> to vector<8x32xf32>
    %244 = vector.extract_strided_slice %239 {offsets = [0, 64], sizes = [8, 32], strides = [1, 1]} : vector<8x96xf32> to vector<8x32xf32>
    %245 = arith.mulf %243, %215 : vector<8x32xf32>
    %246 = arith.mulf %242, %241 : vector<8x32xf32>
    %247 = arith.addf %245, %246 : vector<8x32xf32>
    %248 = math.tanh %247 : vector<8x32xf32>
    %249 = arith.mulf %244, %248 : vector<8x32xf32>
    %250 = arith.truncf %249 : vector<8x32xf32> to vector<8x32xbf16>
    %251 = vector.extract_strided_slice %250 {offsets = [0, 0], sizes = [8, 16], strides = [1, 1]} : vector<8x32xbf16> to vector<8x16xbf16>
    %c6_126 = arith.constant 6 : index
    %c0_127 = arith.constant 0 : index
    %c0_128 = arith.constant 0 : index
    %252 = vector.load %arg9[%c6_126, %c0_127, %c0_128] : memref<8x8x16xbf16, #tpu.memory_space<vmem>>, vector<1x8x16xbf16>
    %253 = vector.shape_cast %252 : vector<1x8x16xbf16> to vector<8x16xbf16>
    %254 = vector.shape_cast %251 : vector<8x16xbf16> to vector<1x8x16xbf16>
    tpu.vector_store %arg9[%c6_126, %c0_127, %c0_128], %254 {strides = array<i32>} : memref<8x8x16xbf16, #tpu.memory_space<vmem>>, vector<1x8x16xbf16>,
    %255 = vector.extract_strided_slice %250 {offsets = [0, 16], sizes = [8, 16], strides = [1, 1]} : vector<8x32xbf16> to vector<8x16xbf16>
    %c1_129 = arith.constant 1 : index
    %c0_130 = arith.constant 0 : index
    %c0_131 = arith.constant 0 : index
    %256 = vector.load %arg10[%c1_129, %c0_130, %c0_131] : memref<8x8x16xbf16, #tpu.memory_space<vmem>>, vector<1x8x16xbf16>
    %257 = vector.shape_cast %256 : vector<1x8x16xbf16> to vector<8x16xbf16>
    %258 = vector.shape_cast %255 : vector<8x16xbf16> to vector<1x8x16xbf16>
    tpu.vector_store %arg10[%c1_129, %c0_130, %c0_131], %258 {strides = array<i32>} : memref<8x8x16xbf16, #tpu.memory_space<vmem>>, vector<1x8x16xbf16>,
    %c7_132 = arith.constant 7 : index
    %c0_133 = arith.constant 0 : index
    %c0_134 = arith.constant 0 : index
    %259 = vector.load %arg11[%c7_132, %c0_133, %c0_134] : memref<8x8x128xf32, #tpu.memory_space<vmem>>, vector<1x8x128xf32>
    %260 = vector.shape_cast %259 : vector<1x8x128xf32> to vector<8x128xf32>
    %c0_135 = arith.constant 0 : index
    %c0_136 = arith.constant 0 : index
    %c0_137 = arith.constant 0 : index
    %261 = vector.load %arg12[%c0_135, %c0_136, %c0_137] : memref<8x8x128xf32, #tpu.memory_space<vmem>>, vector<1x8x128xf32>
    %262 = vector.shape_cast %261 : vector<1x8x128xf32> to vector<8x128xf32>
    %263 = arith.addf %260, %262 : vector<8x128xf32>
    %cst_138 = arith.constant dense<0.000000e+00> : vector<8x128xf32>
    %264 = tpu.matmul %250, %32, %cst_138 {dimension_numbers = #tpu.dot_dimension_numbers<[1], [0], [0], [1], [0, 0, 1, 1], [], []>} : vector<8x32xbf16>, vector<32x128xbf16>, vector<8x128xf32> -> vector<8x128xf32>
    %265 = arith.addf %263, %264 : vector<8x128xf32>
    %266 = vector.extract_strided_slice %265 {offsets = [0, 0], sizes = [8, 96], strides = [1, 1]} : vector<8x128xf32> to vector<8x96xf32>
    %267 = arith.negf %266 : vector<8x96xf32>
    %268 = math.exp %267 : vector<8x96xf32>
    %cst_139 = arith.constant 1.000000e+00 : f32
    %269 = vector.broadcast %cst_139 : f32 to vector<8x96xf32>
    %270 = arith.addf %269, %268 : vector<8x96xf32>
    %271 = arith.divf %269, %270 : vector<8x96xf32>
    %272 = vector.extract_strided_slice %265 {offsets = [0, 96], sizes = [8, 32], strides = [1, 1]} : vector<8x128xf32> to vector<8x32xf32>
    %273 = math.tanh %272 : vector<8x32xf32>
    %274 = vector.extract_strided_slice %271 {offsets = [0, 0], sizes = [8, 32], strides = [1, 1]} : vector<8x96xf32> to vector<8x32xf32>
    %275 = vector.extract_strided_slice %271 {offsets = [0, 32], sizes = [8, 32], strides = [1, 1]} : vector<8x96xf32> to vector<8x32xf32>
    %276 = vector.extract_strided_slice %271 {offsets = [0, 64], sizes = [8, 32], strides = [1, 1]} : vector<8x96xf32> to vector<8x32xf32>
    %277 = arith.mulf %275, %247 : vector<8x32xf32>
    %278 = arith.mulf %274, %273 : vector<8x32xf32>
    %279 = arith.addf %277, %278 : vector<8x32xf32>
    %280 = math.tanh %279 : vector<8x32xf32>
    %281 = arith.mulf %276, %280 : vector<8x32xf32>
    %282 = arith.truncf %281 : vector<8x32xf32> to vector<8x32xbf16>
    %283 = vector.extract_strided_slice %282 {offsets = [0, 0], sizes = [8, 16], strides = [1, 1]} : vector<8x32xbf16> to vector<8x16xbf16>
    %c7_140 = arith.constant 7 : index
    %c0_141 = arith.constant 0 : index
    %c0_142 = arith.constant 0 : index
    %284 = vector.load %arg9[%c7_140, %c0_141, %c0_142] : memref<8x8x16xbf16, #tpu.memory_space<vmem>>, vector<1x8x16xbf16>
    %285 = vector.shape_cast %284 : vector<1x8x16xbf16> to vector<8x16xbf16>
    %286 = vector.shape_cast %283 : vector<8x16xbf16> to vector<1x8x16xbf16>
    tpu.vector_store %arg9[%c7_140, %c0_141, %c0_142], %286 {strides = array<i32>} : memref<8x8x16xbf16, #tpu.memory_space<vmem>>, vector<1x8x16xbf16>,
    %287 = vector.extract_strided_slice %282 {offsets = [0, 16], sizes = [8, 16], strides = [1, 1]} : vector<8x32xbf16> to vector<8x16xbf16>
    %c0_143 = arith.constant 0 : index
    %c0_144 = arith.constant 0 : index
    %c0_145 = arith.constant 0 : index
    %288 = vector.load %arg10[%c0_143, %c0_144, %c0_145] : memref<8x8x16xbf16, #tpu.memory_space<vmem>>, vector<1x8x16xbf16>
    %289 = vector.shape_cast %288 : vector<1x8x16xbf16> to vector<8x16xbf16>
    %290 = vector.shape_cast %287 : vector<8x16xbf16> to vector<1x8x16xbf16>
    tpu.vector_store %arg10[%c0_143, %c0_144, %c0_145], %290 {strides = array<i32>} : memref<8x8x16xbf16, #tpu.memory_space<vmem>>, vector<1x8x16xbf16>,
    %c0_146 = arith.constant 0 : index
    %c0_147 = arith.constant 0 : index
    %291 = vector.load %arg13[%c0_146, %c0_147] : memref<8x32xbf16, #tpu.memory_space<vmem>>, vector<8x32xbf16>
    tpu.vector_store %arg13[%c0_146, %c0_147], %282 {strides = array<i32>} : memref<8x32xbf16, #tpu.memory_space<vmem>>, vector<8x32xbf16>,
    %c0_148 = arith.constant 0 : index
    %c0_149 = arith.constant 0 : index
    %292 = vector.load %arg14[%c0_148, %c0_149] : memref<8x32xf32, #tpu.memory_space<vmem>>, vector<8x32xf32>
    tpu.vector_store %arg14[%c0_148, %c0_149], %279 {strides = array<i32>} : memref<8x32xf32, #tpu.memory_space<vmem>>, vector<8x32xf32>,
    return
  }
  func.func @transform_0(%arg0: i32) -> (i32, i32, i32) {
    %c0_i32 = arith.constant 0 : i32
    %c0_i32_0 = arith.constant 0 : i32
    %c0_i32_1 = arith.constant 0 : i32
    return %arg0, %c0_i32, %c0_i32_0 : i32, i32, i32
  }
  func.func @transform_1(%arg0: i32) -> (i32, i32, i32) {
    %c0_i32 = arith.constant 0 : i32
    %c0_i32_0 = arith.constant 0 : i32
    %c0_i32_1 = arith.constant 0 : i32
    return %arg0, %c0_i32, %c0_i32_0 : i32, i32, i32
  }
  func.func @transform_2(%arg0: i32) -> (i32, i32, i32) {
    %c0_i32 = arith.constant 0 : i32
    %0 = arith.subi %c0_i32, %arg0 : i32
    %c0_i32_0 = arith.constant 0 : i32
    %c0_i32_1 = arith.constant 0 : i32
    %c0_i32_2 = arith.constant 0 : i32
    return %0, %c0_i32_0, %c0_i32_1 : i32, i32, i32
  }
  func.func @transform_3(%arg0: i32) -> (i32, i32, i32) {
    %c0_i32 = arith.constant 0 : i32
    %0 = arith.subi %c0_i32, %arg0 : i32
    %c0_i32_0 = arith.constant 0 : i32
    %c0_i32_1 = arith.constant 0 : i32
    %c0_i32_2 = arith.constant 0 : i32
    return %0, %c0_i32_0, %c0_i32_1 : i32, i32, i32
  }
  func.func @transform_4(%arg0: i32) -> (i32, i32, i32) {
    %c0_i32 = arith.constant 0 : i32
    %c0_i32_0 = arith.constant 0 : i32
    %c0_i32_1 = arith.constant 0 : i32
    %c0_i32_2 = arith.constant 0 : i32
    return %c0_i32, %c0_i32_0, %c0_i32_1 : i32, i32, i32
  }
  func.func @transform_5(%arg0: i32) -> (i32, i32, i32) {
    %c0_i32 = arith.constant 0 : i32
    %c0_i32_0 = arith.constant 0 : i32
    %c0_i32_1 = arith.constant 0 : i32
    %c0_i32_2 = arith.constant 0 : i32
    return %c0_i32, %c0_i32_0, %c0_i32_1 : i32, i32, i32
  }
  func.func @transform_6(%arg0: i32) -> (i32, i32) {
    %c0_i32 = arith.constant 0 : i32
    %c0_i32_0 = arith.constant 0 : i32
    %c0_i32_1 = arith.constant 0 : i32
    return %c0_i32, %c0_i32_0 : i32, i32
  }
  func.func @transform_7(%arg0: i32) -> (i32, i32) {
    %c0_i32 = arith.constant 0 : i32
    %c0_i32_0 = arith.constant 0 : i32
    %c0_i32_1 = arith.constant 0 : i32
    return %c0_i32, %c0_i32_0 : i32, i32
  }
  func.func @transform_8(%arg0: i32) -> (i32, i32, i32) {
    %c0_i32 = arith.constant 0 : i32
    %c0_i32_0 = arith.constant 0 : i32
    %c0_i32_1 = arith.constant 0 : i32
    return %arg0, %c0_i32, %c0_i32_0 : i32, i32, i32
  }
  func.func @transform_9(%arg0: i32) -> (i32, i32, i32) {
    %c0_i32 = arith.constant 0 : i32
    %0 = arith.subi %c0_i32, %arg0 : i32
    %c0_i32_0 = arith.constant 0 : i32
    %c0_i32_1 = arith.constant 0 : i32
    %c0_i32_2 = arith.constant 0 : i32
    return %0, %c0_i32_0, %c0_i32_1 : i32, i32, i32
  }
}

</mosaic_0001>

<llo_original>
// kernel: rnn_forward.5
$region0: #{rnn_forward.5}
  #allocation0 [shape = 'u32[]', space=smem, size = 0x4, offset = 0x4, fixed_abs, tag = 'smem constant byte address 0x4 - core index']
  #allocation1 [shape = 'u32[144,128]{1,0:T(1,128)}', space=vmem, size = 0x12000, scoped, tag = 'internal scratch']
  %s0 = inlined_call_operand.vmem [shape: bf16[8,8,16], index: 0, kind: input, shape index: {}]
  %s1 = inlined_call_operand.vmem [shape: bf16[8,8,16], index: 1, kind: input, shape index: {}]
  %s2 = inlined_call_operand.vmem [shape: bf16[2,16,128], index: 2, kind: input, shape index: {}]
  %s3 = inlined_call_operand.vmem [shape: f32[1,128], index: 3, kind: input, shape index: {}]
  %s4 = inlined_call_operand.vmem [shape: f32[8,8,128], index: 4, kind: output, shape index: {}]
  %s5 = sld [smem:[#allocation0]]
  $region26: #{rnn_forward.5} parent=0
    _
  %s7 = ssub.s32 1, %s5
  %s8 = scalar_select 0, %s7, %s5
  // Predicated region
  $region2: #{rnn_forward.5} parent=0 // pred_check
    _
  $region3: #{rnn_forward.5} parent=0 // pred_check_branch
    %10 = sbr.rel (0) target = $region5
  $region4: #{rnn_forward.5} parent=0 // pred_region
    _
  $region5: #{rnn_forward.5} parent=0 // pred_fallthru
    _
  // Predicated region
  $region6: #{rnn_forward.5} parent=0 // pred_check
    _
  $region7: #{rnn_forward.5} parent=0 // pred_check_branch
    %12 = sbr.rel (0) target = $region9
  $region8: #{rnn_forward.5} parent=0 // pred_region
    _
  $region9: #{rnn_forward.5} parent=0 // pred_fallthru
    _
  // Predicated region
  $region10: #{rnn_forward.5} parent=0 // pred_check
    _
  $region11: #{rnn_forward.5} parent=0 // pred_check_branch
    %14 = sbr.rel (0) target = $region13
  $region12: #{rnn_forward.5} parent=0 // pred_region
    _
  $region13: #{rnn_forward.5} parent=0 // pred_fallthru
    _
  // Predicated region
  $region14: #{rnn_forward.5} parent=0 // pred_check
    _
  $region15: #{rnn_forward.5} parent=0 // pred_check_branch
    %16 = sbr.rel (0) target = $region17
  $region16: #{rnn_forward.5} parent=0 // pred_region
    _
  $region17: #{rnn_forward.5} parent=0 // pred_fallthru
    _
  %v18 = vld [vmem:[%s0] sm:$0xf]
  %v19 = vld [vmem:[%s0 + $0x4] sm:$0xf]
  %v20 = vld [vmem:[%s0 + $0x8] sm:$0xf]
  %v21 = vld [vmem:[%s0 + $0xc] sm:$0xf]
  %v22 = vld [vmem:[%s0 + $0x10] sm:$0xf]
  %v23 = vld [vmem:[%s0 + $0x14] sm:$0xf]
  %v24 = vld [vmem:[%s0 + $0x18] sm:$0xf]
  %v25 = vld [vmem:[%s0 + $0x1c] sm:$0xf]
  %v26 = vld [vmem:[%s2] sm:$0xf]
  %v27 = vld [vmem:[%s2 + $0x4] sm:$0xf]
  %v28 = vld [vmem:[%s1] sm:$0xf]
  %v29 = vld [vmem:[%s1 + $0x4] sm:$0xf]
  %v30 = vld [vmem:[%s1 + $0x8] sm:$0xf]
  %v31 = vld [vmem:[%s1 + $0xc] sm:$0xf]
  %v32 = vld [vmem:[%s1 + $0x10] sm:$0xf]
  %v33 = vld [vmem:[%s1 + $0x14] sm:$0xf]
  %v34 = vld [vmem:[%s1 + $0x18] sm:$0xf]
  %v35 = vld [vmem:[%s1 + $0x1c] sm:$0xf]
  %s36 = scalar_lea.vmem %s2, 8
  %v37 = vld [vmem:[%s36] sm:$0xf]
  %v38 = vld [vmem:[%s36 + $0x4] sm:$0xf]
  %v47 = vunpack.c.l.b16 %v28
  %v48 = vunpack.c.l.b16 %v29
  %v49 = vunpack.c.l.b16 %v30
  %v50 = vunpack.c.l.b16 %v31
  %v51 = vunpack.c.l.b16 %v32
  %v52 = vunpack.c.l.b16 %v33
  %v53 = vunpack.c.l.b16 %v34
  %v54 = vunpack.c.l.b16 %v35
  %v55 = vpack.c.b16 %v48, %v47
  %v56 = vpack.c.b16 %v50, %v49
  %v57 = vpack.c.b16 %v52, %v51
  %v58 = vpack.c.b16 %v54, %v53
  %v61 = vunpack.c.l.b16 %v37
  %v62 = vunpack.c.l.b16 %v38
  %v63 = vpack.c.b16 %v62, %v61
  %vm65 = vcmask 130048
  %v67 = vsel %vm65, %v55, 0
  %v70 = vsel %vm65, %v56, 0
  %v73 = vsel %vm65, %v57, 0
  %v76 = vsel %vm65, %v58, 0
  %78 = vmatprep.subr.bf16.mxu0 0
  %79 = vmatpush1.bf16.msra.mxu0 %v63
  %80 = vmatprep.subr.bf16.mxu0 0
  %81 = vmatpush1.bf16.msra.mxu0 0
  %82 = vmatprep.subr.bf16.mxu0 0
  %83 = vmatpush1.bf16.msra.mxu0 0
  %84 = vmatprep.subr.bf16.mxu0 0
  %85 = vmatpush1.bf16.msra.mxu0 0
  %86 = vmatprep.subr.bf16.mxu0 0
  %87 = vmatpush1.bf16.msra.mxu0 0
  %88 = vmatprep.subr.bf16.mxu0 0
  %89 = vmatpush1.bf16.msra.mxu0 0
  %90 = vmatprep.subr.bf16.mxu0 0
  %91 = vmatpush1.bf16.msra.mxu0 0
  %92 = vmatprep.subr.bf16.mxu0 0
  %93 = vmatpush1.bf16.msra.mxu0 0
  %94 = vmatprep.subr.bf16.mxu0 0
  %95 = vmatpush1.bf16.msra.mxu0 0
  %96 = vmatprep.subr.bf16.mxu0 0
  %97 = vmatpush1.bf16.msra.mxu0 0
  %98 = vmatprep.subr.bf16.mxu0 0
  %99 = vmatpush1.bf16.msra.mxu0 0
  %100 = vmatprep.subr.bf16.mxu0 0
  %101 = vmatpush1.bf16.msra.mxu0 0
  %102 = vmatprep.subr.bf16.mxu0 0
  %103 = vmatpush1.bf16.msra.mxu0 0
  %104 = vmatprep.subr.bf16.mxu0 0
  %105 = vmatpush1.bf16.msra.mxu0 0
  %106 = vmatprep.subr.bf16.mxu0 0
  %107 = vmatpush1.bf16.msra.mxu0 0
  %108 = vmatprep.subr.bf16.mxu0 0
  %109 = vmatpush1.bf16.msra.mxu0 0
  %110 = vmatprep.mubr.bf16.mxu0 0
  %111 = vmatmul.mubr.bf16.gmra.mrb[0].mxu0 %v67
  %v112 = vpop.f32.mrb[0].mxu0
  %v113 = vadd.f32 0.0, %v112
  %v114 = vpop.f32.mrb[0].mxu0
  %v115 = vpop.f32.mrb[0].mxu0
  %v116 = vadd.f32 0.0, %v115
  %v117 = vpop.f32.mrb[0].mxu0
  %118 = vmatprep.mubr.bf16.mxu0 0
  %119 = vmatmul.mubr.bf16.gmra.mrb[0].mxu0 %v70
  %v120 = vpop.f32.mrb[0].mxu0
  %v121 = vadd.f32 0.0, %v120
  %v122 = vpop.f32.mrb[0].mxu0
  %v123 = vpop.f32.mrb[0].mxu0
  %v124 = vadd.f32 0.0, %v123
  %v125 = vpop.f32.mrb[0].mxu0
  %126 = vmatprep.mubr.bf16.mxu0 0
  %127 = vmatmul.mubr.bf16.gmra.mrb[0].mxu0 %v73
  %v128 = vpop.f32.mrb[0].mxu0
  %v129 = vadd.f32 0.0, %v128
  %v130 = vpop.f32.mrb[0].mxu0
  %v131 = vpop.f32.mrb[0].mxu0
  %v132 = vadd.f32 0.0, %v131
  %v133 = vpop.f32.mrb[0].mxu0
  %134 = vmatprep.mubr.bf16.mxu0 0
  %135 = vmatmul.mubr.bf16.gmra.mrb[0].mxu0 %v76
  %v136 = vpop.f32.mrb[0].mxu0
  %v137 = vadd.f32 0.0, %v136
  %v138 = vpop.f32.mrb[0].mxu0
  %v139 = vpop.f32.mrb[0].mxu0
  %v140 = vadd.f32 0.0, %v139
  %v141 = vpop.f32.mrb[0].mxu0
  %142 = vdwg.mxu0
  %v151 = vunpack.c.l.b16 %v18
  %v152 = vunpack.c.l.b16 %v19
  %v153 = vunpack.c.l.b16 %v20
  %v154 = vunpack.c.l.b16 %v21
  %v155 = vunpack.c.l.b16 %v22
  %v156 = vunpack.c.l.b16 %v23
  %v157 = vunpack.c.l.b16 %v24
  %v158 = vunpack.c.l.b16 %v25
  %v159 = vpack.c.b16 %v152, %v151
  %v160 = vpack.c.b16 %v154, %v153
  %v161 = vpack.c.b16 %v156, %v155
  %v162 = vpack.c.b16 %v158, %v157
  %v165 = vunpack.c.l.b16 %v26
  %v166 = vunpack.c.l.b16 %v27
  %v167 = vpack.c.b16 %v166, %v165
  %v170 = vsel %vm65, %v159, 0
  %v173 = vsel %vm65, %v160, 0
  %v176 = vsel %vm65, %v161, 0
  %v179 = vsel %vm65, %v162, 0
  %181 = vmatprep.subr.bf16.mxu0 0
  %182 = vmatpush1.bf16.msra.mxu0 %v167
  %183 = vmatprep.subr.bf16.mxu0 0
  %184 = vmatpush1.bf16.msra.mxu0 0
  %185 = vmatprep.subr.bf16.mxu0 0
  %186 = vmatpush1.bf16.msra.mxu0 0
  %187 = vmatprep.subr.bf16.mxu0 0
  %188 = vmatpush1.bf16.msra.mxu0 0
  %189 = vmatprep.subr.bf16.mxu0 0
  %190 = vmatpush1.bf16.msra.mxu0 0
  %191 = vmatprep.subr.bf16.mxu0 0
  %192 = vmatpush1.bf16.msra.mxu0 0
  %193 = vmatprep.subr.bf16.mxu0 0
  %194 = vmatpush1.bf16.msra.mxu0 0
  %195 = vmatprep.subr.bf16.mxu0 0
  %196 = vmatpush1.bf16.msra.mxu0 0
  %197 = vmatprep.subr.bf16.mxu0 0
  %198 = vmatpush1.bf16.msra.mxu0 0
  %199 = vmatprep.subr.bf16.mxu0 0
  %200 = vmatpush1.bf16.msra.mxu0 0
  %201 = vmatprep.subr.bf16.mxu0 0
  %202 = vmatpush1.bf16.msra.mxu0 0
  %203 = vmatprep.subr.bf16.mxu0 0
  %204 = vmatpush1.bf16.msra.mxu0 0
  %205 = vmatprep.subr.bf16.mxu0 0
  %206 = vmatpush1.bf16.msra.mxu0 0
  %207 = vmatprep.subr.bf16.mxu0 0
  %208 = vmatpush1.bf16.msra.mxu0 0
  %209 = vmatprep.subr.bf16.mxu0 0
  %210 = vmatpush1.bf16.msra.mxu0 0
  %211 = vmatprep.subr.bf16.mxu0 0
  %212 = vmatpush1.bf16.msra.mxu0 0
  %213 = vmatprep.mubr.bf16.mxu0 0
  %214 = vmatmul.mubr.bf16.gmra.mrb[0].mxu0 %v170
  %v215 = vpop.f32.mrb[0].mxu0
  %v216 = vadd.f32 %v113, %v215
  %v217 = vpop.f32.mrb[0].mxu0
  %v218 = vpop.f32.mrb[0].mxu0
  %v219 = vadd.f32 %v116, %v218
  %v220 = vpop.f32.mrb[0].mxu0
  %221 = vmatprep.mubr.bf16.mxu0 0
  %222 = vmatmul.mubr.bf16.gmra.mrb[0].mxu0 %v173
  %v223 = vpop.f32.mrb[0].mxu0
  %v224 = vadd.f32 %v121, %v223
  %v225 = vpop.f32.mrb[0].mxu0
  %v226 = vpop.f32.mrb[0].mxu0
  %v227 = vadd.f32 %v124, %v226
  %v228 = vpop.f32.mrb[0].mxu0
  %229 = vmatprep.mubr.bf16.mxu0 0
  %230 = vmatmul.mubr.bf16.gmra.mrb[0].mxu0 %v176
  %v231 = vpop.f32.mrb[0].mxu0
  %v232 = vadd.f32 %v129, %v231
  %v233 = vpop.f32.mrb[0].mxu0
  %v234 = vpop.f32.mrb[0].mxu0
  %v235 = vadd.f32 %v132, %v234
  %v236 = vpop.f32.mrb[0].mxu0
  %237 = vmatprep.mubr.bf16.mxu0 0
  %238 = vmatmul.mubr.bf16.gmra.mrb[0].mxu0 %v179
  %v239 = vpop.f32.mrb[0].mxu0
  %v240 = vadd.f32 %v137, %v239
  %v241 = vpop.f32.mrb[0].mxu0
  %v242 = vpop.f32.mrb[0].mxu0
  %v243 = vadd.f32 %v140, %v242
  %v244 = vpop.f32.mrb[0].mxu0
  %245 = vdwg.mxu0
  %v246 = vld [vmem:[%s3] sm:$0x1]
  %v248 = vlaneseq
  %v249 = vshrl.u32 %v248, 7
  %v250 = vsub.s32 0, %v249
  %v251 = vrot.slane %v246, %v250
  %v253 = vadd.f32 %v216, %v251
  %v254 = vadd.f32 %v219, %v251
  %v255 = vadd.f32 %v224, %v251
  %v256 = vadd.f32 %v227, %v251
  %v257 = vadd.f32 %v232, %v251
  %v258 = vadd.f32 %v235, %v251
  %v259 = vadd.f32 %v240, %v251
  %v260 = vadd.f32 %v243, %v251
  %261 = vst [vmem:[%s4] sm:$0xff] %v253
  %262 = vst [vmem:[%s4 + $0x8] sm:$0xff] %v254
  %263 = vst [vmem:[%s4 + $0x10] sm:$0xff] %v255
  %264 = vst [vmem:[%s4 + $0x18] sm:$0xff] %v256
  %265 = vst [vmem:[%s4 + $0x20] sm:$0xff] %v257
  %266 = vst [vmem:[%s4 + $0x28] sm:$0xff] %v258
  %267 = vst [vmem:[%s4 + $0x30] sm:$0xff] %v259
  %268 = vst [vmem:[%s4 + $0x38] sm:$0xff] %v260
  // Predicated region
  $region18: #{rnn_forward.5} parent=0 // pred_check
    _
  $region19: #{rnn_forward.5} parent=0 // pred_check_branch
    %270 = sbr.rel (0) target = $region21
  $region20: #{rnn_forward.5} parent=0 // pred_region
    _
  $region21: #{rnn_forward.5} parent=0 // pred_fallthru
    _
  // Predicated region
  $region22: #{rnn_forward.5} parent=0 // pred_check
    _
  $region23: #{rnn_forward.5} parent=0 // pred_check_branch
    %272 = sbr.rel (0) target = $region25
  $region24: #{rnn_forward.5} parent=0 // pred_region
    _
  $region25: #{rnn_forward.5} parent=0 // pred_fallthru
    _

// kernel: rnn_forward.3
$region0: #{rnn_forward.3}
  #allocation0 [shape = 'u32[]', space=smem, size = 0x4, offset = 0x4, fixed_abs, tag = 'smem constant byte address 0x4 - core index']
  #allocation1 [shape = 'u32[144,128]{1,0:T(1,128)}', space=vmem, size = 0x12000, scoped, tag = 'internal scratch']
  #allocation2 [shape = 'f32[8,8,128]{2,1,0:T(8,128)}', space=vmem, size = 0x8000, scoped, tag = 'scratch operand']
  #allocation3 [shape = 'f32[8,8,128]{2,1,0:T(8,128)}', space=vmem, size = 0x8000, scoped, tag = 'scratch operand']
  #allocation4 [shape = 'bf16[8,32]{1,0:T(8,128)(2,1)}', space=vmem, size = 0x800, scoped, tag = 'scratch operand']
  #allocation5 [shape = 'f32[8,32]{1,0:T(8,128)}', space=vmem, size = 0x1000, scoped, tag = 'scratch operand']
  %s0 = inlined_call_operand.vmem [shape: bf16[8,8,8], index: 0, kind: input, shape index: {}, may-alias: {0,1}]
  %s1 = inlined_call_operand.vmem [shape: bf16[8,8,8], index: 1, kind: input, shape index: {}, may-alias: {0,1}]
  %s2 = inlined_call_operand.vmem [shape: bf16[1,8,128], index: 2, kind: input, shape index: {}]
  %s3 = inlined_call_operand.vmem [shape: bf16[1,8,128], index: 3, kind: input, shape index: {}]
  %s4 = inlined_call_operand.vmem [shape: bf16[32,128], index: 4, kind: input, shape index: {}]
  %s5 = inlined_call_operand.vmem [shape: f32[1,128], index: 5, kind: input, shape index: {}]
  %s6 = inlined_call_operand.vmem [shape: bf16[8,8,16], index: 6, kind: output, shape index: {0}]
  %s7 = inlined_call_operand.vmem [shape: bf16[8,8,16], index: 7, kind: output, shape index: {1}]
  %8 = xla_tuple %s6, %s7
  %s9 = sld [smem:[#allocation0]]
  $region46: #{rnn_forward.3} parent=0
    _
  %s11 = ssub.s32 1, %s9
  %s12 = scalar_select 0, %s11, %s9
  // Predicated region
  $region2: #{rnn_forward.3} parent=0 // pred_check
    _
  $region3: #{rnn_forward.3} parent=0 // pred_check_branch
    %14 = sbr.rel (0) target = $region5
  $region4: #{rnn_forward.3} parent=0 // pred_region
    _
  $region5: #{rnn_forward.3} parent=0 // pred_fallthru
    _
  // Predicated region
  $region6: #{rnn_forward.3} parent=0 // pred_check
    _
  $region7: #{rnn_forward.3} parent=0 // pred_check_branch
    %16 = sbr.rel (0) target = $region9
  $region8: #{rnn_forward.3} parent=0 // pred_region
    %s17 = ssub.s32 0, 0
    %s18 = smul.u32 8, %s17
    %p19 = scmp.lt.s32.totalorder %s18, 7
    %s20 = scalar_select %p19, %s18, 7
    %s21 = smul.addr %s20, 4
    %s22 = scalar_lea.vmem %s1, %s21
    %s23 = ssub.s32 0, 0
    %s24 = smul.u32 8, %s23
  $region9: #{rnn_forward.3} parent=0 // pred_fallthru
    _
  // Predicated region
  $region10: #{rnn_forward.3} parent=0 // pred_check
    _
  $region11: #{rnn_forward.3} parent=0 // pred_check_branch
    %26 = sbr.rel (0) target = $region13
  $region12: #{rnn_forward.3} parent=0 // pred_region
    _
  $region13: #{rnn_forward.3} parent=0 // pred_fallthru
    _
  // Predicated region
  $region14: #{rnn_forward.3} parent=0 // pred_check
    _
  $region15: #{rnn_forward.3} parent=0 // pred_check_branch
    %28 = sbr.rel (0) target = $region17
  $region16: #{rnn_forward.3} parent=0 // pred_region
    _
  $region17: #{rnn_forward.3} parent=0 // pred_fallthru
    _
  // Predicated region
  $region18: #{rnn_forward.3} parent=0 // pred_check
    _
  $region19: #{rnn_forward.3} parent=0 // pred_check_branch
    %30 = sbr.rel (0) target = $region21
  $region20: #{rnn_forward.3} parent=0 // pred_region
    _
  $region21: #{rnn_forward.3} parent=0 // pred_fallthru
    _
  // Predicated region
  $region22: #{rnn_forward.3} parent=0 // pred_check
    _
  $region23: #{rnn_forward.3} parent=0 // pred_check_branch
    %32 = sbr.rel (0) target = $region25
  $region24: #{rnn_forward.3} parent=0 // pred_region
    _
  $region25: #{rnn_forward.3} parent=0 // pred_fallthru
    _
  %s33 = ssub.s32 0, 0
  %s34 = smul.u32 8, %s33
  %p35 = scmp.lt.s32.totalorder %s34, 7
  %s36 = scalar_select %p35, %s34, 7
  %s37 = smul.addr %s36, 4
  %s38 = scalar_lea.vmem %s1, %s37
  %s39 = ssub.s32 0, 0
  %s40 = smul.u32 8, %s39
  %p41 = scmp.lt.s32.totalorder %s40, 7
  %s42 = scalar_select %p41, %s40, 7
  %s43 = smul.addr %s42, 4
  %s44 = scalar_lea.vmem %s7, %s43
  %s45 = ssub.s32 0, 0
  %s46 = smul.u32 8, %s45
  %p47 = scmp.lt.s32.totalorder %s46, 7
  %s48 = scalar_select %p47, %s46, 7
  %s49 = smul.addr %s48, 4
  %s50 = scalar_lea.vmem %s1, %s49
  %s51 = ssub.s32 0, 0
  %s52 = smul.u32 8, %s51
  %s53 = ssub.s32 0, 0
  %s54 = smul.u32 8, %s53
  %p55 = scmp.lt.s32.totalorder %s54, 7
  %s56 = scalar_select %p55, %s54, 7
  %s57 = smul.addr %s56, 4
  %s58 = scalar_lea.vmem %s7, %s57
  %s59 = ssub.s32 0, 0
  %s60 = smul.u32 8, %s59
  %p62 = scmp.eq.s32.totalorder 0, 0
  // Predicated region
  $region26: #{rnn_forward.3} parent=0 // pred_check
    %p63 = pneg %p62
  $region27: #{rnn_forward.3} parent=0 // pred_check_branch
    %65 = sbr.rel (%p63) target = $region29
  $region28: #{rnn_forward.3} parent=0 // pred_region
    %vm66 = vcmask 257024
    %67 = vst.msk [vmem:[#allocation4] sm:$0xf] %vm66, 0
    %vm68 = vcmask 261120
    %69 = vst.msk [vmem:[#allocation5] sm:$0xff] %vm68, 0.0
  $region29: #{rnn_forward.3} parent=0 // pred_fallthru
    _
  %v70 = vld [vmem:[%s0] sm:$0xf]
  %v71 = vld [vmem:[%s0 + $0x4] sm:$0xf]
  %v72 = vld [vmem:[%s0 + $0x8] sm:$0xf]
  %v73 = vld [vmem:[%s0 + $0xc] sm:$0xf]
  %v74 = vld [vmem:[%s0 + $0x10] sm:$0xf]
  %v75 = vld [vmem:[%s0 + $0x14] sm:$0xf]
  %v76 = vld [vmem:[%s0 + $0x18] sm:$0xf]
  %v77 = vld [vmem:[%s0 + $0x1c] sm:$0xf]
  %v78 = vld [vmem:[%s2] sm:$0xf]
  %v79 = vld [vmem:[%s5] sm:$0x1]
  %v81 = vlaneseq
  %v82 = vshrl.u32 %v81, 7
  %v83 = vsub.s32 0, %v82
  %v84 = vrot.slane %v79, %v83
  %v94 = vunpack.c.l.b16 %v70
  %v95 = vunpack.c.l.b16 %v71
  %v96 = vunpack.c.l.b16 %v72
  %v97 = vunpack.c.l.b16 %v73
  %v98 = vunpack.c.l.b16 %v74
  %v99 = vunpack.c.l.b16 %v75
  %v100 = vunpack.c.l.b16 %v76
  %v101 = vunpack.c.l.b16 %v77
  %v102 = vpack.c.b16 %v95, %v94
  %v103 = vpack.c.b16 %v97, %v96
  %v104 = vpack.c.b16 %v99, %v98
  %v105 = vpack.c.b16 %v101, %v100
  %vm106 = vcmask 64512
  %v108 = vsel %vm106, %v102, 0
  %v111 = vsel %vm106, %v103, 0
  %v114 = vsel %vm106, %v104, 0
  %v117 = vsel %vm106, %v105, 0
  %vm119 = vcmask 1043456
  %v121 = vsel %vm119, %v78, 0
  %123 = vmatprep.subr.bf16.mxu0 0
  %124 = vmatpush1.bf16.msra.mxu0 %v121
  %125 = vmatprep.subr.bf16.mxu0 0
  %126 = vmatpush1.bf16.msra.mxu0 0
  %127 = vmatprep.subr.bf16.mxu0 0
  %128 = vmatpush1.bf16.msra.mxu0 0
  %129 = vmatprep.subr.bf16.mxu0 0
  %130 = vmatpush1.bf16.msra.mxu0 0
  %131 = vmatprep.subr.bf16.mxu0 0
  %132 = vmatpush1.bf16.msra.mxu0 0
  %133 = vmatprep.subr.bf16.mxu0 0
  %134 = vmatpush1.bf16.msra.mxu0 0
  %135 = vmatprep.subr.bf16.mxu0 0
  %136 = vmatpush1.bf16.msra.mxu0 0
  %137 = vmatprep.subr.bf16.mxu0 0
  %138 = vmatpush1.bf16.msra.mxu0 0
  %139 = vmatprep.subr.bf16.mxu0 0
  %140 = vmatpush1.bf16.msra.mxu0 0
  %141 = vmatprep.subr.bf16.mxu0 0
  %142 = vmatpush1.bf16.msra.mxu0 0
  %143 = vmatprep.subr.bf16.mxu0 0
  %144 = vmatpush1.bf16.msra.mxu0 0
  %145 = vmatprep.subr.bf16.mxu0 0
  %146 = vmatpush1.bf16.msra.mxu0 0
  %147 = vmatprep.subr.bf16.mxu0 0
  %148 = vmatpush1.bf16.msra.mxu0 0
  %149 = vmatprep.subr.bf16.mxu0 0
  %150 = vmatpush1.bf16.msra.mxu0 0
  %151 = vmatprep.subr.bf16.mxu0 0
  %152 = vmatpush1.bf16.msra.mxu0 0
  %153 = vmatprep.subr.bf16.mxu0 0
  %154 = vmatpush1.bf16.msra.mxu0 0
  %155 = vmatprep.mubr.bf16.mxu0 0
  %156 = vmatmul.mubr.bf16.gmra.mrb[0].mxu0 %v108
  %v157 = vpop.f32.mrb[0].mxu0
  %v158 = vadd.f32 %v84, %v157
  %v159 = vpop.f32.mrb[0].mxu0
  %v160 = vpop.f32.mrb[0].mxu0
  %v161 = vadd.f32 %v84, %v160
  %v162 = vpop.f32.mrb[0].mxu0
  %163 = vmatprep.mubr.bf16.mxu0 0
  %164 = vmatmul.mubr.bf16.gmra.mrb[0].mxu0 %v111
  %v165 = vpop.f32.mrb[0].mxu0
  %v166 = vadd.f32 %v84, %v165
  %v167 = vpop.f32.mrb[0].mxu0
  %v168 = vpop.f32.mrb[0].mxu0
  %v169 = vadd.f32 %v84, %v168
  %v170 = vpop.f32.mrb[0].mxu0
  %171 = vmatprep.mubr.bf16.mxu0 0
  %172 = vmatmul.mubr.bf16.gmra.mrb[0].mxu0 %v114
  %v173 = vpop.f32.mrb[0].mxu0
  %v174 = vadd.f32 %v84, %v173
  %v175 = vpop.f32.mrb[0].mxu0
  %v176 = vpop.f32.mrb[0].mxu0
  %v177 = vadd.f32 %v84, %v176
  %v178 = vpop.f32.mrb[0].mxu0
  %179 = vmatprep.mubr.bf16.mxu0 0
  %180 = vmatmul.mubr.bf16.gmra.mrb[0].mxu0 %v117
  %v181 = vpop.f32.mrb[0].mxu0
  %v182 = vadd.f32 %v84, %v181
  %v183 = vpop.f32.mrb[0].mxu0
  %v184 = vpop.f32.mrb[0].mxu0
  %v185 = vadd.f32 %v84, %v184
  %v186 = vpop.f32.mrb[0].mxu0
  %187 = vdwg.mxu0
  %188 = vst [vmem:[#allocation2] sm:$0xff] %v158
  %189 = vst [vmem:[#allocation2 + $0x8] sm:$0xff] %v161
  %190 = vst [vmem:[#allocation2 + $0x10] sm:$0xff] %v166
  %191 = vst [vmem:[#allocation2 + $0x18] sm:$0xff] %v169
  %192 = vst [vmem:[#allocation2 + $0x20] sm:$0xff] %v174
  %193 = vst [vmem:[#allocation2 + $0x28] sm:$0xff] %v177
  %194 = vst [vmem:[#allocation2 + $0x30] sm:$0xff] %v182
  %195 = vst [vmem:[#allocation2 + $0x38] sm:$0xff] %v185
  %v196 = vld [vmem:[%s50] sm:$0xf]
  %v197 = vld [vmem:[%s50 + $0x4] sm:$0xf]
  %v198 = vld [vmem:[%s50 + $0x8] sm:$0xf]
  %v199 = vld [vmem:[%s50 + $0xc] sm:$0xf]
  %v200 = vld [vmem:[%s50 + $0x10] sm:$0xf]
  %v201 = vld [vmem:[%s50 + $0x14] sm:$0xf]
  %v202 = vld [vmem:[%s50 + $0x18] sm:$0xf]
  %v203 = vld [vmem:[%s50 + $0x1c] sm:$0xf]
  %v204 = vld [vmem:[%s3] sm:$0xf]
  %v213 = vunpack.c.l.b16 %v196
  %v214 = vunpack.c.l.b16 %v197
  %v215 = vunpack.c.l.b16 %v198
  %v216 = vunpack.c.l.b16 %v199
  %v217 = vunpack.c.l.b16 %v200
  %v218 = vunpack.c.l.b16 %v201
  %v219 = vunpack.c.l.b16 %v202
  %v220 = vunpack.c.l.b16 %v203
  %v221 = vpack.c.b16 %v214, %v213
  %v222 = vpack.c.b16 %v216, %v215
  %v223 = vpack.c.b16 %v218, %v217
  %v224 = vpack.c.b16 %v220, %v219
  %v226 = vsel %vm106, %v221, 0
  %v229 = vsel %vm106, %v222, 0
  %v232 = vsel %vm106, %v223, 0
  %v235 = vsel %vm106, %v224, 0
  %v238 = vsel %vm119, %v204, 0
  %240 = vmatprep.subr.bf16.mxu0 0
  %241 = vmatpush1.bf16.msra.mxu0 %v238
  %242 = vmatprep.subr.bf16.mxu0 0
  %243 = vmatpush1.bf16.msra.mxu0 0
  %244 = vmatprep.subr.bf16.mxu0 0
  %245 = vmatpush1.bf16.msra.mxu0 0
  %246 = vmatprep.subr.bf16.mxu0 0
  %247 = vmatpush1.bf16.msra.mxu0 0
  %248 = vmatprep.subr.bf16.mxu0 0
  %249 = vmatpush1.bf16.msra.mxu0 0
  %250 = vmatprep.subr.bf16.mxu0 0
  %251 = vmatpush1.bf16.msra.mxu0 0
  %252 = vmatprep.subr.bf16.mxu0 0
  %253 = vmatpush1.bf16.msra.mxu0 0
  %254 = vmatprep.subr.bf16.mxu0 0
  %255 = vmatpush1.bf16.msra.mxu0 0
  %256 = vmatprep.subr.bf16.mxu0 0
  %257 = vmatpush1.bf16.msra.mxu0 0
  %258 = vmatprep.subr.bf16.mxu0 0
  %259 = vmatpush1.bf16.msra.mxu0 0
  %260 = vmatprep.subr.bf16.mxu0 0
  %261 = vmatpush1.bf16.msra.mxu0 0
  %262 = vmatprep.subr.bf16.mxu0 0
  %263 = vmatpush1.bf16.msra.mxu0 0
  %264 = vmatprep.subr.bf16.mxu0 0
  %265 = vmatpush1.bf16.msra.mxu0 0
  %266 = vmatprep.subr.bf16.mxu0 0
  %267 = vmatpush1.bf16.msra.mxu0 0
  %268 = vmatprep.subr.bf16.mxu0 0
  %269 = vmatpush1.bf16.msra.mxu0 0
  %270 = vmatprep.subr.bf16.mxu0 0
  %271 = vmatpush1.bf16.msra.mxu0 0
  %272 = vmatprep.mubr.bf16.mxu0 0
  %273 = vmatmul.mubr.bf16.gmra.mrb[0].mxu0 %v226
  %v274 = vpop.f32.mrb[0].mxu0
  %v275 = vadd.f32 0.0, %v274
  %v276 = vpop.f32.mrb[0].mxu0
  %v277 = vpop.f32.mrb[0].mxu0
  %v278 = vadd.f32 0.0, %v277
  %v279 = vpop.f32.mrb[0].mxu0
  %280 = vmatprep.mubr.bf16.mxu0 0
  %281 = vmatmul.mubr.bf16.gmra.mrb[0].mxu0 %v229
  %v282 = vpop.f32.mrb[0].mxu0
  %v283 = vadd.f32 0.0, %v282
  %v284 = vpop.f32.mrb[0].mxu0
  %v285 = vpop.f32.mrb[0].mxu0
  %v286 = vadd.f32 0.0, %v285
  %v287 = vpop.f32.mrb[0].mxu0
  %288 = vmatprep.mubr.bf16.mxu0 0
  %289 = vmatmul.mubr.bf16.gmra.mrb[0].mxu0 %v232
  %v290 = vpop.f32.mrb[0].mxu0
  %v291 = vadd.f32 0.0, %v290
  %v292 = vpop.f32.mrb[0].mxu0
  %v293 = vpop.f32.mrb[0].mxu0
  %v294 = vadd.f32 0.0, %v293
  %v295 = vpop.f32.mrb[0].mxu0
  %296 = vmatprep.mubr.bf16.mxu0 0
  %297 = vmatmul.mubr.bf16.gmra.mrb[0].mxu0 %v235
  %v298 = vpop.f32.mrb[0].mxu0
  %v299 = vadd.f32 0.0, %v298
  %v300 = vpop.f32.mrb[0].mxu0
  %v301 = vpop.f32.mrb[0].mxu0
  %v302 = vadd.f32 0.0, %v301
  %v303 = vpop.f32.mrb[0].mxu0
  %304 = vdwg.mxu0
  %305 = vst [vmem:[#allocation3] sm:$0xff] %v275
  %306 = vst [vmem:[#allocation3 + $0x8] sm:$0xff] %v278
  %307 = vst [vmem:[#allocation3 + $0x10] sm:$0xff] %v283
  %308 = vst [vmem:[#allocation3 + $0x18] sm:$0xff] %v286
  %309 = vst [vmem:[#allocation3 + $0x20] sm:$0xff] %v291
  %310 = vst [vmem:[#allocation3 + $0x28] sm:$0xff] %v294
  %311 = vst [vmem:[#allocation3 + $0x30] sm:$0xff] %v299
  %312 = vst [vmem:[#allocation3 + $0x38] sm:$0xff] %v302
  %v313 = vld [vmem:[%s4] sm:$0xf]
  %v314 = vld [vmem:[%s4 + $0x4] sm:$0xf]
  %v315 = vld [vmem:[%s4 + $0x8] sm:$0xf]
  %v316 = vld [vmem:[%s4 + $0xc] sm:$0xf]
  %v317 = vld [vmem:[#allocation4] sm:$0xf]
  %v318 = vld [vmem:[#allocation5] sm:$0xff]
  %v319 = vld [vmem:[#allocation2] sm:$0xff]
  %s320 = scalar_lea.vmem [#allocation3], 56
  %v321 = vld [vmem:[%s320] sm:$0xff]
  %v322 = vadd.f32 %v319, %v321
  %v327 = vunpack.c.l.b16 %v313
  %v328 = vunpack.c.l.b16 %v314
  %v329 = vunpack.c.l.b16 %v315
  %v330 = vunpack.c.l.b16 %v316
  %v331 = vpack.c.b16 %v328, %v327
  %v332 = vpack.c.b16 %v330, %v329
  %vm335 = vcmask 261120
  %v337 = vsel %vm335, %v317, 0
  %339 = vmatprep.subr.bf16.mxu0 0
  %340 = vmatpush1.bf16.msra.mxu0 %v331
  %341 = vmatprep.subr.bf16.mxu0 0
  %342 = vmatpush1.bf16.msra.mxu0 %v332
  %343 = vmatprep.subr.bf16.mxu0 0
  %344 = vmatpush1.bf16.msra.mxu0 0
  %345 = vmatprep.subr.bf16.mxu0 0
  %346 = vmatpush1.bf16.msra.mxu0 0
  %347 = vmatprep.subr.bf16.mxu0 0
  %348 = vmatpush1.bf16.msra.mxu0 0
  %349 = vmatprep.subr.bf16.mxu0 0
  %350 = vmatpush1.bf16.msra.mxu0 0
  %351 = vmatprep.subr.bf16.mxu0 0
  %352 = vmatpush1.bf16.msra.mxu0 0
  %353 = vmatprep.subr.bf16.mxu0 0
  %354 = vmatpush1.bf16.msra.mxu0 0
  %355 = vmatprep.subr.bf16.mxu0 0
  %356 = vmatpush1.bf16.msra.mxu0 0
  %357 = vmatprep.subr.bf16.mxu0 0
  %358 = vmatpush1.bf16.msra.mxu0 0
  %359 = vmatprep.subr.bf16.mxu0 0
  %360 = vmatpush1.bf16.msra.mxu0 0
  %361 = vmatprep.subr.bf16.mxu0 0
  %362 = vmatpush1.bf16.msra.mxu0 0
  %363 = vmatprep.subr.bf16.mxu0 0
  %364 = vmatpush1.bf16.msra.mxu0 0
  %365 = vmatprep.subr.bf16.mxu0 0
  %366 = vmatpush1.bf16.msra.mxu0 0
  %367 = vmatprep.subr.bf16.mxu0 0
  %368 = vmatpush1.bf16.msra.mxu0 0
  %369 = vmatprep.subr.bf16.mxu0 0
  %370 = vmatpush1.bf16.msra.mxu0 0
  %371 = vmatprep.mubr.bf16.mxu0 0
  %372 = vmatmul.mubr.bf16.gmra.mrb[0].mxu0 %v337
  %v373 = vpop.f32.mrb[0].mxu0
  %v374 = vadd.f32 0.0, %v373
  %v375 = vpop.f32.mrb[0].mxu0
  %v376 = vpop.f32.mrb[0].mxu0
  %v377 = vpop.f32.mrb[0].mxu0
  %378 = vdwg.mxu0
  %v379 = vadd.f32 %v322, %v374
  %v380 = vxor.u32 %v379, 2147483648
  %v381 = vmul.f32 %v380, 1.442695
  %v382 = vpow.pop %v381
  %v383 = vadd.f32 %v382, 1.0
  %v384 = vrcp.pop %v383
  %v385 = vmul.f32 1.0, %v384
  %v386 = vtanh.pop %v379
  %388 = vrot.lane.b32.xlu0 %v318, 32
  %v389 = vpop.permute.xlu0 %388
  %v391 = vmul.f32 %v385, %v389
  %393 = vrot.lane.b32.xlu0 %v386, 32
  %v394 = vpop.permute.xlu0 %393
  %v396 = vmul.f32 %v385, %v394
  %398 = vrot.lane.b32.xlu0 %v396, 32
  %v399 = vpop.permute.xlu0 %398
  %v401 = vadd.f32 %v391, %v399
  %v402 = vtanh.pop %v401
  %404 = vrot.lane.b32.xlu0 %v402, 32
  %v405 = vpop.permute.xlu0 %404
  %v407 = vmul.f32 %v385, %v405
  %v408 = vpack.c.bf16 %v407, %v407
  %v410 = vunpack.c.l.b16 %v408
  %v411 = vpack.c.b16 %v410, %v410
  %412 = vrot.lane.b32.xlu0 %v411, 64
  %v413 = vpop.permute.xlu0 %412
  %vm415 = vcmask 125952
  %416 = vst.msk [vmem:[%s6] sm:$0xf] %vm415, %v413
  %417 = vrot.lane.b32.xlu0 %v411, 48
  %v418 = vpop.permute.xlu0 %417
  %s420 = scalar_lea.vmem %s58, 28
  %421 = vst.msk [vmem:[%s420] sm:$0xf] %vm415, %v418
  %s422 = scalar_lea.vmem [#allocation2], 8
  %v423 = vld [vmem:[%s422] sm:$0xff]
  %s424 = scalar_lea.vmem [#allocation3], 48
  %v425 = vld [vmem:[%s424] sm:$0xff]
  %v426 = vadd.f32 %v423, %v425
  %427 = vrot.lane.b32.xlu0 %v408, 64
  %v428 = vpop.permute.xlu0 %427
  %v430 = vsel %vm335, %v428, 0
  %432 = vmatprep.subr.bf16.mxu0 0
  %433 = vmatpush1.bf16.msra.mxu0 %v331
  %434 = vmatprep.subr.bf16.mxu0 0
  %435 = vmatpush1.bf16.msra.mxu0 %v332
  %436 = vmatprep.subr.bf16.mxu0 0
  %437 = vmatpush1.bf16.msra.mxu0 0
  %438 = vmatprep.subr.bf16.mxu0 0
  %439 = vmatpush1.bf16.msra.mxu0 0
  %440 = vmatprep.subr.bf16.mxu0 0
  %441 = vmatpush1.bf16.msra.mxu0 0
  %442 = vmatprep.subr.bf16.mxu0 0
  %443 = vmatpush1.bf16.msra.mxu0 0
  %444 = vmatprep.subr.bf16.mxu0 0
  %445 = vmatpush1.bf16.msra.mxu0 0
  %446 = vmatprep.subr.bf16.mxu0 0
  %447 = vmatpush1.bf16.msra.mxu0 0
  %448 = vmatprep.subr.bf16.mxu0 0
  %449 = vmatpush1.bf16.msra.mxu0 0
  %450 = vmatprep.subr.bf16.mxu0 0
  %451 = vmatpush1.bf16.msra.mxu0 0
  %452 = vmatprep.subr.bf16.mxu0 0
  %453 = vmatpush1.bf16.msra.mxu0 0
  %454 = vmatprep.subr.bf16.mxu0 0
  %455 = vmatpush1.bf16.msra.mxu0 0
  %456 = vmatprep.subr.bf16.mxu0 0
  %457 = vmatpush1.bf16.msra.mxu0 0
  %458 = vmatprep.subr.bf16.mxu0 0
  %459 = vmatpush1.bf16.msra.mxu0 0
  %460 = vmatprep.subr.bf16.mxu0 0
  %461 = vmatpush1.bf16.msra.mxu0 0
  %462 = vmatprep.subr.bf16.mxu0 0
  %463 = vmatpush1.bf16.msra.mxu0 0
  %464 = vmatprep.mubr.bf16.mxu0 0
  %465 = vmatmul.mubr.bf16.gmra.mrb[0].mxu0 %v430
  %v466 = vpop.f32.mrb[0].mxu0
  %v467 = vadd.f32 0.0, %v466
  %v468 = vpop.f32.mrb[0].mxu0
  %v469 = vpop.f32.mrb[0].mxu0
  %v470 = vpop.f32.mrb[0].mxu0
  %471 = vdwg.mxu0
  %v472 = vadd.f32 %v426, %v467
  %v473 = vxor.u32 %v472, 2147483648
  %v474 = vmul.f32 %v473, 1.442695
  %v475 = vpow.pop %v474
  %v476 = vadd.f32 %v475, 1.0
  %v477 = vrcp.pop %v476
  %v478 = vmul.f32 1.0, %v477
  %v479 = vtanh.pop %v472
  %v480 = vmul.f32 %v478, %v401
  %482 = vrot.lane.b32.xlu0 %v479, 32
  %v483 = vpop.permute.xlu0 %482
  %v485 = vmul.f32 %v478, %v483
  %487 = vrot.lane.b32.xlu0 %v485, 32
  %v488 = vpop.permute.xlu0 %487
  %v490 = vadd.f32 %v480, %v488
  %v491 = vtanh.pop %v490
  %493 = vrot.lane.b32.xlu0 %v491, 32
  %v494 = vpop.permute.xlu0 %493
  %v496 = vmul.f32 %v478, %v494
  %v497 = vpack.c.bf16 %v496, %v496
  %v499 = vunpack.c.l.b16 %v497
  %v500 = vpack.c.b16 %v499, %v499
  %501 = vrot.lane.b32.xlu0 %v500, 64
  %v502 = vpop.permute.xlu0 %501
  %s504 = scalar_lea.vmem %s6, 4
  %505 = vst.msk [vmem:[%s504] sm:$0xf] %vm415, %v502
  %506 = vrot.lane.b32.xlu0 %v500, 48
  %v507 = vpop.permute.xlu0 %506
  %s509 = scalar_lea.vmem %s58, 24
  %510 = vst.msk [vmem:[%s509] sm:$0xf] %vm415, %v507
  %s511 = scalar_lea.vmem [#allocation2], 16
  %v512 = vld [vmem:[%s511] sm:$0xff]
  %s513 = scalar_lea.vmem [#allocation3], 40
  %v514 = vld [vmem:[%s513] sm:$0xff]
  %v515 = vadd.f32 %v512, %v514
  %516 = vrot.lane.b32.xlu0 %v497, 64
  %v517 = vpop.permute.xlu0 %516
  %v519 = vsel %vm335, %v517, 0
  %521 = vmatprep.subr.bf16.mxu0 0
  %522 = vmatpush1.bf16.msra.mxu0 %v331
  %523 = vmatprep.subr.bf16.mxu0 0
  %524 = vmatpush1.bf16.msra.mxu0 %v332
  %525 = vmatprep.subr.bf16.mxu0 0
  %526 = vmatpush1.bf16.msra.mxu0 0
  %527 = vmatprep.subr.bf16.mxu0 0
  %528 = vmatpush1.bf16.msra.mxu0 0
  %529 = vmatprep.subr.bf16.mxu0 0
  %530 = vmatpush1.bf16.msra.mxu0 0
  %531 = vmatprep.subr.bf16.mxu0 0
  %532 = vmatpush1.bf16.msra.mxu0 0
  %533 = vmatprep.subr.bf16.mxu0 0
  %534 = vmatpush1.bf16.msra.mxu0 0
  %535 = vmatprep.subr.bf16.mxu0 0
  %536 = vmatpush1.bf16.msra.mxu0 0
  %537 = vmatprep.subr.bf16.mxu0 0
  %538 = vmatpush1.bf16.msra.mxu0 0
  %539 = vmatprep.subr.bf16.mxu0 0
  %540 = vmatpush1.bf16.msra.mxu0 0
  %541 = vmatprep.subr.bf16.mxu0 0
  %542 = vmatpush1.bf16.msra.mxu0 0
  %543 = vmatprep.subr.bf16.mxu0 0
  %544 = vmatpush1.bf16.msra.mxu0 0
  %545 = vmatprep.subr.bf16.mxu0 0
  %546 = vmatpush1.bf16.msra.mxu0 0
  %547 = vmatprep.subr.bf16.mxu0 0
  %548 = vmatpush1.bf16.msra.mxu0 0
  %549 = vmatprep.subr.bf16.mxu0 0
  %550 = vmatpush1.bf16.msra.mxu0 0
  %551 = vmatprep.subr.bf16.mxu0 0
  %552 = vmatpush1.bf16.msra.mxu0 0
  %553 = vmatprep.mubr.bf16.mxu0 0
  %554 = vmatmul.mubr.bf16.gmra.mrb[0].mxu0 %v519
  %v555 = vpop.f32.mrb[0].mxu0
  %v556 = vadd.f32 0.0, %v555
  %v557 = vpop.f32.mrb[0].mxu0
  %v558 = vpop.f32.mrb[0].mxu0
  %v559 = vpop.f32.mrb[0].mxu0
  %560 = vdwg.mxu0
  %v561 = vadd.f32 %v515, %v556
  %v562 = vxor.u32 %v561, 2147483648
  %v563 = vmul.f32 %v562, 1.442695
  %v564 = vpow.pop %v563
  %v565 = vadd.f32 %v564, 1.0
  %v566 = vrcp.pop %v565
  %v567 = vmul.f32 1.0, %v566
  %v568 = vtanh.pop %v561
  %v569 = vmul.f32 %v567, %v490
  %571 = vrot.lane.b32.xlu0 %v568, 32
  %v572 = vpop.permute.xlu0 %571
  %v574 = vmul.f32 %v567, %v572
  %576 = vrot.lane.b32.xlu0 %v574, 32
  %v577 = vpop.permute.xlu0 %576
  %v579 = vadd.f32 %v569, %v577
  %v580 = vtanh.pop %v579
  %582 = vrot.lane.b32.xlu0 %v580, 32
  %v583 = vpop.permute.xlu0 %582
  %v585 = vmul.f32 %v567, %v583
  %v586 = vpack.c.bf16 %v585, %v585
  %v588 = vunpack.c.l.b16 %v586
  %v589 = vpack.c.b16 %v588, %v588
  %590 = vrot.lane.b32.xlu0 %v589, 64
  %v591 = vpop.permute.xlu0 %590
  %s593 = scalar_lea.vmem %s6, 8
  %594 = vst.msk [vmem:[%s593] sm:$0xf] %vm415, %v591
  %595 = vrot.lane.b32.xlu0 %v589, 48
  %v596 = vpop.permute.xlu0 %595
  %s598 = scalar_lea.vmem %s58, 20
  %599 = vst.msk [vmem:[%s598] sm:$0xf] %vm415, %v596
  %s600 = scalar_lea.vmem [#allocation2], 24
  %v601 = vld [vmem:[%s600] sm:$0xff]
  %s602 = scalar_lea.vmem [#allocation3], 32
  %v603 = vld [vmem:[%s602] sm:$0xff]
  %v604 = vadd.f32 %v601, %v603
  %605 = vrot.lane.b32.xlu0 %v586, 64
  %v606 = vpop.permute.xlu0 %605
  %v608 = vsel %vm335, %v606, 0
  %610 = vmatprep.subr.bf16.mxu0 0
  %611 = vmatpush1.bf16.msra.mxu0 %v331
  %612 = vmatprep.subr.bf16.mxu0 0
  %613 = vmatpush1.bf16.msra.mxu0 %v332
  %614 = vmatprep.subr.bf16.mxu0 0
  %615 = vmatpush1.bf16.msra.mxu0 0
  %616 = vmatprep.subr.bf16.mxu0 0
  %617 = vmatpush1.bf16.msra.mxu0 0
  %618 = vmatprep.subr.bf16.mxu0 0
  %619 = vmatpush1.bf16.msra.mxu0 0
  %620 = vmatprep.subr.bf16.mxu0 0
  %621 = vmatpush1.bf16.msra.mxu0 0
  %622 = vmatprep.subr.bf16.mxu0 0
  %623 = vmatpush1.bf16.msra.mxu0 0
  %624 = vmatprep.subr.bf16.mxu0 0
  %625 = vmatpush1.bf16.msra.mxu0 0
  %626 = vmatprep.subr.bf16.mxu0 0
  %627 = vmatpush1.bf16.msra.mxu0 0
  %628 = vmatprep.subr.bf16.mxu0 0
  %629 = vmatpush1.bf16.msra.mxu0 0
  %630 = vmatprep.subr.bf16.mxu0 0
  %631 = vmatpush1.bf16.msra.mxu0 0
  %632 = vmatprep.subr.bf16.mxu0 0
  %633 = vmatpush1.bf16.msra.mxu0 0
  %634 = vmatprep.subr.bf16.mxu0 0
  %635 = vmatpush1.bf16.msra.mxu0 0
  %636 = vmatprep.subr.bf16.mxu0 0
  %637 = vmatpush1.bf16.msra.mxu0 0
  %638 = vmatprep.subr.bf16.mxu0 0
  %639 = vmatpush1.bf16.msra.mxu0 0
  %640 = vmatprep.subr.bf16.mxu0 0
  %641 = vmatpush1.bf16.msra.mxu0 0
  %642 = vmatprep.mubr.bf16.mxu0 0
  %643 = vmatmul.mubr.bf16.gmra.mrb[0].mxu0 %v608
  %v644 = vpop.f32.mrb[0].mxu0
  %v645 = vadd.f32 0.0, %v644
  %v646 = vpop.f32.mrb[0].mxu0
  %v647 = vpop.f32.mrb[0].mxu0
  %v648 = vpop.f32.mrb[0].mxu0
  %649 = vdwg.mxu0
  %v650 = vadd.f32 %v604, %v645
  %v651 = vxor.u32 %v650, 2147483648
  %v652 = vmul.f32 %v651, 1.442695
  %v653 = vpow.pop %v652
  %v654 = vadd.f32 %v653, 1.0
  %v655 = vrcp.pop %v654
  %v656 = vmul.f32 1.0, %v655
  %v657 = vtanh.pop %v650
  %v658 = vmul.f32 %v656, %v579
  %660 = vrot.lane.b32.xlu0 %v657, 32
  %v661 = vpop.permute.xlu0 %660
  %v663 = vmul.f32 %v656, %v661
  %665 = vrot.lane.b32.xlu0 %v663, 32
  %v666 = vpop.permute.xlu0 %665
  %v668 = vadd.f32 %v658, %v666
  %v669 = vtanh.pop %v668
  %671 = vrot.lane.b32.xlu0 %v669, 32
  %v672 = vpop.permute.xlu0 %671
  %v674 = vmul.f32 %v656, %v672
  %v675 = vpack.c.bf16 %v674, %v674
  %v677 = vunpack.c.l.b16 %v675
  %v678 = vpack.c.b16 %v677, %v677
  %679 = vrot.lane.b32.xlu0 %v678, 64
  %v680 = vpop.permute.xlu0 %679
  %s682 = scalar_lea.vmem %s6, 12
  %683 = vst.msk [vmem:[%s682] sm:$0xf] %vm415, %v680
  %684 = vrot.lane.b32.xlu0 %v678, 48
  %v685 = vpop.permute.xlu0 %684
  %s687 = scalar_lea.vmem %s58, 16
  %688 = vst.msk [vmem:[%s687] sm:$0xf] %vm415, %v685
  %s689 = scalar_lea.vmem [#allocation2], 32
  %v690 = vld [vmem:[%s689] sm:$0xff]
  %s691 = scalar_lea.vmem [#allocation3], 24
  %v692 = vld [vmem:[%s691] sm:$0xff]
  %v693 = vadd.f32 %v690, %v692
  %694 = vrot.lane.b32.xlu0 %v675, 64
  %v695 = vpop.permute.xlu0 %694
  %v697 = vsel %vm335, %v695, 0
  %699 = vmatprep.subr.bf16.mxu0 0
  %700 = vmatpush1.bf16.msra.mxu0 %v331
  %701 = vmatprep.subr.bf16.mxu0 0
  %702 = vmatpush1.bf16.msra.mxu0 %v332
  %703 = vmatprep.subr.bf16.mxu0 0
  %704 = vmatpush1.bf16.msra.mxu0 0
  %705 = vmatprep.subr.bf16.mxu0 0
  %706 = vmatpush1.bf16.msra.mxu0 0
  %707 = vmatprep.subr.bf16.mxu0 0
  %708 = vmatpush1.bf16.msra.mxu0 0
  %709 = vmatprep.subr.bf16.mxu0 0
  %710 = vmatpush1.bf16.msra.mxu0 0
  %711 = vmatprep.subr.bf16.mxu0 0
  %712 = vmatpush1.bf16.msra.mxu0 0
  %713 = vmatprep.subr.bf16.mxu0 0
  %714 = vmatpush1.bf16.msra.mxu0 0
  %715 = vmatprep.subr.bf16.mxu0 0
  %716 = vmatpush1.bf16.msra.mxu0 0
  %717 = vmatprep.subr.bf16.mxu0 0
  %718 = vmatpush1.bf16.msra.mxu0 0
  %719 = vmatprep.subr.bf16.mxu0 0
  %720 = vmatpush1.bf16.msra.mxu0 0
  %721 = vmatprep.subr.bf16.mxu0 0
  %722 = vmatpush1.bf16.msra.mxu0 0
  %723 = vmatprep.subr.bf16.mxu0 0
  %724 = vmatpush1.bf16.msra.mxu0 0
  %725 = vmatprep.subr.bf16.mxu0 0
  %726 = vmatpush1.bf16.msra.mxu0 0
  %727 = vmatprep.subr.bf16.mxu0 0
  %728 = vmatpush1.bf16.msra.mxu0 0
  %729 = vmatprep.subr.bf16.mxu0 0
  %730 = vmatpush1.bf16.msra.mxu0 0
  %731 = vmatprep.mubr.bf16.mxu0 0
  %732 = vmatmul.mubr.bf16.gmra.mrb[0].mxu0 %v697
  %v733 = vpop.f32.mrb[0].mxu0
  %v734 = vadd.f32 0.0, %v733
  %v735 = vpop.f32.mrb[0].mxu0
  %v736 = vpop.f32.mrb[0].mxu0
  %v737 = vpop.f32.mrb[0].mxu0
  %738 = vdwg.mxu0
  %v739 = vadd.f32 %v693, %v734
  %v740 = vxor.u32 %v739, 2147483648
  %v741 = vmul.f32 %v740, 1.442695
  %v742 = vpow.pop %v741
  %v743 = vadd.f32 %v742, 1.0
  %v744 = vrcp.pop %v743
  %v745 = vmul.f32 1.0, %v744
  %v746 = vtanh.pop %v739
  %v747 = vmul.f32 %v745, %v668
  %749 = vrot.lane.b32.xlu0 %v746, 32
  %v750 = vpop.permute.xlu0 %749
  %v752 = vmul.f32 %v745, %v750
  %754 = vrot.lane.b32.xlu0 %v752, 32
  %v755 = vpop.permute.xlu0 %754
  %v757 = vadd.f32 %v747, %v755
  %v758 = vtanh.pop %v757
  %760 = vrot.lane.b32.xlu0 %v758, 32
  %v761 = vpop.permute.xlu0 %760
  %v763 = vmul.f32 %v745, %v761
  %v764 = vpack.c.bf16 %v763, %v763
  %v766 = vunpack.c.l.b16 %v764
  %v767 = vpack.c.b16 %v766, %v766
  %768 = vrot.lane.b32.xlu0 %v767, 64
  %v769 = vpop.permute.xlu0 %768
  %s771 = scalar_lea.vmem %s6, 16
  %772 = vst.msk [vmem:[%s771] sm:$0xf] %vm415, %v769
  %773 = vrot.lane.b32.xlu0 %v767, 48
  %v774 = vpop.permute.xlu0 %773
  %s776 = scalar_lea.vmem %s58, 12
  %777 = vst.msk [vmem:[%s776] sm:$0xf] %vm415, %v774
  %s778 = scalar_lea.vmem [#allocation2], 40
  %v779 = vld [vmem:[%s778] sm:$0xff]
  %s780 = scalar_lea.vmem [#allocation3], 16
  %v781 = vld [vmem:[%s780] sm:$0xff]
  %v782 = vadd.f32 %v779, %v781
  %783 = vrot.lane.b32.xlu0 %v764, 64
  %v784 = vpop.permute.xlu0 %783
  %v786 = vsel %vm335, %v784, 0
  %788 = vmatprep.subr.bf16.mxu0 0
  %789 = vmatpush1.bf16.msra.mxu0 %v331
  %790 = vmatprep.subr.bf16.mxu0 0
  %791 = vmatpush1.bf16.msra.mxu0 %v332
  %792 = vmatprep.subr.bf16.mxu0 0
  %793 = vmatpush1.bf16.msra.mxu0 0
  %794 = vmatprep.subr.bf16.mxu0 0
  %795 = vmatpush1.bf16.msra.mxu0 0
  %796 = vmatprep.subr.bf16.mxu0 0
  %797 = vmatpush1.bf16.msra.mxu0 0
  %798 = vmatprep.subr.bf16.mxu0 0
  %799 = vmatpush1.bf16.msra.mxu0 0
  %800 = vmatprep.subr.bf16.mxu0 0
  %801 = vmatpush1.bf16.msra.mxu0 0
  %802 = vmatprep.subr.bf16.mxu0 0
  %803 = vmatpush1.bf16.msra.mxu0 0
  %804 = vmatprep.subr.bf16.mxu0 0
  %805 = vmatpush1.bf16.msra.mxu0 0
  %806 = vmatprep.subr.bf16.mxu0 0
  %807 = vmatpush1.bf16.msra.mxu0 0
  %808 = vmatprep.subr.bf16.mxu0 0
  %809 = vmatpush1.bf16.msra.mxu0 0
  %810 = vmatprep.subr.bf16.mxu0 0
  %811 = vmatpush1.bf16.msra.mxu0 0
  %812 = vmatprep.subr.bf16.mxu0 0
  %813 = vmatpush1.bf16.msra.mxu0 0
  %814 = vmatprep.subr.bf16.mxu0 0
  %815 = vmatpush1.bf16.msra.mxu0 0
  %816 = vmatprep.subr.bf16.mxu0 0
  %817 = vmatpush1.bf16.msra.mxu0 0
  %818 = vmatprep.subr.bf16.mxu0 0
  %819 = vmatpush1.bf16.msra.mxu0 0
  %820 = vmatprep.mubr.bf16.mxu0 0
  %821 = vmatmul.mubr.bf16.gmra.mrb[0].mxu0 %v786
  %v822 = vpop.f32.mrb[0].mxu0
  %v823 = vadd.f32 0.0, %v822
  %v824 = vpop.f32.mrb[0].mxu0
  %v825 = vpop.f32.mrb[0].mxu0
  %v826 = vpop.f32.mrb[0].mxu0
  %827 = vdwg.mxu0
  %v828 = vadd.f32 %v782, %v823
  %v829 = vxor.u32 %v828, 2147483648
  %v830 = vmul.f32 %v829, 1.442695
  %v831 = vpow.pop %v830
  %v832 = vadd.f32 %v831, 1.0
  %v833 = vrcp.pop %v832
  %v834 = vmul.f32 1.0, %v833
  %v835 = vtanh.pop %v828
  %v836 = vmul.f32 %v834, %v757
  %838 = vrot.lane.b32.xlu0 %v835, 32
  %v839 = vpop.permute.xlu0 %838
  %v841 = vmul.f32 %v834, %v839
  %843 = vrot.lane.b32.xlu0 %v841, 32
  %v844 = vpop.permute.xlu0 %843
  %v846 = vadd.f32 %v836, %v844
  %v847 = vtanh.pop %v846
  %849 = vrot.lane.b32.xlu0 %v847, 32
  %v850 = vpop.permute.xlu0 %849
  %v852 = vmul.f32 %v834, %v850
  %v853 = vpack.c.bf16 %v852, %v852
  %v855 = vunpack.c.l.b16 %v853
  %v856 = vpack.c.b16 %v855, %v855
  %857 = vrot.lane.b32.xlu0 %v856, 64
  %v858 = vpop.permute.xlu0 %857
  %s860 = scalar_lea.vmem %s6, 20
  %861 = vst.msk [vmem:[%s860] sm:$0xf] %vm415, %v858
  %862 = vrot.lane.b32.xlu0 %v856, 48
  %v863 = vpop.permute.xlu0 %862
  %s865 = scalar_lea.vmem %s58, 8
  %866 = vst.msk [vmem:[%s865] sm:$0xf] %vm415, %v863
  %s867 = scalar_lea.vmem [#allocation2], 48
  %v868 = vld [vmem:[%s867] sm:$0xff]
  %s869 = scalar_lea.vmem [#allocation3], 8
  %v870 = vld [vmem:[%s869] sm:$0xff]
  %v871 = vadd.f32 %v868, %v870
  %872 = vrot.lane.b32.xlu0 %v853, 64
  %v873 = vpop.permute.xlu0 %872
  %v875 = vsel %vm335, %v873, 0
  %877 = vmatprep.subr.bf16.mxu0 0
  %878 = vmatpush1.bf16.msra.mxu0 %v331
  %879 = vmatprep.subr.bf16.mxu0 0
  %880 = vmatpush1.bf16.msra.mxu0 %v332
  %881 = vmatprep.subr.bf16.mxu0 0
  %882 = vmatpush1.bf16.msra.mxu0 0
  %883 = vmatprep.subr.bf16.mxu0 0
  %884 = vmatpush1.bf16.msra.mxu0 0
  %885 = vmatprep.subr.bf16.mxu0 0
  %886 = vmatpush1.bf16.msra.mxu0 0
  %887 = vmatprep.subr.bf16.mxu0 0
  %888 = vmatpush1.bf16.msra.mxu0 0
  %889 = vmatprep.subr.bf16.mxu0 0
  %890 = vmatpush1.bf16.msra.mxu0 0
  %891 = vmatprep.subr.bf16.mxu0 0
  %892 = vmatpush1.bf16.msra.mxu0 0
  %893 = vmatprep.subr.bf16.mxu0 0
  %894 = vmatpush1.bf16.msra.mxu0 0
  %895 = vmatprep.subr.bf16.mxu0 0
  %896 = vmatpush1.bf16.msra.mxu0 0
  %897 = vmatprep.subr.bf16.mxu0 0
  %898 = vmatpush1.bf16.msra.mxu0 0
  %899 = vmatprep.subr.bf16.mxu0 0
  %900 = vmatpush1.bf16.msra.mxu0 0
  %901 = vmatprep.subr.bf16.mxu0 0
  %902 = vmatpush1.bf16.msra.mxu0 0
  %903 = vmatprep.subr.bf16.mxu0 0
  %904 = vmatpush1.bf16.msra.mxu0 0
  %905 = vmatprep.subr.bf16.mxu0 0
  %906 = vmatpush1.bf16.msra.mxu0 0
  %907 = vmatprep.subr.bf16.mxu0 0
  %908 = vmatpush1.bf16.msra.mxu0 0
  %909 = vmatprep.mubr.bf16.mxu0 0
  %910 = vmatmul.mubr.bf16.gmra.mrb[0].mxu0 %v875
  %v911 = vpop.f32.mrb[0].mxu0
  %v912 = vadd.f32 0.0, %v911
  %v913 = vpop.f32.mrb[0].mxu0
  %v914 = vpop.f32.mrb[0].mxu0
  %v915 = vpop.f32.mrb[0].mxu0
  %916 = vdwg.mxu0
  %v917 = vadd.f32 %v871, %v912
  %v918 = vxor.u32 %v917, 2147483648
  %v919 = vmul.f32 %v918, 1.442695
  %v920 = vpow.pop %v919
  %v921 = vadd.f32 %v920, 1.0
  %v922 = vrcp.pop %v921
  %v923 = vmul.f32 1.0, %v922
  %v924 = vtanh.pop %v917
  %v925 = vmul.f32 %v923, %v846
  %927 = vrot.lane.b32.xlu0 %v924, 32
  %v928 = vpop.permute.xlu0 %927
  %v930 = vmul.f32 %v923, %v928
  %932 = vrot.lane.b32.xlu0 %v930, 32
  %v933 = vpop.permute.xlu0 %932
  %v935 = vadd.f32 %v925, %v933
  %v936 = vtanh.pop %v935
  %938 = vrot.lane.b32.xlu0 %v936, 32
  %v939 = vpop.permute.xlu0 %938
  %v941 = vmul.f32 %v923, %v939
  %v942 = vpack.c.bf16 %v941, %v941
  %v944 = vunpack.c.l.b16 %v942
  %v945 = vpack.c.b16 %v944, %v944
  %946 = vrot.lane.b32.xlu0 %v945, 64
  %v947 = vpop.permute.xlu0 %946
  %s949 = scalar_lea.vmem %s6, 24
  %950 = vst.msk [vmem:[%s949] sm:$0xf] %vm415, %v947
  %951 = vrot.lane.b32.xlu0 %v945, 48
  %v952 = vpop.permute.xlu0 %951
  %s954 = scalar_lea.vmem %s58, 4
  %955 = vst.msk [vmem:[%s954] sm:$0xf] %vm415, %v952
  %s956 = scalar_lea.vmem [#allocation2], 56
  %v957 = vld [vmem:[%s956] sm:$0xff]
  %v958 = vld [vmem:[#allocation3] sm:$0xff]
  %v959 = vadd.f32 %v957, %v958
  %960 = vrot.lane.b32.xlu0 %v942, 64
  %v961 = vpop.permute.xlu0 %960
  %v963 = vsel %vm335, %v961, 0
  %965 = vmatprep.subr.bf16.mxu0 0
  %966 = vmatpush1.bf16.msra.mxu0 %v331
  %967 = vmatprep.subr.bf16.mxu0 0
  %968 = vmatpush1.bf16.msra.mxu0 %v332
  %969 = vmatprep.subr.bf16.mxu0 0
  %970 = vmatpush1.bf16.msra.mxu0 0
  %971 = vmatprep.subr.bf16.mxu0 0
  %972 = vmatpush1.bf16.msra.mxu0 0
  %973 = vmatprep.subr.bf16.mxu0 0
  %974 = vmatpush1.bf16.msra.mxu0 0
  %975 = vmatprep.subr.bf16.mxu0 0
  %976 = vmatpush1.bf16.msra.mxu0 0
  %977 = vmatprep.subr.bf16.mxu0 0
  %978 = vmatpush1.bf16.msra.mxu0 0
  %979 = vmatprep.subr.bf16.mxu0 0
  %980 = vmatpush1.bf16.msra.mxu0 0
  %981 = vmatprep.subr.bf16.mxu0 0
  %982 = vmatpush1.bf16.msra.mxu0 0
  %983 = vmatprep.subr.bf16.mxu0 0
  %984 = vmatpush1.bf16.msra.mxu0 0
  %985 = vmatprep.subr.bf16.mxu0 0
  %986 = vmatpush1.bf16.msra.mxu0 0
  %987 = vmatprep.subr.bf16.mxu0 0
  %988 = vmatpush1.bf16.msra.mxu0 0
  %989 = vmatprep.subr.bf16.mxu0 0
  %990 = vmatpush1.bf16.msra.mxu0 0
  %991 = vmatprep.subr.bf16.mxu0 0
  %992 = vmatpush1.bf16.msra.mxu0 0
  %993 = vmatprep.subr.bf16.mxu0 0
  %994 = vmatpush1.bf16.msra.mxu0 0
  %995 = vmatprep.subr.bf16.mxu0 0
  %996 = vmatpush1.bf16.msra.mxu0 0
  %997 = vmatprep.mubr.bf16.mxu0 0
  %998 = vmatmul.mubr.bf16.gmra.mrb[0].mxu0 %v963
  %v999 = vpop.f32.mrb[0].mxu0
  %v1000 = vadd.f32 0.0, %v999
  %v1001 = vpop.f32.mrb[0].mxu0
  %v1002 = vpop.f32.mrb[0].mxu0
  %v1003 = vpop.f32.mrb[0].mxu0
  %1004 = vdwg.mxu0
  %v1005 = vadd.f32 %v959, %v1000
  %v1006 = vxor.u32 %v1005, 2147483648
  %v1007 = vmul.f32 %v1006, 1.442695
  %v1008 = vpow.pop %v1007
  %v1009 = vadd.f32 %v1008, 1.0
  %v1010 = vrcp.pop %v1009
  %v1011 = vmul.f32 1.0, %v1010
  %v1012 = vtanh.pop %v1005
  %v1013 = vmul.f32 %v1011, %v935
  %1015 = vrot.lane.b32.xlu0 %v1012, 32
  %v1016 = vpop.permute.xlu0 %1015
  %v1018 = vmul.f32 %v1011, %v1016
  %1020 = vrot.lane.b32.xlu0 %v1018, 32
  %v1021 = vpop.permute.xlu0 %1020
  %v1023 = vadd.f32 %v1013, %v1021
  %v1024 = vtanh.pop %v1023
  %1026 = vrot.lane.b32.xlu0 %v1024, 32
  %v1027 = vpop.permute.xlu0 %1026
  %v1029 = vmul.f32 %v1011, %v1027
  %v1030 = vpack.c.bf16 %v1029, %v1029
  %v1032 = vunpack.c.l.b16 %v1030
  %v1033 = vpack.c.b16 %v1032, %v1032
  %1034 = vrot.lane.b32.xlu0 %v1033, 64
  %v1035 = vpop.permute.xlu0 %1034
  %s1037 = scalar_lea.vmem %s6, 28
  %1038 = vst.msk [vmem:[%s1037] sm:$0xf] %vm415, %v1035
  %1039 = vrot.lane.b32.xlu0 %v1033, 48
  %v1040 = vpop.permute.xlu0 %1039
  %1042 = vst.msk [vmem:[%s58] sm:$0xf] %vm415, %v1040
  %vm1043 = vcmask 257024
  %1044 = vst.msk [vmem:[#allocation4] sm:$0xf] %vm1043, %v1035
  %1046 = vrot.lane.b32.xlu0 %v1023, 96
  %v1047 = vpop.permute.xlu0 %1046
  %1049 = vst.msk [vmem:[#allocation5] sm:$0xff] %vm335, %v1047
  %s1050 = ssub.s32 0, 0
  %s1051 = smul.u32 8, %s1050
  %p1052 = scmp.lt.s32.totalorder %s1051, 7
  %s1053 = scalar_select %p1052, %s1051, 7
  %s1054 = smul.addr %s1053, 4
  %s1055 = scalar_lea.vmem %s7, %s1054
  // Predicated region
  $region30: #{rnn_forward.3} parent=0 // pred_check
    _
  $region31: #{rnn_forward.3} parent=0 // pred_check_branch
    %1057 = sbr.rel (0) target = $region33
  $region32: #{rnn_forward.3} parent=0 // pred_region
    _
  $region33: #{rnn_forward.3} parent=0 // pred_fallthru
    _
  // Predicated region
  $region34: #{rnn_forward.3} parent=0 // pred_check
    _
  $region35: #{rnn_forward.3} parent=0 // pred_check_branch
    %1059 = sbr.rel (0) target = $region37
  $region36: #{rnn_forward.3} parent=0 // pred_region
    %s1060 = ssub.s32 0, 0
    %s1061 = smul.u32 8, %s1060
  $region37: #{rnn_forward.3} parent=0 // pred_fallthru
    _
  // Predicated region
  $region38: #{rnn_forward.3} parent=0 // pred_check
    _
  $region39: #{rnn_forward.3} parent=0 // pred_check_branch
    %1063 = sbr.rel (0) target = $region41
  $region40: #{rnn_forward.3} parent=0 // pred_region
    _
  $region41: #{rnn_forward.3} parent=0 // pred_fallthru
    _
  // Predicated region
  $region42: #{rnn_forward.3} parent=0 // pred_check
    _
  $region43: #{rnn_forward.3} parent=0 // pred_check_branch
    %1065 = sbr.rel (0) target = $region45
  $region44: #{rnn_forward.3} parent=0 // pred_region
    %s1066 = ssub.s32 0, 0
    %s1067 = smul.u32 8, %s1066
    %p1068 = scmp.lt.s32.totalorder %s1067, 7
    %s1069 = scalar_select %p1068, %s1067, 7
    %s1070 = smul.addr %s1069, 4
    %s1071 = scalar_lea.vmem %s7, %s1070
  $region45: #{rnn_forward.3} parent=0 // pred_fallthru
    _

// kernel: rnn_forward.4
$region0: #{rnn_forward.4}
  #allocation0 [shape = 'u32[]', space=smem, size = 0x4, offset = 0x4, fixed_abs, tag = 'smem constant byte address 0x4 - core index']
  #allocation1 [shape = 'u32[144,128]{1,0:T(1,128)}', space=vmem, size = 0x12000, scoped, tag = 'internal scratch']
  #allocation2 [shape = 'f32[8,8,128]{2,1,0:T(8,128)}', space=vmem, size = 0x8000, scoped, tag = 'scratch operand']
  #allocation3 [shape = 'f32[8,8,128]{2,1,0:T(8,128)}', space=vmem, size = 0x8000, scoped, tag = 'scratch operand']
  #allocation4 [shape = 'bf16[8,32]{1,0:T(8,128)(2,1)}', space=vmem, size = 0x800, scoped, tag = 'scratch operand']
  #allocation5 [shape = 'f32[8,32]{1,0:T(8,128)}', space=vmem, size = 0x1000, scoped, tag = 'scratch operand']
  %s0 = inlined_call_operand.vmem [shape: bf16[8,8,16], index: 0, kind: input, shape index: {}, may-alias: {0,2}]
  %s1 = inlined_call_operand.vmem [shape: bf16[8,8,16], index: 1, kind: input, shape index: {}, may-alias: {1,3}]
  %s2 = inlined_call_operand.vmem [shape: bf16[8,8,16], index: 2, kind: input, shape index: {}, may-alias: {0,2}]
  %s3 = inlined_call_operand.vmem [shape: bf16[8,8,16], index: 3, kind: input, shape index: {}, may-alias: {1,3}]
  %s4 = inlined_call_operand.vmem [shape: bf16[2,16,128], index: 4, kind: input, shape index: {}]
  %s5 = inlined_call_operand.vmem [shape: bf16[2,16,128], index: 5, kind: input, shape index: {}]
  %s6 = inlined_call_operand.vmem [shape: bf16[32,128], index: 6, kind: input, shape index: {}]
  %s7 = inlined_call_operand.vmem [shape: f32[1,128], index: 7, kind: input, shape index: {}]
  %s8 = inlined_call_operand.vmem [shape: bf16[8,8,16], index: 8, kind: output, shape index: {0}]
  %s9 = inlined_call_operand.vmem [shape: bf16[8,8,16], index: 9, kind: output, shape index: {1}]
  %10 = xla_tuple %s8, %s9
  %s11 = sld [smem:[#allocation0]]
  $region54: #{rnn_forward.4} parent=0
    _
  %s13 = ssub.s32 1, %s11
  %s14 = scalar_select 0, %s13, %s11
  // Predicated region
  $region2: #{rnn_forward.4} parent=0 // pred_check
    _
  $region3: #{rnn_forward.4} parent=0 // pred_check_branch
    %16 = sbr.rel (0) target = $region5
  $region4: #{rnn_forward.4} parent=0 // pred_region
    _
  $region5: #{rnn_forward.4} parent=0 // pred_fallthru
    _
  // Predicated region
  $region6: #{rnn_forward.4} parent=0 // pred_check
    _
  $region7: #{rnn_forward.4} parent=0 // pred_check_branch
    %18 = sbr.rel (0) target = $region9
  $region8: #{rnn_forward.4} parent=0 // pred_region
    _
  $region9: #{rnn_forward.4} parent=0 // pred_fallthru
    _
  // Predicated region
  $region10: #{rnn_forward.4} parent=0 // pred_check
    _
  $region11: #{rnn_forward.4} parent=0 // pred_check_branch
    %20 = sbr.rel (0) target = $region13
  $region12: #{rnn_forward.4} parent=0 // pred_region
    %s21 = ssub.s32 0, 0
    %s22 = smul.u32 8, %s21
    %p23 = scmp.lt.s32.totalorder %s22, 7
    %s24 = scalar_select %p23, %s22, 7
    %s25 = smul.addr %s24, 4
    %s26 = scalar_lea.vmem %s2, %s25
    %s27 = ssub.s32 0, 0
    %s28 = smul.u32 8, %s27
  $region13: #{rnn_forward.4} parent=0 // pred_fallthru
    _
  // Predicated region
  $region14: #{rnn_forward.4} parent=0 // pred_check
    _
  $region15: #{rnn_forward.4} parent=0 // pred_check_branch
    %30 = sbr.rel (0) target = $region17
  $region16: #{rnn_forward.4} parent=0 // pred_region
    %s31 = ssub.s32 0, 0
    %s32 = smul.u32 8, %s31
    %p33 = scmp.lt.s32.totalorder %s32, 7
    %s34 = scalar_select %p33, %s32, 7
    %s35 = smul.addr %s34, 4
    %s36 = scalar_lea.vmem %s3, %s35
    %s37 = ssub.s32 0, 0
    %s38 = smul.u32 8, %s37
  $region17: #{rnn_forward.4} parent=0 // pred_fallthru
    _
  // Predicated region
  $region18: #{rnn_forward.4} parent=0 // pred_check
    _
  $region19: #{rnn_forward.4} parent=0 // pred_check_branch
    %40 = sbr.rel (0) target = $region21
  $region20: #{rnn_forward.4} parent=0 // pred_region
    _
  $region21: #{rnn_forward.4} parent=0 // pred_fallthru
    _
  // Predicated region
  $region22: #{rnn_forward.4} parent=0 // pred_check
    _
  $region23: #{rnn_forward.4} parent=0 // pred_check_branch
    %42 = sbr.rel (0) target = $region25
  $region24: #{rnn_forward.4} parent=0 // pred_region
    _
  $region25: #{rnn_forward.4} parent=0 // pred_fallthru
    _
  // Predicated region
  $region26: #{rnn_forward.4} parent=0 // pred_check
    _
  $region27: #{rnn_forward.4} parent=0 // pred_check_branch
    %44 = sbr.rel (0) target = $region29
  $region28: #{rnn_forward.4} parent=0 // pred_region
    _
  $region29: #{rnn_forward.4} parent=0 // pred_fallthru
    _
  // Predicated region
  $region30: #{rnn_forward.4} parent=0 // pred_check
    _
  $region31: #{rnn_forward.4} parent=0 // pred_check_branch
    %46 = sbr.rel (0) target = $region33
  $region32: #{rnn_forward.4} parent=0 // pred_region
    _
  $region33: #{rnn_forward.4} parent=0 // pred_fallthru
    _
  %s47 = ssub.s32 0, 0
  %s48 = smul.u32 8, %s47
  %p49 = scmp.lt.s32.totalorder %s48, 7
  %s50 = scalar_select %p49, %s48, 7
  %s51 = smul.addr %s50, 4
  %s52 = scalar_lea.vmem %s2, %s51
  %s53 = ssub.s32 0, 0
  %s54 = smul.u32 8, %s53
  %p55 = scmp.lt.s32.totalorder %s54, 7
  %s56 = scalar_select %p55, %s54, 7
  %s57 = smul.addr %s56, 4
  %s58 = scalar_lea.vmem %s3, %s57
  %s59 = ssub.s32 0, 0
  %s60 = smul.u32 8, %s59
  %p61 = scmp.lt.s32.totalorder %s60, 7
  %s62 = scalar_select %p61, %s60, 7
  %s63 = smul.addr %s62, 4
  %s64 = scalar_lea.vmem %s9, %s63
  %s65 = ssub.s32 0, 0
  %s66 = smul.u32 8, %s65
  %p67 = scmp.lt.s32.totalorder %s66, 7
  %s68 = scalar_select %p67, %s66, 7
  %s69 = smul.addr %s68, 4
  %s70 = scalar_lea.vmem %s2, %s69
  %s71 = ssub.s32 0, 0
  %s72 = smul.u32 8, %s71
  %s73 = ssub.s32 0, 0
  %s74 = smul.u32 8, %s73
  %p75 = scmp.lt.s32.totalorder %s74, 7
  %s76 = scalar_select %p75, %s74, 7
  %s77 = smul.addr %s76, 4
  %s78 = scalar_lea.vmem %s3, %s77
  %s79 = ssub.s32 0, 0
  %s80 = smul.u32 8, %s79
  %s81 = ssub.s32 0, 0
  %s82 = smul.u32 8, %s81
  %p83 = scmp.lt.s32.totalorder %s82, 7
  %s84 = scalar_select %p83, %s82, 7
  %s85 = smul.addr %s84, 4
  %s86 = scalar_lea.vmem %s9, %s85
  %s87 = ssub.s32 0, 0
  %s88 = smul.u32 8, %s87
  %p90 = scmp.eq.s32.totalorder 0, 0
  // Predicated region
  $region34: #{rnn_forward.4} parent=0 // pred_check
    %p91 = pneg %p90
  $region35: #{rnn_forward.4} parent=0 // pred_check_branch
    %93 = sbr.rel (%p91) target = $region37
  $region36: #{rnn_forward.4} parent=0 // pred_region
    %vm94 = vcmask 257024
    %95 = vst.msk [vmem:[#allocation4] sm:$0xf] %vm94, 0
    %vm96 = vcmask 261120
    %97 = vst.msk [vmem:[#allocation5] sm:$0xff] %vm96, 0.0
  $region37: #{rnn_forward.4} parent=0 // pred_fallthru
    _
  %v98 = vld [vmem:[%s0] sm:$0xf]
  %v99 = vld [vmem:[%s0 + $0x4] sm:$0xf]
  %v100 = vld [vmem:[%s0 + $0x8] sm:$0xf]
  %v101 = vld [vmem:[%s0 + $0xc] sm:$0xf]
  %v102 = vld [vmem:[%s0 + $0x10] sm:$0xf]
  %v103 = vld [vmem:[%s0 + $0x14] sm:$0xf]
  %v104 = vld [vmem:[%s0 + $0x18] sm:$0xf]
  %v105 = vld [vmem:[%s0 + $0x1c] sm:$0xf]
  %v106 = vld [vmem:[%s4] sm:$0xf]
  %v107 = vld [vmem:[%s4 + $0x4] sm:$0xf]
  %v108 = vld [vmem:[%s1] sm:$0xf]
  %v109 = vld [vmem:[%s1 + $0x4] sm:$0xf]
  %v110 = vld [vmem:[%s1 + $0x8] sm:$0xf]
  %v111 = vld [vmem:[%s1 + $0xc] sm:$0xf]
  %v112 = vld [vmem:[%s1 + $0x10] sm:$0xf]
  %v113 = vld [vmem:[%s1 + $0x14] sm:$0xf]
  %v114 = vld [vmem:[%s1 + $0x18] sm:$0xf]
  %v115 = vld [vmem:[%s1 + $0x1c] sm:$0xf]
  %s116 = scalar_lea.vmem %s4, 8
  %v117 = vld [vmem:[%s116] sm:$0xf]
  %v118 = vld [vmem:[%s116 + $0x4] sm:$0xf]
  %v127 = vunpack.c.l.b16 %v108
  %v128 = vunpack.c.l.b16 %v109
  %v129 = vunpack.c.l.b16 %v110
  %v130 = vunpack.c.l.b16 %v111
  %v131 = vunpack.c.l.b16 %v112
  %v132 = vunpack.c.l.b16 %v113
  %v133 = vunpack.c.l.b16 %v114
  %v134 = vunpack.c.l.b16 %v115
  %v135 = vpack.c.b16 %v128, %v127
  %v136 = vpack.c.b16 %v130, %v129
  %v137 = vpack.c.b16 %v132, %v131
  %v138 = vpack.c.b16 %v134, %v133
  %v141 = vunpack.c.l.b16 %v117
  %v142 = vunpack.c.l.b16 %v118
  %v143 = vpack.c.b16 %v142, %v141
  %vm145 = vcmask 130048
  %v147 = vsel %vm145, %v135, 0
  %v150 = vsel %vm145, %v136, 0
  %v153 = vsel %vm145, %v137, 0
  %v156 = vsel %vm145, %v138, 0
  %158 = vmatprep.subr.bf16.mxu0 0
  %159 = vmatpush1.bf16.msra.mxu0 %v143
  %160 = vmatprep.subr.bf16.mxu0 0
  %161 = vmatpush1.bf16.msra.mxu0 0
  %162 = vmatprep.subr.bf16.mxu0 0
  %163 = vmatpush1.bf16.msra.mxu0 0
  %164 = vmatprep.subr.bf16.mxu0 0
  %165 = vmatpush1.bf16.msra.mxu0 0
  %166 = vmatprep.subr.bf16.mxu0 0
  %167 = vmatpush1.bf16.msra.mxu0 0
  %168 = vmatprep.subr.bf16.mxu0 0
  %169 = vmatpush1.bf16.msra.mxu0 0
  %170 = vmatprep.subr.bf16.mxu0 0
  %171 = vmatpush1.bf16.msra.mxu0 0
  %172 = vmatprep.subr.bf16.mxu0 0
  %173 = vmatpush1.bf16.msra.mxu0 0
  %174 = vmatprep.subr.bf16.mxu0 0
  %175 = vmatpush1.bf16.msra.mxu0 0
  %176 = vmatprep.subr.bf16.mxu0 0
  %177 = vmatpush1.bf16.msra.mxu0 0
  %178 = vmatprep.subr.bf16.mxu0 0
  %179 = vmatpush1.bf16.msra.mxu0 0
  %180 = vmatprep.subr.bf16.mxu0 0
  %181 = vmatpush1.bf16.msra.mxu0 0
  %182 = vmatprep.subr.bf16.mxu0 0
  %183 = vmatpush1.bf16.msra.mxu0 0
  %184 = vmatprep.subr.bf16.mxu0 0
  %185 = vmatpush1.bf16.msra.mxu0 0
  %186 = vmatprep.subr.bf16.mxu0 0
  %187 = vmatpush1.bf16.msra.mxu0 0
  %188 = vmatprep.subr.bf16.mxu0 0
  %189 = vmatpush1.bf16.msra.mxu0 0
  %190 = vmatprep.mubr.bf16.mxu0 0
  %191 = vmatmul.mubr.bf16.gmra.mrb[0].mxu0 %v147
  %v192 = vpop.f32.mrb[0].mxu0
  %v193 = vadd.f32 0.0, %v192
  %v194 = vpop.f32.mrb[0].mxu0
  %v195 = vpop.f32.mrb[0].mxu0
  %v196 = vadd.f32 0.0, %v195
  %v197 = vpop.f32.mrb[0].mxu0
  %198 = vmatprep.mubr.bf16.mxu0 0
  %199 = vmatmul.mubr.bf16.gmra.mrb[0].mxu0 %v150
  %v200 = vpop.f32.mrb[0].mxu0
  %v201 = vadd.f32 0.0, %v200
  %v202 = vpop.f32.mrb[0].mxu0
  %v203 = vpop.f32.mrb[0].mxu0
  %v204 = vadd.f32 0.0, %v203
  %v205 = vpop.f32.mrb[0].mxu0
  %206 = vmatprep.mubr.bf16.mxu0 0
  %207 = vmatmul.mubr.bf16.gmra.mrb[0].mxu0 %v153
  %v208 = vpop.f32.mrb[0].mxu0
  %v209 = vadd.f32 0.0, %v208
  %v210 = vpop.f32.mrb[0].mxu0
  %v211 = vpop.f32.mrb[0].mxu0
  %v212 = vadd.f32 0.0, %v211
  %v213 = vpop.f32.mrb[0].mxu0
  %214 = vmatprep.mubr.bf16.mxu0 0
  %215 = vmatmul.mubr.bf16.gmra.mrb[0].mxu0 %v156
  %v216 = vpop.f32.mrb[0].mxu0
  %v217 = vadd.f32 0.0, %v216
  %v218 = vpop.f32.mrb[0].mxu0
  %v219 = vpop.f32.mrb[0].mxu0
  %v220 = vadd.f32 0.0, %v219
  %v221 = vpop.f32.mrb[0].mxu0
  %222 = vdwg.mxu0
  %v231 = vunpack.c.l.b16 %v98
  %v232 = vunpack.c.l.b16 %v99
  %v233 = vunpack.c.l.b16 %v100
  %v234 = vunpack.c.l.b16 %v101
  %v235 = vunpack.c.l.b16 %v102
  %v236 = vunpack.c.l.b16 %v103
  %v237 = vunpack.c.l.b16 %v104
  %v238 = vunpack.c.l.b16 %v105
  %v239 = vpack.c.b16 %v232, %v231
  %v240 = vpack.c.b16 %v234, %v233
  %v241 = vpack.c.b16 %v236, %v235
  %v242 = vpack.c.b16 %v238, %v237
  %v245 = vunpack.c.l.b16 %v106
  %v246 = vunpack.c.l.b16 %v107
  %v247 = vpack.c.b16 %v246, %v245
  %v250 = vsel %vm145, %v239, 0
  %v253 = vsel %vm145, %v240, 0
  %v256 = vsel %vm145, %v241, 0
  %v259 = vsel %vm145, %v242, 0
  %261 = vmatprep.subr.bf16.mxu0 0
  %262 = vmatpush1.bf16.msra.mxu0 %v247
  %263 = vmatprep.subr.bf16.mxu0 0
  %264 = vmatpush1.bf16.msra.mxu0 0
  %265 = vmatprep.subr.bf16.mxu0 0
  %266 = vmatpush1.bf16.msra.mxu0 0
  %267 = vmatprep.subr.bf16.mxu0 0
  %268 = vmatpush1.bf16.msra.mxu0 0
  %269 = vmatprep.subr.bf16.mxu0 0
  %270 = vmatpush1.bf16.msra.mxu0 0
  %271 = vmatprep.subr.bf16.mxu0 0
  %272 = vmatpush1.bf16.msra.mxu0 0
  %273 = vmatprep.subr.bf16.mxu0 0
  %274 = vmatpush1.bf16.msra.mxu0 0
  %275 = vmatprep.subr.bf16.mxu0 0
  %276 = vmatpush1.bf16.msra.mxu0 0
  %277 = vmatprep.subr.bf16.mxu0 0
  %278 = vmatpush1.bf16.msra.mxu0 0
  %279 = vmatprep.subr.bf16.mxu0 0
  %280 = vmatpush1.bf16.msra.mxu0 0
  %281 = vmatprep.subr.bf16.mxu0 0
  %282 = vmatpush1.bf16.msra.mxu0 0
  %283 = vmatprep.subr.bf16.mxu0 0
  %284 = vmatpush1.bf16.msra.mxu0 0
  %285 = vmatprep.subr.bf16.mxu0 0
  %286 = vmatpush1.bf16.msra.mxu0 0
  %287 = vmatprep.subr.bf16.mxu0 0
  %288 = vmatpush1.bf16.msra.mxu0 0
  %289 = vmatprep.subr.bf16.mxu0 0
  %290 = vmatpush1.bf16.msra.mxu0 0
  %291 = vmatprep.subr.bf16.mxu0 0
  %292 = vmatpush1.bf16.msra.mxu0 0
  %293 = vmatprep.mubr.bf16.mxu0 0
  %294 = vmatmul.mubr.bf16.gmra.mrb[0].mxu0 %v250
  %v295 = vpop.f32.mrb[0].mxu0
  %v296 = vadd.f32 %v193, %v295
  %v297 = vpop.f32.mrb[0].mxu0
  %v298 = vpop.f32.mrb[0].mxu0
  %v299 = vadd.f32 %v196, %v298
  %v300 = vpop.f32.mrb[0].mxu0
  %301 = vmatprep.mubr.bf16.mxu0 0
  %302 = vmatmul.mubr.bf16.gmra.mrb[0].mxu0 %v253
  %v303 = vpop.f32.mrb[0].mxu0
  %v304 = vadd.f32 %v201, %v303
  %v305 = vpop.f32.mrb[0].mxu0
  %v306 = vpop.f32.mrb[0].mxu0
  %v307 = vadd.f32 %v204, %v306
  %v308 = vpop.f32.mrb[0].mxu0
  %309 = vmatprep.mubr.bf16.mxu0 0
  %310 = vmatmul.mubr.bf16.gmra.mrb[0].mxu0 %v256
  %v311 = vpop.f32.mrb[0].mxu0
  %v312 = vadd.f32 %v209, %v311
  %v313 = vpop.f32.mrb[0].mxu0
  %v314 = vpop.f32.mrb[0].mxu0
  %v315 = vadd.f32 %v212, %v314
  %v316 = vpop.f32.mrb[0].mxu0
  %317 = vmatprep.mubr.bf16.mxu0 0
  %318 = vmatmul.mubr.bf16.gmra.mrb[0].mxu0 %v259
  %v319 = vpop.f32.mrb[0].mxu0
  %v320 = vadd.f32 %v217, %v319
  %v321 = vpop.f32.mrb[0].mxu0
  %v322 = vpop.f32.mrb[0].mxu0
  %v323 = vadd.f32 %v220, %v322
  %v324 = vpop.f32.mrb[0].mxu0
  %325 = vdwg.mxu0
  %v326 = vld [vmem:[%s7] sm:$0x1]
  %v328 = vlaneseq
  %v329 = vshrl.u32 %v328, 7
  %v330 = vsub.s32 0, %v329
  %v331 = vrot.slane %v326, %v330
  %v333 = vadd.f32 %v296, %v331
  %v334 = vadd.f32 %v299, %v331
  %v335 = vadd.f32 %v304, %v331
  %v336 = vadd.f32 %v307, %v331
  %v337 = vadd.f32 %v312, %v331
  %v338 = vadd.f32 %v315, %v331
  %v339 = vadd.f32 %v320, %v331
  %v340 = vadd.f32 %v323, %v331
  %341 = vst [vmem:[#allocation2] sm:$0xff] %v333
  %342 = vst [vmem:[#allocation2 + $0x8] sm:$0xff] %v334
  %343 = vst [vmem:[#allocation2 + $0x10] sm:$0xff] %v335
  %344 = vst [vmem:[#allocation2 + $0x18] sm:$0xff] %v336
  %345 = vst [vmem:[#allocation2 + $0x20] sm:$0xff] %v337
  %346 = vst [vmem:[#allocation2 + $0x28] sm:$0xff] %v338
  %347 = vst [vmem:[#allocation2 + $0x30] sm:$0xff] %v339
  %348 = vst [vmem:[#allocation2 + $0x38] sm:$0xff] %v340
  %v349 = vld [vmem:[%s70] sm:$0xf]
  %v350 = vld [vmem:[%s70 + $0x4] sm:$0xf]
  %v351 = vld [vmem:[%s70 + $0x8] sm:$0xf]
  %v352 = vld [vmem:[%s70 + $0xc] sm:$0xf]
  %v353 = vld [vmem:[%s70 + $0x10] sm:$0xf]
  %v354 = vld [vmem:[%s70 + $0x14] sm:$0xf]
  %v355 = vld [vmem:[%s70 + $0x18] sm:$0xf]
  %v356 = vld [vmem:[%s70 + $0x1c] sm:$0xf]
  %v357 = vld [vmem:[%s5] sm:$0xf]
  %v358 = vld [vmem:[%s5 + $0x4] sm:$0xf]
  %v359 = vld [vmem:[%s78] sm:$0xf]
  %v360 = vld [vmem:[%s78 + $0x4] sm:$0xf]
  %v361 = vld [vmem:[%s78 + $0x8] sm:$0xf]
  %v362 = vld [vmem:[%s78 + $0xc] sm:$0xf]
  %v363 = vld [vmem:[%s78 + $0x10] sm:$0xf]
  %v364 = vld [vmem:[%s78 + $0x14] sm:$0xf]
  %v365 = vld [vmem:[%s78 + $0x18] sm:$0xf]
  %v366 = vld [vmem:[%s78 + $0x1c] sm:$0xf]
  %s367 = scalar_lea.vmem %s5, 8
  %v368 = vld [vmem:[%s367] sm:$0xf]
  %v369 = vld [vmem:[%s367 + $0x4] sm:$0xf]
  %v378 = vunpack.c.l.b16 %v359
  %v379 = vunpack.c.l.b16 %v360
  %v380 = vunpack.c.l.b16 %v361
  %v381 = vunpack.c.l.b16 %v362
  %v382 = vunpack.c.l.b16 %v363
  %v383 = vunpack.c.l.b16 %v364
  %v384 = vunpack.c.l.b16 %v365
  %v385 = vunpack.c.l.b16 %v366
  %v386 = vpack.c.b16 %v379, %v378
  %v387 = vpack.c.b16 %v381, %v380
  %v388 = vpack.c.b16 %v383, %v382
  %v389 = vpack.c.b16 %v385, %v384
  %v392 = vunpack.c.l.b16 %v368
  %v393 = vunpack.c.l.b16 %v369
  %v394 = vpack.c.b16 %v393, %v392
  %v397 = vsel %vm145, %v386, 0
  %v400 = vsel %vm145, %v387, 0
  %v403 = vsel %vm145, %v388, 0
  %v406 = vsel %vm145, %v389, 0
  %408 = vmatprep.subr.bf16.mxu0 0
  %409 = vmatpush1.bf16.msra.mxu0 %v394
  %410 = vmatprep.subr.bf16.mxu0 0
  %411 = vmatpush1.bf16.msra.mxu0 0
  %412 = vmatprep.subr.bf16.mxu0 0
  %413 = vmatpush1.bf16.msra.mxu0 0
  %414 = vmatprep.subr.bf16.mxu0 0
  %415 = vmatpush1.bf16.msra.mxu0 0
  %416 = vmatprep.subr.bf16.mxu0 0
  %417 = vmatpush1.bf16.msra.mxu0 0
  %418 = vmatprep.subr.bf16.mxu0 0
  %419 = vmatpush1.bf16.msra.mxu0 0
  %420 = vmatprep.subr.bf16.mxu0 0
  %421 = vmatpush1.bf16.msra.mxu0 0
  %422 = vmatprep.subr.bf16.mxu0 0
  %423 = vmatpush1.bf16.msra.mxu0 0
  %424 = vmatprep.subr.bf16.mxu0 0
  %425 = vmatpush1.bf16.msra.mxu0 0
  %426 = vmatprep.subr.bf16.mxu0 0
  %427 = vmatpush1.bf16.msra.mxu0 0
  %428 = vmatprep.subr.bf16.mxu0 0
  %429 = vmatpush1.bf16.msra.mxu0 0
  %430 = vmatprep.subr.bf16.mxu0 0
  %431 = vmatpush1.bf16.msra.mxu0 0
  %432 = vmatprep.subr.bf16.mxu0 0
  %433 = vmatpush1.bf16.msra.mxu0 0
  %434 = vmatprep.subr.bf16.mxu0 0
  %435 = vmatpush1.bf16.msra.mxu0 0
  %436 = vmatprep.subr.bf16.mxu0 0
  %437 = vmatpush1.bf16.msra.mxu0 0
  %438 = vmatprep.subr.bf16.mxu0 0
  %439 = vmatpush1.bf16.msra.mxu0 0
  %440 = vmatprep.mubr.bf16.mxu0 0
  %441 = vmatmul.mubr.bf16.gmra.mrb[0].mxu0 %v397
  %v442 = vpop.f32.mrb[0].mxu0
  %v443 = vadd.f32 0.0, %v442
  %v444 = vpop.f32.mrb[0].mxu0
  %v445 = vpop.f32.mrb[0].mxu0
  %v446 = vadd.f32 0.0, %v445
  %v447 = vpop.f32.mrb[0].mxu0
  %448 = vmatprep.mubr.bf16.mxu0 0
  %449 = vmatmul.mubr.bf16.gmra.mrb[0].mxu0 %v400
  %v450 = vpop.f32.mrb[0].mxu0
  %v451 = vadd.f32 0.0, %v450
  %v452 = vpop.f32.mrb[0].mxu0
  %v453 = vpop.f32.mrb[0].mxu0
  %v454 = vadd.f32 0.0, %v453
  %v455 = vpop.f32.mrb[0].mxu0
  %456 = vmatprep.mubr.bf16.mxu0 0
  %457 = vmatmul.mubr.bf16.gmra.mrb[0].mxu0 %v403
  %v458 = vpop.f32.mrb[0].mxu0
  %v459 = vadd.f32 0.0, %v458
  %v460 = vpop.f32.mrb[0].mxu0
  %v461 = vpop.f32.mrb[0].mxu0
  %v462 = vadd.f32 0.0, %v461
  %v463 = vpop.f32.mrb[0].mxu0
  %464 = vmatprep.mubr.bf16.mxu0 0
  %465 = vmatmul.mubr.bf16.gmra.mrb[0].mxu0 %v406
  %v466 = vpop.f32.mrb[0].mxu0
  %v467 = vadd.f32 0.0, %v466
  %v468 = vpop.f32.mrb[0].mxu0
  %v469 = vpop.f32.mrb[0].mxu0
  %v470 = vadd.f32 0.0, %v469
  %v471 = vpop.f32.mrb[0].mxu0
  %472 = vdwg.mxu0
  %v481 = vunpack.c.l.b16 %v349
  %v482 = vunpack.c.l.b16 %v350
  %v483 = vunpack.c.l.b16 %v351
  %v484 = vunpack.c.l.b16 %v352
  %v485 = vunpack.c.l.b16 %v353
  %v486 = vunpack.c.l.b16 %v354
  %v487 = vunpack.c.l.b16 %v355
  %v488 = vunpack.c.l.b16 %v356
  %v489 = vpack.c.b16 %v482, %v481
  %v490 = vpack.c.b16 %v484, %v483
  %v491 = vpack.c.b16 %v486, %v485
  %v492 = vpack.c.b16 %v488, %v487
  %v495 = vunpack.c.l.b16 %v357
  %v496 = vunpack.c.l.b16 %v358
  %v497 = vpack.c.b16 %v496, %v495
  %v500 = vsel %vm145, %v489, 0
  %v503 = vsel %vm145, %v490, 0
  %v506 = vsel %vm145, %v491, 0
  %v509 = vsel %vm145, %v492, 0
  %511 = vmatprep.subr.bf16.mxu0 0
  %512 = vmatpush1.bf16.msra.mxu0 %v497
  %513 = vmatprep.subr.bf16.mxu0 0
  %514 = vmatpush1.bf16.msra.mxu0 0
  %515 = vmatprep.subr.bf16.mxu0 0
  %516 = vmatpush1.bf16.msra.mxu0 0
  %517 = vmatprep.subr.bf16.mxu0 0
  %518 = vmatpush1.bf16.msra.mxu0 0
  %519 = vmatprep.subr.bf16.mxu0 0
  %520 = vmatpush1.bf16.msra.mxu0 0
  %521 = vmatprep.subr.bf16.mxu0 0
  %522 = vmatpush1.bf16.msra.mxu0 0
  %523 = vmatprep.subr.bf16.mxu0 0
  %524 = vmatpush1.bf16.msra.mxu0 0
  %525 = vmatprep.subr.bf16.mxu0 0
  %526 = vmatpush1.bf16.msra.mxu0 0
  %527 = vmatprep.subr.bf16.mxu0 0
  %528 = vmatpush1.bf16.msra.mxu0 0
  %529 = vmatprep.subr.bf16.mxu0 0
  %530 = vmatpush1.bf16.msra.mxu0 0
  %531 = vmatprep.subr.bf16.mxu0 0
  %532 = vmatpush1.bf16.msra.mxu0 0
  %533 = vmatprep.subr.bf16.mxu0 0
  %534 = vmatpush1.bf16.msra.mxu0 0
  %535 = vmatprep.subr.bf16.mxu0 0
  %536 = vmatpush1.bf16.msra.mxu0 0
  %537 = vmatprep.subr.bf16.mxu0 0
  %538 = vmatpush1.bf16.msra.mxu0 0
  %539 = vmatprep.subr.bf16.mxu0 0
  %540 = vmatpush1.bf16.msra.mxu0 0
  %541 = vmatprep.subr.bf16.mxu0 0
  %542 = vmatpush1.bf16.msra.mxu0 0
  %543 = vmatprep.mubr.bf16.mxu0 0
  %544 = vmatmul.mubr.bf16.gmra.mrb[0].mxu0 %v500
  %v545 = vpop.f32.mrb[0].mxu0
  %v546 = vadd.f32 %v443, %v545
  %v547 = vpop.f32.mrb[0].mxu0
  %v548 = vpop.f32.mrb[0].mxu0
  %v549 = vadd.f32 %v446, %v548
  %v550 = vpop.f32.mrb[0].mxu0
  %551 = vmatprep.mubr.bf16.mxu0 0
  %552 = vmatmul.mubr.bf16.gmra.mrb[0].mxu0 %v503
  %v553 = vpop.f32.mrb[0].mxu0
  %v554 = vadd.f32 %v451, %v553
  %v555 = vpop.f32.mrb[0].mxu0
  %v556 = vpop.f32.mrb[0].mxu0
  %v557 = vadd.f32 %v454, %v556
  %v558 = vpop.f32.mrb[0].mxu0
  %559 = vmatprep.mubr.bf16.mxu0 0
  %560 = vmatmul.mubr.bf16.gmra.mrb[0].mxu0 %v506
  %v561 = vpop.f32.mrb[0].mxu0
  %v562 = vadd.f32 %v459, %v561
  %v563 = vpop.f32.mrb[0].mxu0
  %v564 = vpop.f32.mrb[0].mxu0
  %v565 = vadd.f32 %v462, %v564
  %v566 = vpop.f32.mrb[0].mxu0
  %567 = vmatprep.mubr.bf16.mxu0 0
  %568 = vmatmul.mubr.bf16.gmra.mrb[0].mxu0 %v509
  %v569 = vpop.f32.mrb[0].mxu0
  %v570 = vadd.f32 %v467, %v569
  %v571 = vpop.f32.mrb[0].mxu0
  %v572 = vpop.f32.mrb[0].mxu0
  %v573 = vadd.f32 %v470, %v572
  %v574 = vpop.f32.mrb[0].mxu0
  %575 = vdwg.mxu0
  %576 = vst [vmem:[#allocation3] sm:$0xff] %v546
  %577 = vst [vmem:[#allocation3 + $0x8] sm:$0xff] %v549
  %578 = vst [vmem:[#allocation3 + $0x10] sm:$0xff] %v554
  %579 = vst [vmem:[#allocation3 + $0x18] sm:$0xff] %v557
  %580 = vst [vmem:[#allocation3 + $0x20] sm:$0xff] %v562
  %581 = vst [vmem:[#allocation3 + $0x28] sm:$0xff] %v565
  %582 = vst [vmem:[#allocation3 + $0x30] sm:$0xff] %v570
  %583 = vst [vmem:[#allocation3 + $0x38] sm:$0xff] %v573
  %v584 = vld [vmem:[%s6] sm:$0xf]
  %v585 = vld [vmem:[%s6 + $0x4] sm:$0xf]
  %v586 = vld [vmem:[%s6 + $0x8] sm:$0xf]
  %v587 = vld [vmem:[%s6 + $0xc] sm:$0xf]
  %v588 = vld [vmem:[#allocation4] sm:$0xf]
  %v589 = vld [vmem:[#allocation5] sm:$0xff]
  %v590 = vld [vmem:[#allocation2] sm:$0xff]
  %s591 = scalar_lea.vmem [#allocation3], 56
  %v592 = vld [vmem:[%s591] sm:$0xff]
  %v593 = vadd.f32 %v590, %v592
  %v598 = vunpack.c.l.b16 %v584
  %v599 = vunpack.c.l.b16 %v585
  %v600 = vunpack.c.l.b16 %v586
  %v601 = vunpack.c.l.b16 %v587
  %v602 = vpack.c.b16 %v599, %v598
  %v603 = vpack.c.b16 %v601, %v600
  %vm606 = vcmask 261120
  %v608 = vsel %vm606, %v588, 0
  %610 = vmatprep.subr.bf16.mxu0 0
  %611 = vmatpush1.bf16.msra.mxu0 %v602
  %612 = vmatprep.subr.bf16.mxu0 0
  %613 = vmatpush1.bf16.msra.mxu0 %v603
  %614 = vmatprep.subr.bf16.mxu0 0
  %615 = vmatpush1.bf16.msra.mxu0 0
  %616 = vmatprep.subr.bf16.mxu0 0
  %617 = vmatpush1.bf16.msra.mxu0 0
  %618 = vmatprep.subr.bf16.mxu0 0
  %619 = vmatpush1.bf16.msra.mxu0 0
  %620 = vmatprep.subr.bf16.mxu0 0
  %621 = vmatpush1.bf16.msra.mxu0 0
  %622 = vmatprep.subr.bf16.mxu0 0
  %623 = vmatpush1.bf16.msra.mxu0 0
  %624 = vmatprep.subr.bf16.mxu0 0
  %625 = vmatpush1.bf16.msra.mxu0 0
  %626 = vmatprep.subr.bf16.mxu0 0
  %627 = vmatpush1.bf16.msra.mxu0 0
  %628 = vmatprep.subr.bf16.mxu0 0
  %629 = vmatpush1.bf16.msra.mxu0 0
  %630 = vmatprep.subr.bf16.mxu0 0
  %631 = vmatpush1.bf16.msra.mxu0 0
  %632 = vmatprep.subr.bf16.mxu0 0
  %633 = vmatpush1.bf16.msra.mxu0 0
  %634 = vmatprep.subr.bf16.mxu0 0
  %635 = vmatpush1.bf16.msra.mxu0 0
  %636 = vmatprep.subr.bf16.mxu0 0
  %637 = vmatpush1.bf16.msra.mxu0 0
  %638 = vmatprep.subr.bf16.mxu0 0
  %639 = vmatpush1.bf16.msra.mxu0 0
  %640 = vmatprep.subr.bf16.mxu0 0
  %641 = vmatpush1.bf16.msra.mxu0 0
  %642 = vmatprep.mubr.bf16.mxu0 0
  %643 = vmatmul.mubr.bf16.gmra.mrb[0].mxu0 %v608
  %v644 = vpop.f32.mrb[0].mxu0
  %v645 = vadd.f32 0.0, %v644
  %v646 = vpop.f32.mrb[0].mxu0
  %v647 = vpop.f32.mrb[0].mxu0
  %v648 = vpop.f32.mrb[0].mxu0
  %649 = vdwg.mxu0
  %v650 = vadd.f32 %v593, %v645
  %v651 = vxor.u32 %v650, 2147483648
  %v652 = vmul.f32 %v651, 1.442695
  %v653 = vpow.pop %v652
  %v654 = vadd.f32 %v653, 1.0
  %v655 = vrcp.pop %v654
  %v656 = vmul.f32 1.0, %v655
  %v657 = vtanh.pop %v650
  %659 = vrot.lane.b32.xlu0 %v589, 32
  %v660 = vpop.permute.xlu0 %659
  %v662 = vmul.f32 %v656, %v660
  %664 = vrot.lane.b32.xlu0 %v657, 32
  %v665 = vpop.permute.xlu0 %664
  %v667 = vmul.f32 %v656, %v665
  %669 = vrot.lane.b32.xlu0 %v667, 32
  %v670 = vpop.permute.xlu0 %669
  %v672 = vadd.f32 %v662, %v670
  %v673 = vtanh.pop %v672
  %675 = vrot.lane.b32.xlu0 %v673, 32
  %v676 = vpop.permute.xlu0 %675
  %v678 = vmul.f32 %v656, %v676
  %v679 = vpack.c.bf16 %v678, %v678
  %v681 = vunpack.c.l.b16 %v679
  %v682 = vpack.c.b16 %v681, %v681
  %683 = vrot.lane.b32.xlu0 %v682, 64
  %v684 = vpop.permute.xlu0 %683
  %vm686 = vcmask 125952
  %687 = vst.msk [vmem:[%s8] sm:$0xf] %vm686, %v684
  %688 = vrot.lane.b32.xlu0 %v682, 48
  %v689 = vpop.permute.xlu0 %688
  %s691 = scalar_lea.vmem %s86, 28
  %692 = vst.msk [vmem:[%s691] sm:$0xf] %vm686, %v689
  %s693 = scalar_lea.vmem [#allocation2], 8
  %v694 = vld [vmem:[%s693] sm:$0xff]
  %s695 = scalar_lea.vmem [#allocation3], 48
  %v696 = vld [vmem:[%s695] sm:$0xff]
  %v697 = vadd.f32 %v694, %v696
  %698 = vrot.lane.b32.xlu0 %v679, 64
  %v699 = vpop.permute.xlu0 %698
  %v701 = vsel %vm606, %v699, 0
  %703 = vmatprep.subr.bf16.mxu0 0
  %704 = vmatpush1.bf16.msra.mxu0 %v602
  %705 = vmatprep.subr.bf16.mxu0 0
  %706 = vmatpush1.bf16.msra.mxu0 %v603
  %707 = vmatprep.subr.bf16.mxu0 0
  %708 = vmatpush1.bf16.msra.mxu0 0
  %709 = vmatprep.subr.bf16.mxu0 0
  %710 = vmatpush1.bf16.msra.mxu0 0
  %711 = vmatprep.subr.bf16.mxu0 0
  %712 = vmatpush1.bf16.msra.mxu0 0
  %713 = vmatprep.subr.bf16.mxu0 0
  %714 = vmatpush1.bf16.msra.mxu0 0
  %715 = vmatprep.subr.bf16.mxu0 0
  %716 = vmatpush1.bf16.msra.mxu0 0
  %717 = vmatprep.subr.bf16.mxu0 0
  %718 = vmatpush1.bf16.msra.mxu0 0
  %719 = vmatprep.subr.bf16.mxu0 0
  %720 = vmatpush1.bf16.msra.mxu0 0
  %721 = vmatprep.subr.bf16.mxu0 0
  %722 = vmatpush1.bf16.msra.mxu0 0
  %723 = vmatprep.subr.bf16.mxu0 0
  %724 = vmatpush1.bf16.msra.mxu0 0
  %725 = vmatprep.subr.bf16.mxu0 0
  %726 = vmatpush1.bf16.msra.mxu0 0
  %727 = vmatprep.subr.bf16.mxu0 0
  %728 = vmatpush1.bf16.msra.mxu0 0
  %729 = vmatprep.subr.bf16.mxu0 0
  %730 = vmatpush1.bf16.msra.mxu0 0
  %731 = vmatprep.subr.bf16.mxu0 0
  %732 = vmatpush1.bf16.msra.mxu0 0
  %733 = vmatprep.subr.bf16.mxu0 0
  %734 = vmatpush1.bf16.msra.mxu0 0
  %735 = vmatprep.mubr.bf16.mxu0 0
  %736 = vmatmul.mubr.bf16.gmra.mrb[0].mxu0 %v701
  %v737 = vpop.f32.mrb[0].mxu0
  %v738 = vadd.f32 0.0, %v737
  %v739 = vpop.f32.mrb[0].mxu0
  %v740 = vpop.f32.mrb[0].mxu0
  %v741 = vpop.f32.mrb[0].mxu0
  %742 = vdwg.mxu0
  %v743 = vadd.f32 %v697, %v738
  %v744 = vxor.u32 %v743, 2147483648
  %v745 = vmul.f32 %v744, 1.442695
  %v746 = vpow.pop %v745
  %v747 = vadd.f32 %v746, 1.0
  %v748 = vrcp.pop %v747
  %v749 = vmul.f32 1.0, %v748
  %v750 = vtanh.pop %v743
  %v751 = vmul.f32 %v749, %v672
  %753 = vrot.lane.b32.xlu0 %v750, 32
  %v754 = vpop.permute.xlu0 %753
  %v756 = vmul.f32 %v749, %v754
  %758 = vrot.lane.b32.xlu0 %v756, 32
  %v759 = vpop.permute.xlu0 %758
  %v761 = vadd.f32 %v751, %v759
  %v762 = vtanh.pop %v761
  %764 = vrot.lane.b32.xlu0 %v762, 32
  %v765 = vpop.permute.xlu0 %764
  %v767 = vmul.f32 %v749, %v765
  %v768 = vpack.c.bf16 %v767, %v767
  %v770 = vunpack.c.l.b16 %v768
  %v771 = vpack.c.b16 %v770, %v770
  %772 = vrot.lane.b32.xlu0 %v771, 64
  %v773 = vpop.permute.xlu0 %772
  %s775 = scalar_lea.vmem %s8, 4
  %776 = vst.msk [vmem:[%s775] sm:$0xf] %vm686, %v773
  %777 = vrot.lane.b32.xlu0 %v771, 48
  %v778 = vpop.permute.xlu0 %777
  %s780 = scalar_lea.vmem %s86, 24
  %781 = vst.msk [vmem:[%s780] sm:$0xf] %vm686, %v778
  %s782 = scalar_lea.vmem [#allocation2], 16
  %v783 = vld [vmem:[%s782] sm:$0xff]
  %s784 = scalar_lea.vmem [#allocation3], 40
  %v785 = vld [vmem:[%s784] sm:$0xff]
  %v786 = vadd.f32 %v783, %v785
  %787 = vrot.lane.b32.xlu0 %v768, 64
  %v788 = vpop.permute.xlu0 %787
  %v790 = vsel %vm606, %v788, 0
  %792 = vmatprep.subr.bf16.mxu0 0
  %793 = vmatpush1.bf16.msra.mxu0 %v602
  %794 = vmatprep.subr.bf16.mxu0 0
  %795 = vmatpush1.bf16.msra.mxu0 %v603
  %796 = vmatprep.subr.bf16.mxu0 0
  %797 = vmatpush1.bf16.msra.mxu0 0
  %798 = vmatprep.subr.bf16.mxu0 0
  %799 = vmatpush1.bf16.msra.mxu0 0
  %800 = vmatprep.subr.bf16.mxu0 0
  %801 = vmatpush1.bf16.msra.mxu0 0
  %802 = vmatprep.subr.bf16.mxu0 0
  %803 = vmatpush1.bf16.msra.mxu0 0
  %804 = vmatprep.subr.bf16.mxu0 0
  %805 = vmatpush1.bf16.msra.mxu0 0
  %806 = vmatprep.subr.bf16.mxu0 0
  %807 = vmatpush1.bf16.msra.mxu0 0
  %808 = vmatprep.subr.bf16.mxu0 0
  %809 = vmatpush1.bf16.msra.mxu0 0
  %810 = vmatprep.subr.bf16.mxu0 0
  %811 = vmatpush1.bf16.msra.mxu0 0
  %812 = vmatprep.subr.bf16.mxu0 0
  %813 = vmatpush1.bf16.msra.mxu0 0
  %814 = vmatprep.subr.bf16.mxu0 0
  %815 = vmatpush1.bf16.msra.mxu0 0
  %816 = vmatprep.subr.bf16.mxu0 0
  %817 = vmatpush1.bf16.msra.mxu0 0
  %818 = vmatprep.subr.bf16.mxu0 0
  %819 = vmatpush1.bf16.msra.mxu0 0
  %820 = vmatprep.subr.bf16.mxu0 0
  %821 = vmatpush1.bf16.msra.mxu0 0
  %822 = vmatprep.subr.bf16.mxu0 0
  %823 = vmatpush1.bf16.msra.mxu0 0
  %824 = vmatprep.mubr.bf16.mxu0 0
  %825 = vmatmul.mubr.bf16.gmra.mrb[0].mxu0 %v790
  %v826 = vpop.f32.mrb[0].mxu0
  %v827 = vadd.f32 0.0, %v826
  %v828 = vpop.f32.mrb[0].mxu0
  %v829 = vpop.f32.mrb[0].mxu0
  %v830 = vpop.f32.mrb[0].mxu0
  %831 = vdwg.mxu0
  %v832 = vadd.f32 %v786, %v827
  %v833 = vxor.u32 %v832, 2147483648
  %v834 = vmul.f32 %v833, 1.442695
  %v835 = vpow.pop %v834
  %v836 = vadd.f32 %v835, 1.0
  %v837 = vrcp.pop %v836
  %v838 = vmul.f32 1.0, %v837
  %v839 = vtanh.pop %v832
  %v840 = vmul.f32 %v838, %v761
  %842 = vrot.lane.b32.xlu0 %v839, 32
  %v843 = vpop.permute.xlu0 %842
  %v845 = vmul.f32 %v838, %v843
  %847 = vrot.lane.b32.xlu0 %v845, 32
  %v848 = vpop.permute.xlu0 %847
  %v850 = vadd.f32 %v840, %v848
  %v851 = vtanh.pop %v850
  %853 = vrot.lane.b32.xlu0 %v851, 32
  %v854 = vpop.permute.xlu0 %853
  %v856 = vmul.f32 %v838, %v854
  %v857 = vpack.c.bf16 %v856, %v856
  %v859 = vunpack.c.l.b16 %v857
  %v860 = vpack.c.b16 %v859, %v859
  %861 = vrot.lane.b32.xlu0 %v860, 64
  %v862 = vpop.permute.xlu0 %861
  %s864 = scalar_lea.vmem %s8, 8
  %865 = vst.msk [vmem:[%s864] sm:$0xf] %vm686, %v862
  %866 = vrot.lane.b32.xlu0 %v860, 48
  %v867 = vpop.permute.xlu0 %866
  %s869 = scalar_lea.vmem %s86, 20
  %870 = vst.msk [vmem:[%s869] sm:$0xf] %vm686, %v867
  %s871 = scalar_lea.vmem [#allocation2], 24
  %v872 = vld [vmem:[%s871] sm:$0xff]
  %s873 = scalar_lea.vmem [#allocation3], 32
  %v874 = vld [vmem:[%s873] sm:$0xff]
  %v875 = vadd.f32 %v872, %v874
  %876 = vrot.lane.b32.xlu0 %v857, 64
  %v877 = vpop.permute.xlu0 %876
  %v879 = vsel %vm606, %v877, 0
  %881 = vmatprep.subr.bf16.mxu0 0
  %882 = vmatpush1.bf16.msra.mxu0 %v602
  %883 = vmatprep.subr.bf16.mxu0 0
  %884 = vmatpush1.bf16.msra.mxu0 %v603
  %885 = vmatprep.subr.bf16.mxu0 0
  %886 = vmatpush1.bf16.msra.mxu0 0
  %887 = vmatprep.subr.bf16.mxu0 0
  %888 = vmatpush1.bf16.msra.mxu0 0
  %889 = vmatprep.subr.bf16.mxu0 0
  %890 = vmatpush1.bf16.msra.mxu0 0
  %891 = vmatprep.subr.bf16.mxu0 0
  %892 = vmatpush1.bf16.msra.mxu0 0
  %893 = vmatprep.subr.bf16.mxu0 0
  %894 = vmatpush1.bf16.msra.mxu0 0
  %895 = vmatprep.subr.bf16.mxu0 0
  %896 = vmatpush1.bf16.msra.mxu0 0
  %897 = vmatprep.subr.bf16.mxu0 0
  %898 = vmatpush1.bf16.msra.mxu0 0
  %899 = vmatprep.subr.bf16.mxu0 0
  %900 = vmatpush1.bf16.msra.mxu0 0
  %901 = vmatprep.subr.bf16.mxu0 0
  %902 = vmatpush1.bf16.msra.mxu0 0
  %903 = vmatprep.subr.bf16.mxu0 0
  %904 = vmatpush1.bf16.msra.mxu0 0
  %905 = vmatprep.subr.bf16.mxu0 0
  %906 = vmatpush1.bf16.msra.mxu0 0
  %907 = vmatprep.subr.bf16.mxu0 0
  %908 = vmatpush1.bf16.msra.mxu0 0
  %909 = vmatprep.subr.bf16.mxu0 0
  %910 = vmatpush1.bf16.msra.mxu0 0
  %911 = vmatprep.subr.bf16.mxu0 0
  %912 = vmatpush1.bf16.msra.mxu0 0
  %913 = vmatprep.mubr.bf16.mxu0 0
  %914 = vmatmul.mubr.bf16.gmra.mrb[0].mxu0 %v879
  %v915 = vpop.f32.mrb[0].mxu0
  %v916 = vadd.f32 0.0, %v915
  %v917 = vpop.f32.mrb[0].mxu0
  %v918 = vpop.f32.mrb[0].mxu0
  %v919 = vpop.f32.mrb[0].mxu0
  %920 = vdwg.mxu0
  %v921 = vadd.f32 %v875, %v916
  %v922 = vxor.u32 %v921, 2147483648
  %v923 = vmul.f32 %v922, 1.442695
  %v924 = vpow.pop %v923
  %v925 = vadd.f32 %v924, 1.0
  %v926 = vrcp.pop %v925
  %v927 = vmul.f32 1.0, %v926
  %v928 = vtanh.pop %v921
  %v929 = vmul.f32 %v927, %v850
  %931 = vrot.lane.b32.xlu0 %v928, 32
  %v932 = vpop.permute.xlu0 %931
  %v934 = vmul.f32 %v927, %v932
  %936 = vrot.lane.b32.xlu0 %v934, 32
  %v937 = vpop.permute.xlu0 %936
  %v939 = vadd.f32 %v929, %v937
  %v940 = vtanh.pop %v939
  %942 = vrot.lane.b32.xlu0 %v940, 32
  %v943 = vpop.permute.xlu0 %942
  %v945 = vmul.f32 %v927, %v943
  %v946 = vpack.c.bf16 %v945, %v945
  %v948 = vunpack.c.l.b16 %v946
  %v949 = vpack.c.b16 %v948, %v948
  %950 = vrot.lane.b32.xlu0 %v949, 64
  %v951 = vpop.permute.xlu0 %950
  %s953 = scalar_lea.vmem %s8, 12
  %954 = vst.msk [vmem:[%s953] sm:$0xf] %vm686, %v951
  %955 = vrot.lane.b32.xlu0 %v949, 48
  %v956 = vpop.permute.xlu0 %955
  %s958 = scalar_lea.vmem %s86, 16
  %959 = vst.msk [vmem:[%s958] sm:$0xf] %vm686, %v956
  %s960 = scalar_lea.vmem [#allocation2], 32
  %v961 = vld [vmem:[%s960] sm:$0xff]
  %s962 = scalar_lea.vmem [#allocation3], 24
  %v963 = vld [vmem:[%s962] sm:$0xff]
  %v964 = vadd.f32 %v961, %v963
  %965 = vrot.lane.b32.xlu0 %v946, 64
  %v966 = vpop.permute.xlu0 %965
  %v968 = vsel %vm606, %v966, 0
  %970 = vmatprep.subr.bf16.mxu0 0
  %971 = vmatpush1.bf16.msra.mxu0 %v602
  %972 = vmatprep.subr.bf16.mxu0 0
  %973 = vmatpush1.bf16.msra.mxu0 %v603
  %974 = vmatprep.subr.bf16.mxu0 0
  %975 = vmatpush1.bf16.msra.mxu0 0
  %976 = vmatprep.subr.bf16.mxu0 0
  %977 = vmatpush1.bf16.msra.mxu0 0
  %978 = vmatprep.subr.bf16.mxu0 0
  %979 = vmatpush1.bf16.msra.mxu0 0
  %980 = vmatprep.subr.bf16.mxu0 0
  %981 = vmatpush1.bf16.msra.mxu0 0
  %982 = vmatprep.subr.bf16.mxu0 0
  %983 = vmatpush1.bf16.msra.mxu0 0
  %984 = vmatprep.subr.bf16.mxu0 0
  %985 = vmatpush1.bf16.msra.mxu0 0
  %986 = vmatprep.subr.bf16.mxu0 0
  %987 = vmatpush1.bf16.msra.mxu0 0
  %988 = vmatprep.subr.bf16.mxu0 0
  %989 = vmatpush1.bf16.msra.mxu0 0
  %990 = vmatprep.subr.bf16.mxu0 0
  %991 = vmatpush1.bf16.msra.mxu0 0
  %992 = vmatprep.subr.bf16.mxu0 0
  %993 = vmatpush1.bf16.msra.mxu0 0
  %994 = vmatprep.subr.bf16.mxu0 0
  %995 = vmatpush1.bf16.msra.mxu0 0
  %996 = vmatprep.subr.bf16.mxu0 0
  %997 = vmatpush1.bf16.msra.mxu0 0
  %998 = vmatprep.subr.bf16.mxu0 0
  %999 = vmatpush1.bf16.msra.mxu0 0
  %1000 = vmatprep.subr.bf16.mxu0 0
  %1001 = vmatpush1.bf16.msra.mxu0 0
  %1002 = vmatprep.mubr.bf16.mxu0 0
  %1003 = vmatmul.mubr.bf16.gmra.mrb[0].mxu0 %v968
  %v1004 = vpop.f32.mrb[0].mxu0
  %v1005 = vadd.f32 0.0, %v1004
  %v1006 = vpop.f32.mrb[0].mxu0
  %v1007 = vpop.f32.mrb[0].mxu0
  %v1008 = vpop.f32.mrb[0].mxu0
  %1009 = vdwg.mxu0
  %v1010 = vadd.f32 %v964, %v1005
  %v1011 = vxor.u32 %v1010, 2147483648
  %v1012 = vmul.f32 %v1011, 1.442695
  %v1013 = vpow.pop %v1012
  %v1014 = vadd.f32 %v1013, 1.0
  %v1015 = vrcp.pop %v1014
  %v1016 = vmul.f32 1.0, %v1015
  %v1017 = vtanh.pop %v1010
  %v1018 = vmul.f32 %v1016, %v939
  %1020 = vrot.lane.b32.xlu0 %v1017, 32
  %v1021 = vpop.permute.xlu0 %1020
  %v1023 = vmul.f32 %v1016, %v1021
  %1025 = vrot.lane.b32.xlu0 %v1023, 32
  %v1026 = vpop.permute.xlu0 %1025
  %v1028 = vadd.f32 %v1018, %v1026
  %v1029 = vtanh.pop %v1028
  %1031 = vrot.lane.b32.xlu0 %v1029, 32
  %v1032 = vpop.permute.xlu0 %1031
  %v1034 = vmul.f32 %v1016, %v1032
  %v1035 = vpack.c.bf16 %v1034, %v1034
  %v1037 = vunpack.c.l.b16 %v1035
  %v1038 = vpack.c.b16 %v1037, %v1037
  %1039 = vrot.lane.b32.xlu0 %v1038, 64
  %v1040 = vpop.permute.xlu0 %1039
  %s1042 = scalar_lea.vmem %s8, 16
  %1043 = vst.msk [vmem:[%s1042] sm:$0xf] %vm686, %v1040
  %1044 = vrot.lane.b32.xlu0 %v1038, 48
  %v1045 = vpop.permute.xlu0 %1044
  %s1047 = scalar_lea.vmem %s86, 12
  %1048 = vst.msk [vmem:[%s1047] sm:$0xf] %vm686, %v1045
  %s1049 = scalar_lea.vmem [#allocation2], 40
  %v1050 = vld [vmem:[%s1049] sm:$0xff]
  %s1051 = scalar_lea.vmem [#allocation3], 16
  %v1052 = vld [vmem:[%s1051] sm:$0xff]
  %v1053 = vadd.f32 %v1050, %v1052
  %1054 = vrot.lane.b32.xlu0 %v1035, 64
  %v1055 = vpop.permute.xlu0 %1054
  %v1057 = vsel %vm606, %v1055, 0
  %1059 = vmatprep.subr.bf16.mxu0 0
  %1060 = vmatpush1.bf16.msra.mxu0 %v602
  %1061 = vmatprep.subr.bf16.mxu0 0
  %1062 = vmatpush1.bf16.msra.mxu0 %v603
  %1063 = vmatprep.subr.bf16.mxu0 0
  %1064 = vmatpush1.bf16.msra.mxu0 0
  %1065 = vmatprep.subr.bf16.mxu0 0
  %1066 = vmatpush1.bf16.msra.mxu0 0
  %1067 = vmatprep.subr.bf16.mxu0 0
  %1068 = vmatpush1.bf16.msra.mxu0 0
  %1069 = vmatprep.subr.bf16.mxu0 0
  %1070 = vmatpush1.bf16.msra.mxu0 0
  %1071 = vmatprep.subr.bf16.mxu0 0
  %1072 = vmatpush1.bf16.msra.mxu0 0
  %1073 = vmatprep.subr.bf16.mxu0 0
  %1074 = vmatpush1.bf16.msra.mxu0 0
  %1075 = vmatprep.subr.bf16.mxu0 0
  %1076 = vmatpush1.bf16.msra.mxu0 0
  %1077 = vmatprep.subr.bf16.mxu0 0
  %1078 = vmatpush1.bf16.msra.mxu0 0
  %1079 = vmatprep.subr.bf16.mxu0 0
  %1080 = vmatpush1.bf16.msra.mxu0 0
  %1081 = vmatprep.subr.bf16.mxu0 0
  %1082 = vmatpush1.bf16.msra.mxu0 0
  %1083 = vmatprep.subr.bf16.mxu0 0
  %1084 = vmatpush1.bf16.msra.mxu0 0
  %1085 = vmatprep.subr.bf16.mxu0 0
  %1086 = vmatpush1.bf16.msra.mxu0 0
  %1087 = vmatprep.subr.bf16.mxu0 0
  %1088 = vmatpush1.bf16.msra.mxu0 0
  %1089 = vmatprep.subr.bf16.mxu0 0
  %1090 = vmatpush1.bf16.msra.mxu0 0
  %1091 = vmatprep.mubr.bf16.mxu0 0
  %1092 = vmatmul.mubr.bf16.gmra.mrb[0].mxu0 %v1057
  %v1093 = vpop.f32.mrb[0].mxu0
  %v1094 = vadd.f32 0.0, %v1093
  %v1095 = vpop.f32.mrb[0].mxu0
  %v1096 = vpop.f32.mrb[0].mxu0
  %v1097 = vpop.f32.mrb[0].mxu0
  %1098 = vdwg.mxu0
  %v1099 = vadd.f32 %v1053, %v1094
  %v1100 = vxor.u32 %v1099, 2147483648
  %v1101 = vmul.f32 %v1100, 1.442695
  %v1102 = vpow.pop %v1101
  %v1103 = vadd.f32 %v1102, 1.0
  %v1104 = vrcp.pop %v1103
  %v1105 = vmul.f32 1.0, %v1104
  %v1106 = vtanh.pop %v1099
  %v1107 = vmul.f32 %v1105, %v1028
  %1109 = vrot.lane.b32.xlu0 %v1106, 32
  %v1110 = vpop.permute.xlu0 %1109
  %v1112 = vmul.f32 %v1105, %v1110
  %1114 = vrot.lane.b32.xlu0 %v1112, 32
  %v1115 = vpop.permute.xlu0 %1114
  %v1117 = vadd.f32 %v1107, %v1115
  %v1118 = vtanh.pop %v1117
  %1120 = vrot.lane.b32.xlu0 %v1118, 32
  %v1121 = vpop.permute.xlu0 %1120
  %v1123 = vmul.f32 %v1105, %v1121
  %v1124 = vpack.c.bf16 %v1123, %v1123
  %v1126 = vunpack.c.l.b16 %v1124
  %v1127 = vpack.c.b16 %v1126, %v1126
  %1128 = vrot.lane.b32.xlu0 %v1127, 64
  %v1129 = vpop.permute.xlu0 %1128
  %s1131 = scalar_lea.vmem %s8, 20
  %1132 = vst.msk [vmem:[%s1131] sm:$0xf] %vm686, %v1129
  %1133 = vrot.lane.b32.xlu0 %v1127, 48
  %v1134 = vpop.permute.xlu0 %1133
  %s1136 = scalar_lea.vmem %s86, 8
  %1137 = vst.msk [vmem:[%s1136] sm:$0xf] %vm686, %v1134
  %s1138 = scalar_lea.vmem [#allocation2], 48
  %v1139 = vld [vmem:[%s1138] sm:$0xff]
  %s1140 = scalar_lea.vmem [#allocation3], 8
  %v1141 = vld [vmem:[%s1140] sm:$0xff]
  %v1142 = vadd.f32 %v1139, %v1141
  %1143 = vrot.lane.b32.xlu0 %v1124, 64
  %v1144 = vpop.permute.xlu0 %1143
  %v1146 = vsel %vm606, %v1144, 0
  %1148 = vmatprep.subr.bf16.mxu0 0
  %1149 = vmatpush1.bf16.msra.mxu0 %v602
  %1150 = vmatprep.subr.bf16.mxu0 0
  %1151 = vmatpush1.bf16.msra.mxu0 %v603
  %1152 = vmatprep.subr.bf16.mxu0 0
  %1153 = vmatpush1.bf16.msra.mxu0 0
  %1154 = vmatprep.subr.bf16.mxu0 0
  %1155 = vmatpush1.bf16.msra.mxu0 0
  %1156 = vmatprep.subr.bf16.mxu0 0
  %1157 = vmatpush1.bf16.msra.mxu0 0
  %1158 = vmatprep.subr.bf16.mxu0 0
  %1159 = vmatpush1.bf16.msra.mxu0 0
  %1160 = vmatprep.subr.bf16.mxu0 0
  %1161 = vmatpush1.bf16.msra.mxu0 0
  %1162 = vmatprep.subr.bf16.mxu0 0
  %1163 = vmatpush1.bf16.msra.mxu0 0
  %1164 = vmatprep.subr.bf16.mxu0 0
  %1165 = vmatpush1.bf16.msra.mxu0 0
  %1166 = vmatprep.subr.bf16.mxu0 0
  %1167 = vmatpush1.bf16.msra.mxu0 0
  %1168 = vmatprep.subr.bf16.mxu0 0
  %1169 = vmatpush1.bf16.msra.mxu0 0
  %1170 = vmatprep.subr.bf16.mxu0 0
  %1171 = vmatpush1.bf16.msra.mxu0 0
  %1172 = vmatprep.subr.bf16.mxu0 0
  %1173 = vmatpush1.bf16.msra.mxu0 0
  %1174 = vmatprep.subr.bf16.mxu0 0
  %1175 = vmatpush1.bf16.msra.mxu0 0
  %1176 = vmatprep.subr.bf16.mxu0 0
  %1177 = vmatpush1.bf16.msra.mxu0 0
  %1178 = vmatprep.subr.bf16.mxu0 0
  %1179 = vmatpush1.bf16.msra.mxu0 0
  %1180 = vmatprep.mubr.bf16.mxu0 0
  %1181 = vmatmul.mubr.bf16.gmra.mrb[0].mxu0 %v1146
  %v1182 = vpop.f32.mrb[0].mxu0
  %v1183 = vadd.f32 0.0, %v1182
  %v1184 = vpop.f32.mrb[0].mxu0
  %v1185 = vpop.f32.mrb[0].mxu0
  %v1186 = vpop.f32.mrb[0].mxu0
  %1187 = vdwg.mxu0
  %v1188 = vadd.f32 %v1142, %v1183
  %v1189 = vxor.u32 %v1188, 2147483648
  %v1190 = vmul.f32 %v1189, 1.442695
  %v1191 = vpow.pop %v1190
  %v1192 = vadd.f32 %v1191, 1.0
  %v1193 = vrcp.pop %v1192
  %v1194 = vmul.f32 1.0, %v1193
  %v1195 = vtanh.pop %v1188
  %v1196 = vmul.f32 %v1194, %v1117
  %1198 = vrot.lane.b32.xlu0 %v1195, 32
  %v1199 = vpop.permute.xlu0 %1198
  %v1201 = vmul.f32 %v1194, %v1199
  %1203 = vrot.lane.b32.xlu0 %v1201, 32
  %v1204 = vpop.permute.xlu0 %1203
  %v1206 = vadd.f32 %v1196, %v1204
  %v1207 = vtanh.pop %v1206
  %1209 = vrot.lane.b32.xlu0 %v1207, 32
  %v1210 = vpop.permute.xlu0 %1209
  %v1212 = vmul.f32 %v1194, %v1210
  %v1213 = vpack.c.bf16 %v1212, %v1212
  %v1215 = vunpack.c.l.b16 %v1213
  %v1216 = vpack.c.b16 %v1215, %v1215
  %1217 = vrot.lane.b32.xlu0 %v1216, 64
  %v1218 = vpop.permute.xlu0 %1217
  %s1220 = scalar_lea.vmem %s8, 24
  %1221 = vst.msk [vmem:[%s1220] sm:$0xf] %vm686, %v1218
  %1222 = vrot.lane.b32.xlu0 %v1216, 48
  %v1223 = vpop.permute.xlu0 %1222
  %s1225 = scalar_lea.vmem %s86, 4
  %1226 = vst.msk [vmem:[%s1225] sm:$0xf] %vm686, %v1223
  %s1227 = scalar_lea.vmem [#allocation2], 56
  %v1228 = vld [vmem:[%s1227] sm:$0xff]
  %v1229 = vld [vmem:[#allocation3] sm:$0xff]
  %v1230 = vadd.f32 %v1228, %v1229
  %1231 = vrot.lane.b32.xlu0 %v1213, 64
  %v1232 = vpop.permute.xlu0 %1231
  %v1234 = vsel %vm606, %v1232, 0
  %1236 = vmatprep.subr.bf16.mxu0 0
  %1237 = vmatpush1.bf16.msra.mxu0 %v602
  %1238 = vmatprep.subr.bf16.mxu0 0
  %1239 = vmatpush1.bf16.msra.mxu0 %v603
  %1240 = vmatprep.subr.bf16.mxu0 0
  %1241 = vmatpush1.bf16.msra.mxu0 0
  %1242 = vmatprep.subr.bf16.mxu0 0
  %1243 = vmatpush1.bf16.msra.mxu0 0
  %1244 = vmatprep.subr.bf16.mxu0 0
  %1245 = vmatpush1.bf16.msra.mxu0 0
  %1246 = vmatprep.subr.bf16.mxu0 0
  %1247 = vmatpush1.bf16.msra.mxu0 0
  %1248 = vmatprep.subr.bf16.mxu0 0
  %1249 = vmatpush1.bf16.msra.mxu0 0
  %1250 = vmatprep.subr.bf16.mxu0 0
  %1251 = vmatpush1.bf16.msra.mxu0 0
  %1252 = vmatprep.subr.bf16.mxu0 0
  %1253 = vmatpush1.bf16.msra.mxu0 0
  %1254 = vmatprep.subr.bf16.mxu0 0
  %1255 = vmatpush1.bf16.msra.mxu0 0
  %1256 = vmatprep.subr.bf16.mxu0 0
  %1257 = vmatpush1.bf16.msra.mxu0 0
  %1258 = vmatprep.subr.bf16.mxu0 0
  %1259 = vmatpush1.bf16.msra.mxu0 0
  %1260 = vmatprep.subr.bf16.mxu0 0
  %1261 = vmatpush1.bf16.msra.mxu0 0
  %1262 = vmatprep.subr.bf16.mxu0 0
  %1263 = vmatpush1.bf16.msra.mxu0 0
  %1264 = vmatprep.subr.bf16.mxu0 0
  %1265 = vmatpush1.bf16.msra.mxu0 0
  %1266 = vmatprep.subr.bf16.mxu0 0
  %1267 = vmatpush1.bf16.msra.mxu0 0
  %1268 = vmatprep.mubr.bf16.mxu0 0
  %1269 = vmatmul.mubr.bf16.gmra.mrb[0].mxu0 %v1234
  %v1270 = vpop.f32.mrb[0].mxu0
  %v1271 = vadd.f32 0.0, %v1270
  %v1272 = vpop.f32.mrb[0].mxu0
  %v1273 = vpop.f32.mrb[0].mxu0
  %v1274 = vpop.f32.mrb[0].mxu0
  %1275 = vdwg.mxu0
  %v1276 = vadd.f32 %v1230, %v1271
  %v1277 = vxor.u32 %v1276, 2147483648
  %v1278 = vmul.f32 %v1277, 1.442695
  %v1279 = vpow.pop %v1278
  %v1280 = vadd.f32 %v1279, 1.0
  %v1281 = vrcp.pop %v1280
  %v1282 = vmul.f32 1.0, %v1281
  %v1283 = vtanh.pop %v1276
  %v1284 = vmul.f32 %v1282, %v1206
  %1286 = vrot.lane.b32.xlu0 %v1283, 32
  %v1287 = vpop.permute.xlu0 %1286
  %v1289 = vmul.f32 %v1282, %v1287
  %1291 = vrot.lane.b32.xlu0 %v1289, 32
  %v1292 = vpop.permute.xlu0 %1291
  %v1294 = vadd.f32 %v1284, %v1292
  %v1295 = vtanh.pop %v1294
  %1297 = vrot.lane.b32.xlu0 %v1295, 32
  %v1298 = vpop.permute.xlu0 %1297
  %v1300 = vmul.f32 %v1282, %v1298
  %v1301 = vpack.c.bf16 %v1300, %v1300
  %v1303 = vunpack.c.l.b16 %v1301
  %v1304 = vpack.c.b16 %v1303, %v1303
  %1305 = vrot.lane.b32.xlu0 %v1304, 64
  %v1306 = vpop.permute.xlu0 %1305
  %s1308 = scalar_lea.vmem %s8, 28
  %1309 = vst.msk [vmem:[%s1308] sm:$0xf] %vm686, %v1306
  %1310 = vrot.lane.b32.xlu0 %v1304, 48
  %v1311 = vpop.permute.xlu0 %1310
  %1313 = vst.msk [vmem:[%s86] sm:$0xf] %vm686, %v1311
  %vm1314 = vcmask 257024
  %1315 = vst.msk [vmem:[#allocation4] sm:$0xf] %vm1314, %v1306
  %1317 = vrot.lane.b32.xlu0 %v1294, 96
  %v1318 = vpop.permute.xlu0 %1317
  %1320 = vst.msk [vmem:[#allocation5] sm:$0xff] %vm606, %v1318
  %s1321 = ssub.s32 0, 0
  %s1322 = smul.u32 8, %s1321
  %p1323 = scmp.lt.s32.totalorder %s1322, 7
  %s1324 = scalar_select %p1323, %s1322, 7
  %s1325 = smul.addr %s1324, 4
  %s1326 = scalar_lea.vmem %s9, %s1325
  // Predicated region
  $region38: #{rnn_forward.4} parent=0 // pred_check
    _
  $region39: #{rnn_forward.4} parent=0 // pred_check_branch
    %1328 = sbr.rel (0) target = $region41
  $region40: #{rnn_forward.4} parent=0 // pred_region
    _
  $region41: #{rnn_forward.4} parent=0 // pred_fallthru
    _
  // Predicated region
  $region42: #{rnn_forward.4} parent=0 // pred_check
    _
  $region43: #{rnn_forward.4} parent=0 // pred_check_branch
    %1330 = sbr.rel (0) target = $region45
  $region44: #{rnn_forward.4} parent=0 // pred_region
    %s1331 = ssub.s32 0, 0
    %s1332 = smul.u32 8, %s1331
  $region45: #{rnn_forward.4} parent=0 // pred_fallthru
    _
  // Predicated region
  $region46: #{rnn_forward.4} parent=0 // pred_check
    _
  $region47: #{rnn_forward.4} parent=0 // pred_check_branch
    %1334 = sbr.rel (0) target = $region49
  $region48: #{rnn_forward.4} parent=0 // pred_region
    _
  $region49: #{rnn_forward.4} parent=0 // pred_fallthru
    _
  // Predicated region
  $region50: #{rnn_forward.4} parent=0 // pred_check
    _
  $region51: #{rnn_forward.4} parent=0 // pred_check_branch
    %1336 = sbr.rel (0) target = $region53
  $region52: #{rnn_forward.4} parent=0 // pred_region
    %s1337 = ssub.s32 0, 0
    %s1338 = smul.u32 8, %s1337
    %p1339 = scmp.lt.s32.totalorder %s1338, 7
    %s1340 = scalar_select %p1339, %s1338, 7
    %s1341 = smul.addr %s1340, 4
    %s1342 = scalar_lea.vmem %s9, %s1341
  $region53: #{rnn_forward.4} parent=0 // pred_fallthru
    _

</llo_original>
